<compile_context>
chip_gen: v7x
topology: tpu7x:2x2x1
jax: 0.10.0
libtpu: 0.0.40
codegen_flags: <defaults>
</compile_context>

<pallas_src>
import functools

import jax
import jax.numpy as jnp
from jax.experimental import pallas as pl
from jax.experimental.pallas import tpu as pltpu


# ------------------------------ fused forward kernel ------------------------------

def _fused_lstmgcn_kernel(*refs, T, N, H, num_gcn, use_feats):
    # refs layout:
    #   [0] a_ref     (T, N, N)   normalized adjacency per timestep
    #   [1] x_ref     (T, N, F0)  node features per timestep
    #   [2] feats_ref (N, F0)     trainable feature multiplier
    #   [3 .. 3+2*num_gcn)        (W_i, b_i) per GCN layer
    #   next 8                    GRU1/GRU2: W_ih_cat, W_hh_cat, b_ih_cat, b_hh_cat
    #   last                      out_ref (N, T*H)
    a_ref, x_ref, feats_ref = refs[0], refs[1], refs[2]
    gcn_refs = refs[3:3 + 2 * num_gcn]
    (wih1_ref, whh1_ref, bih1_ref, bhh1_ref,
     wih2_ref, whh2_ref, bih2_ref, bhh2_ref) = refs[3 + 2 * num_gcn:3 + 2 * num_gcn + 8]
    out_ref = refs[-1]

    a = a_ref[...]                                     # (T, N, N)
    x = x_ref[...]                                     # (T, N, F0)
    if use_feats:
        x = x * feats_ref[...][None, :, :]             # broadcast over time

    # ---- GCN stack: batched input projection over (T*N) rows per layer, then a single
    #      batched dense aggregation over T (einsum with leading batch dim -> MXU).
    f0 = x.shape[-1]
    cur = x.reshape(T * N, f0)                         # layout-free (N multiple of 8)

    for li in range(num_gcn):
        w = gcn_refs[2 * li][...]                      # (Fin, Fout)
        b = gcn_refs[2 * li + 1][...]                  # (1, Fout)
        fout = w.shape[1]
        proj = jnp.dot(cur, w, preferred_element_type=jnp.float32)        # (T*N, Fout)
        proj3 = proj.reshape(T, N, fout)
        agg = jnp.einsum("tnm,tmf->tnf", a, proj3,
                         preferred_element_type=jnp.float32)              # (T, N, Fout)
        cur = agg.reshape(T * N, fout) + b                                # (T*N, Fout)

    # ---- GRU layer: concatenated gates (in, 3H) in gate order [r | z | n];
    #      input projection hoisted out of the recurrence; hidden state carried in values.
    def run_gru(x_flat, wih, whh, bih, bhh):
        gx_all = jnp.dot(x_flat, wih, preferred_element_type=jnp.float32) + bih  # (T*N, 3H)
        h = jnp.zeros((N, H), jnp.float32)
        outs = []
        for t in range(T):
            gx = gx_all[t * N:(t + 1) * N, :]                                    # (N, 3H)
            gh = jnp.dot(h, whh, preferred_element_type=jnp.float32) + bhh       # (N, 3H)
            r = jax.nn.sigmoid(gx[:, 0:H] + gh[:, 0:H])
            z = jax.nn.sigmoid(gx[:, H:2 * H] + gh[:, H:2 * H])
            n = jnp.tanh(gx[:, 2 * H:3 * H] + r * gh[:, 2 * H:3 * H])
            h = (1.0 - z) * n + z * h
            outs.append(h)
        return outs

    outs1 = run_gru(cur,
                    wih1_ref[...], whh1_ref[...], bih1_ref[...], bhh1_ref[...])
    outs2 = run_gru(jnp.concatenate(outs1, axis=0),
                    wih2_ref[...], whh2_ref[...], bih2_ref[...], bhh2_ref[...])

    # ---- Lane-dense final store: out[n, t*H:(t+1)*H] = h_t[n, :]  (single dense vst).
    out_ref[...] = jnp.concatenate(outs2, axis=1).astype(out_ref.dtype)   # (N, T*H)


# ----------------------------- model forward (wrapper) -----------------------------

@functools.partial(jax.jit, static_argnames=("use_trainable_feature",))
def lstmgcn_forward(a_norms, x0, feats, gcn_ws, gcn_bs, gru1, gru2,
                    use_trainable_feature=True):
    T, N, _ = x0.shape
    H = gcn_ws[-1].shape[1]
    num_gcn = len(gcn_ws)

    def cat_gru(params):
        w_ih, w_hh, b_ih, b_hh = params          # (3, in, H), (3, H, H), (3, 1, H), (3, 1, H)
        wih = jnp.concatenate([w_ih[0], w_ih[1], w_ih[2]], axis=1)   # (in, 3H)  [r|z|n]
        whh = jnp.concatenate([w_hh[0], w_hh[1], w_hh[2]], axis=1)   # (H, 3H)
        bih = jnp.concatenate([b_ih[0], b_ih[1], b_ih[2]], axis=1)   # (1, 3H)
        bhh = jnp.concatenate([b_hh[0], b_hh[1], b_hh[2]], axis=1)   # (1, 3H)
        return wih, whh, bih, bhh

    gru1_cat = cat_gru(gru1)
    gru2_cat = cat_gru(gru2)

    gcn_flat = []
    for w, b in zip(gcn_ws, gcn_bs):
        gcn_flat += [w, b]

    kernel = functools.partial(
        _fused_lstmgcn_kernel, T=T, N=N, H=H, num_gcn=num_gcn,
        use_feats=bool(use_trainable_feature))

    num_inputs = 3 + 2 * num_gcn + 8
    out_flat = pl.pallas_call(
        kernel,
        out_shape=jax.ShapeDtypeStruct((N, T * H), jnp.float32),
        in_specs=[pl.BlockSpec(memory_space=pltpu.MemorySpace.VMEM)] * num_inputs,
        out_specs=pl.BlockSpec(memory_space=pltpu.MemorySpace.VMEM),
    )(a_norms, x0, feats, *gcn_flat, *gru1_cat, *gru2_cat)

    # out_flat[n, t*H + h] == hidden(t, n, h)  ->  equals output.transpose(0, 1); reshape is free.
    return out_flat.reshape(N, T, H)


# --------------------------------- reference (JAX) ---------------------------------

def reference_forward(a_norms, x0, feats, gcn_ws, gcn_bs, gru1, gru2,
                      use_trainable_feature=True):
    x = x0 * feats[None] if use_trainable_feature else x0
    for w, b in zip(gcn_ws, gcn_bs):
        x = jnp.einsum("tnm,tmf->tnf", a_norms, jnp.einsum("tnf,fg->tng", x, w)) + b

    def run_gru(x, wih, whh, bih, bhh):
        T, N, H = x.shape
        h = jnp.zeros((N, H), jnp.float32)
        outs = []
        for t in range(T):
            gx = [x[t] @ wih[i] + bih[i] for i in range(3)]
            gh = [h @ whh[i] + bhh[i] for i in range(3)]
            r = jax.nn.sigmoid(gx[0] + gh[0])
            z = jax.nn.sigmoid(gx[1] + gh[1])
            n = jnp.tanh(gx[2] + r * gh[2])
            h = (1.0 - z) * n + z * h
            outs.append(h)
        return jnp.stack(outs)

    out = run_gru(x, *gru1)
    out = run_gru(out, *gru2)
    return jnp.transpose(out, (1, 0, 2))


# --------------------------------------- setup -------------------------------------

def glorot(key, shape):
    fan_in, fan_out = shape[-2], shape[-1]
    limit = (6.0 / (fan_in + fan_out)) ** 0.5
    return jax.random.uniform(key, shape, jnp.float32, -limit, limit)


def build_normalized_adj(key, T, N, num_edges):
    """Dense GCN-normalized adjacency D^-1/2 (A + I) D^-1/2, per timestep."""
    adjs = []
    for _ in range(T):
        k1, k2, key = jax.random.split(key, 3)
        src = jax.random.randint(k1, (num_edges,), 0, N)
        dst = jax.random.randint(k2, (num_edges,), 0, N)
        a = jnp.zeros((N, N), jnp.float32)
        a = a.at[src, dst].set(1.0)
        a = a.at[dst, src].set(1.0)            # symmetric edges
        a = a + jnp.eye(N, dtype=jnp.float32)  # self loops
        deg = a.sum(axis=1)
        d_inv_sqrt = 1.0 / jnp.sqrt(deg)
        a_hat = a * d_inv_sqrt[:, None] * d_inv_sqrt[None, :]
        adjs.append(a_hat)
    return jnp.stack(adjs)


if __name__ == "__main__":
    # args: node_num=16, nfeat=8, in_feature_list=[8, 16], out_feat=32, cov_num=2,
    #       seq_len (len(graphs))=6, use_trainable_feature=True
    T, N, NFEAT, OUT_FEAT = 6, 16, 8, 32
    in_feature_list = [NFEAT, 16, OUT_FEAT]   # [..., out_feat] appended as in __init__
    cov_num = 2

    key = jax.random.PRNGKey(0)
    k_adj, k_x, k_feats, key = jax.random.split(key, 4)

    a_norms = build_normalized_adj(k_adj, T, N, num_edges=32)          # [T, N, N]
    x0 = jax.random.normal(k_x, (T, N, NFEAT), jnp.float32)            # graph.x per t
    feats = glorot(k_feats, (N, NFEAT))                                # trainable feats

    gcn_ws, gcn_bs = [], []
    for i in range(cov_num):
        kw, key = jax.random.split(key)
        gcn_ws.append(glorot(kw, (in_feature_list[i], in_feature_list[i + 1])))
        gcn_bs.append(jnp.zeros((1, in_feature_list[i + 1]), jnp.float32))

    def make_gru_params(key, H):
        ks = jax.random.split(key, 4)
        w_ih = glorot(ks[0], (3, H, H))          # gate order: r, z, n
        w_hh = glorot(ks[1], (3, H, H))
        b_ih = 0.01 * jax.random.normal(ks[2], (3, 1, H), jnp.float32)
        b_hh = 0.01 * jax.random.normal(ks[3], (3, 1, H), jnp.float32)
        return (w_ih, w_hh, b_ih, b_hh)

    k1, k2 = jax.random.split(key)
    gru1 = make_gru_params(k1, OUT_FEAT)
    gru2 = make_gru_params(k2, OUT_FEAT)

    out = lstmgcn_forward(a_norms, x0, feats, tuple(gcn_ws), tuple(gcn_bs),
                          gru1, gru2, use_trainable_feature=True)
    out = jax.block_until_ready(out)
    assert out.shape == (N, T, OUT_FEAT), out.shape

    ref = reference_forward(a_norms, x0, feats, gcn_ws, gcn_bs, gru1, gru2,
                            use_trainable_feature=True)
    assert jnp.allclose(out, ref, atol=1e-2, rtol=1e-2), \
        float(jnp.max(jnp.abs(out - ref)))

    print("KERNEL_OK")
</pallas_src>

<mosaic_0001>
module attributes {stable_mosaic.version = 11 : i64} {
  func.func @_fused_lstmgcn_kernel(%arg0: memref<6x16x16xf32, #tpu.memory_space<vmem>>, %arg1: memref<6x16x8xf32, #tpu.memory_space<vmem>>, %arg2: memref<16x8xf32, #tpu.memory_space<vmem>>, %arg3: memref<8x16xf32, #tpu.memory_space<vmem>>, %arg4: memref<1x16xf32, #tpu.memory_space<vmem>>, %arg5: memref<16x32xf32, #tpu.memory_space<vmem>>, %arg6: memref<1x32xf32, #tpu.memory_space<vmem>>, %arg7: memref<32x96xf32, #tpu.memory_space<vmem>>, %arg8: memref<32x96xf32, #tpu.memory_space<vmem>>, %arg9: memref<1x96xf32, #tpu.memory_space<vmem>>, %arg10: memref<1x96xf32, #tpu.memory_space<vmem>>, %arg11: memref<32x96xf32, #tpu.memory_space<vmem>>, %arg12: memref<32x96xf32, #tpu.memory_space<vmem>>, %arg13: memref<1x96xf32, #tpu.memory_space<vmem>>, %arg14: memref<1x96xf32, #tpu.memory_space<vmem>>, %arg15: memref<16x192xf32, #tpu.memory_space<vmem>>) attributes {dimension_semantics = [], scalar_prefetch = 0 : i64, scratch_operands = 0 : i64, tpu.core_type = #tpu.core_type<tc>} {
    %c0 = arith.constant 0 : index
    %c0_0 = arith.constant 0 : index
    %c0_1 = arith.constant 0 : index
    %0 = vector.load %arg0[%c0, %c0_0, %c0_1] : memref<6x16x16xf32, #tpu.memory_space<vmem>>, vector<6x16x16xf32>
    %c0_2 = arith.constant 0 : index
    %c0_3 = arith.constant 0 : index
    %c0_4 = arith.constant 0 : index
    %1 = vector.load %arg1[%c0_2, %c0_3, %c0_4] : memref<6x16x8xf32, #tpu.memory_space<vmem>>, vector<6x16x8xf32>
    %c0_5 = arith.constant 0 : index
    %c0_6 = arith.constant 0 : index
    %2 = vector.load %arg2[%c0_5, %c0_6] : memref<16x8xf32, #tpu.memory_space<vmem>>, vector<16x8xf32>
    %3 = vector.shape_cast %2 : vector<16x8xf32> to vector<1x16x8xf32>
    %4 = vector.broadcast %3 : vector<1x16x8xf32> to vector<6x16x8xf32>
    %5 = arith.mulf %1, %4 : vector<6x16x8xf32>
    %6 = vector.shape_cast %5 : vector<6x16x8xf32> to vector<96x8xf32>
    %c0_7 = arith.constant 0 : index
    %c0_8 = arith.constant 0 : index
    %7 = vector.load %arg3[%c0_7, %c0_8] : memref<8x16xf32, #tpu.memory_space<vmem>>, vector<8x16xf32>
    %c0_9 = arith.constant 0 : index
    %c0_10 = arith.constant 0 : index
    %8 = vector.load %arg4[%c0_9, %c0_10] : memref<1x16xf32, #tpu.memory_space<vmem>>, vector<1x16xf32>
    %cst = arith.constant dense<0.000000e+00> : vector<96x16xf32>
    %9 = tpu.matmul %6, %7, %cst {dimension_numbers = #tpu.dot_dimension_numbers<[1], [0], [0], [1], [0, 0, 1, 1], [], []>} : vector<96x8xf32>, vector<8x16xf32>, vector<96x16xf32> -> vector<96x16xf32>
    %10 = vector.shape_cast %9 : vector<96x16xf32> to vector<6x16x16xf32>
    "tpu.trace_start"() <{level = 10 : i32, message = "tnm,tmf->tnf"}> : () -> ()
    %cst_11 = arith.constant dense<0.000000e+00> : vector<6x16x16xf32>
    %11 = tpu.matmul %0, %10, %cst_11 {dimension_numbers = #tpu.dot_dimension_numbers<[2], [1], [1], [2], [0, 0, 0, 1, 1, 2], [0], [0]>} : vector<6x16x16xf32>, vector<6x16x16xf32>, vector<6x16x16xf32> -> vector<6x16x16xf32>
    "tpu.trace_stop"() : () -> ()
    %12 = vector.shape_cast %11 : vector<6x16x16xf32> to vector<96x16xf32>
    %13 = vector.broadcast %8 : vector<1x16xf32> to vector<96x16xf32>
    %14 = arith.addf %12, %13 : vector<96x16xf32>
    %c0_12 = arith.constant 0 : index
    %c0_13 = arith.constant 0 : index
    %15 = vector.load %arg5[%c0_12, %c0_13] : memref<16x32xf32, #tpu.memory_space<vmem>>, vector<16x32xf32>
    %c0_14 = arith.constant 0 : index
    %c0_15 = arith.constant 0 : index
    %16 = vector.load %arg6[%c0_14, %c0_15] : memref<1x32xf32, #tpu.memory_space<vmem>>, vector<1x32xf32>
    %cst_16 = arith.constant dense<0.000000e+00> : vector<96x32xf32>
    %17 = tpu.matmul %14, %15, %cst_16 {dimension_numbers = #tpu.dot_dimension_numbers<[1], [0], [0], [1], [0, 0, 1, 1], [], []>} : vector<96x16xf32>, vector<16x32xf32>, vector<96x32xf32> -> vector<96x32xf32>
    %18 = vector.shape_cast %17 : vector<96x32xf32> to vector<6x16x32xf32>
    "tpu.trace_start"() <{level = 10 : i32, message = "tnm,tmf->tnf"}> : () -> ()
    %cst_17 = arith.constant dense<0.000000e+00> : vector<6x16x32xf32>
    %19 = tpu.matmul %0, %18, %cst_17 {dimension_numbers = #tpu.dot_dimension_numbers<[2], [1], [1], [2], [0, 0, 0, 1, 1, 2], [0], [0]>} : vector<6x16x16xf32>, vector<6x16x32xf32>, vector<6x16x32xf32> -> vector<6x16x32xf32>
    "tpu.trace_stop"() : () -> ()
    %20 = vector.shape_cast %19 : vector<6x16x32xf32> to vector<96x32xf32>
    %21 = vector.broadcast %16 : vector<1x32xf32> to vector<96x32xf32>
    %22 = arith.addf %20, %21 : vector<96x32xf32>
    %c0_18 = arith.constant 0 : index
    %c0_19 = arith.constant 0 : index
    %23 = vector.load %arg7[%c0_18, %c0_19] : memref<32x96xf32, #tpu.memory_space<vmem>>, vector<32x96xf32>
    %c0_20 = arith.constant 0 : index
    %c0_21 = arith.constant 0 : index
    %24 = vector.load %arg8[%c0_20, %c0_21] : memref<32x96xf32, #tpu.memory_space<vmem>>, vector<32x96xf32>
    %c0_22 = arith.constant 0 : index
    %c0_23 = arith.constant 0 : index
    %25 = vector.load %arg9[%c0_22, %c0_23] : memref<1x96xf32, #tpu.memory_space<vmem>>, vector<1x96xf32>
    %c0_24 = arith.constant 0 : index
    %c0_25 = arith.constant 0 : index
    %26 = vector.load %arg10[%c0_24, %c0_25] : memref<1x96xf32, #tpu.memory_space<vmem>>, vector<1x96xf32>
    %cst_26 = arith.constant dense<0.000000e+00> : vector<96x96xf32>
    %27 = tpu.matmul %22, %23, %cst_26 {dimension_numbers = #tpu.dot_dimension_numbers<[1], [0], [0], [1], [0, 0, 1, 1], [], []>} : vector<96x32xf32>, vector<32x96xf32>, vector<96x96xf32> -> vector<96x96xf32>
    %28 = vector.broadcast %25 : vector<1x96xf32> to vector<96x96xf32>
    %29 = arith.addf %27, %28 : vector<96x96xf32>
    %cst_27 = arith.constant 0.000000e+00 : f32
    %30 = vector.broadcast %cst_27 : f32 to vector<16x32xf32>
    %31 = vector.extract_strided_slice %29 {offsets = [0, 0], sizes = [16, 96], strides = [1, 1]} : vector<96x96xf32> to vector<16x96xf32>
    %cst_28 = arith.constant dense<0.000000e+00> : vector<16x96xf32>
    %32 = tpu.matmul %30, %24, %cst_28 {dimension_numbers = #tpu.dot_dimension_numbers<[1], [0], [0], [1], [0, 0, 1, 1], [], []>} : vector<16x32xf32>, vector<32x96xf32>, vector<16x96xf32> -> vector<16x96xf32>
    %33 = vector.broadcast %26 : vector<1x96xf32> to vector<16x96xf32>
    %34 = arith.addf %32, %33 : vector<16x96xf32>
    %35 = vector.extract_strided_slice %31 {offsets = [0, 0], sizes = [16, 32], strides = [1, 1]} : vector<16x96xf32> to vector<16x32xf32>
    %36 = vector.extract_strided_slice %34 {offsets = [0, 0], sizes = [16, 32], strides = [1, 1]} : vector<16x96xf32> to vector<16x32xf32>
    %37 = arith.addf %35, %36 : vector<16x32xf32>
    %38 = arith.negf %37 : vector<16x32xf32>
    %39 = math.exp %38 : vector<16x32xf32>
    %cst_29 = arith.constant 1.000000e+00 : f32
    %40 = vector.broadcast %cst_29 : f32 to vector<16x32xf32>
    %41 = arith.addf %40, %39 : vector<16x32xf32>
    %42 = arith.divf %40, %41 : vector<16x32xf32>
    %43 = vector.extract_strided_slice %31 {offsets = [0, 32], sizes = [16, 32], strides = [1, 1]} : vector<16x96xf32> to vector<16x32xf32>
    %44 = vector.extract_strided_slice %34 {offsets = [0, 32], sizes = [16, 32], strides = [1, 1]} : vector<16x96xf32> to vector<16x32xf32>
    %45 = arith.addf %43, %44 : vector<16x32xf32>
    %46 = arith.negf %45 : vector<16x32xf32>
    %47 = math.exp %46 : vector<16x32xf32>
    %cst_30 = arith.constant 1.000000e+00 : f32
    %48 = vector.broadcast %cst_30 : f32 to vector<16x32xf32>
    %49 = arith.addf %48, %47 : vector<16x32xf32>
    %50 = arith.divf %48, %49 : vector<16x32xf32>
    %51 = vector.extract_strided_slice %31 {offsets = [0, 64], sizes = [16, 32], strides = [1, 1]} : vector<16x96xf32> to vector<16x32xf32>
    %52 = vector.extract_strided_slice %34 {offsets = [0, 64], sizes = [16, 32], strides = [1, 1]} : vector<16x96xf32> to vector<16x32xf32>
    %53 = arith.mulf %42, %52 : vector<16x32xf32>
    %54 = arith.addf %51, %53 : vector<16x32xf32>
    %55 = math.tanh %54 : vector<16x32xf32>
    %cst_31 = arith.constant 1.000000e+00 : f32
    %56 = vector.broadcast %cst_31 : f32 to vector<16x32xf32>
    %57 = arith.subf %56, %50 : vector<16x32xf32>
    %58 = arith.mulf %57, %55 : vector<16x32xf32>
    %59 = arith.mulf %50, %30 : vector<16x32xf32>
    %60 = arith.addf %58, %59 : vector<16x32xf32>
    %61 = vector.extract_strided_slice %29 {offsets = [16, 0], sizes = [16, 96], strides = [1, 1]} : vector<96x96xf32> to vector<16x96xf32>
    %cst_32 = arith.constant dense<0.000000e+00> : vector<16x96xf32>
    %62 = tpu.matmul %60, %24, %cst_32 {dimension_numbers = #tpu.dot_dimension_numbers<[1], [0], [0], [1], [0, 0, 1, 1], [], []>} : vector<16x32xf32>, vector<32x96xf32>, vector<16x96xf32> -> vector<16x96xf32>
    %63 = vector.broadcast %26 : vector<1x96xf32> to vector<16x96xf32>
    %64 = arith.addf %62, %63 : vector<16x96xf32>
    %65 = vector.extract_strided_slice %61 {offsets = [0, 0], sizes = [16, 32], strides = [1, 1]} : vector<16x96xf32> to vector<16x32xf32>
    %66 = vector.extract_strided_slice %64 {offsets = [0, 0], sizes = [16, 32], strides = [1, 1]} : vector<16x96xf32> to vector<16x32xf32>
    %67 = arith.addf %65, %66 : vector<16x32xf32>
    %68 = arith.negf %67 : vector<16x32xf32>
    %69 = math.exp %68 : vector<16x32xf32>
    %cst_33 = arith.constant 1.000000e+00 : f32
    %70 = vector.broadcast %cst_33 : f32 to vector<16x32xf32>
    %71 = arith.addf %70, %69 : vector<16x32xf32>
    %72 = arith.divf %70, %71 : vector<16x32xf32>
    %73 = vector.extract_strided_slice %61 {offsets = [0, 32], sizes = [16, 32], strides = [1, 1]} : vector<16x96xf32> to vector<16x32xf32>
    %74 = vector.extract_strided_slice %64 {offsets = [0, 32], sizes = [16, 32], strides = [1, 1]} : vector<16x96xf32> to vector<16x32xf32>
    %75 = arith.addf %73, %74 : vector<16x32xf32>
    %76 = arith.negf %75 : vector<16x32xf32>
    %77 = math.exp %76 : vector<16x32xf32>
    %cst_34 = arith.constant 1.000000e+00 : f32
    %78 = vector.broadcast %cst_34 : f32 to vector<16x32xf32>
    %79 = arith.addf %78, %77 : vector<16x32xf32>
    %80 = arith.divf %78, %79 : vector<16x32xf32>
    %81 = vector.extract_strided_slice %61 {offsets = [0, 64], sizes = [16, 32], strides = [1, 1]} : vector<16x96xf32> to vector<16x32xf32>
    %82 = vector.extract_strided_slice %64 {offsets = [0, 64], sizes = [16, 32], strides = [1, 1]} : vector<16x96xf32> to vector<16x32xf32>
    %83 = arith.mulf %72, %82 : vector<16x32xf32>
    %84 = arith.addf %81, %83 : vector<16x32xf32>
    %85 = math.tanh %84 : vector<16x32xf32>
    %cst_35 = arith.constant 1.000000e+00 : f32
    %86 = vector.broadcast %cst_35 : f32 to vector<16x32xf32>
    %87 = arith.subf %86, %80 : vector<16x32xf32>
    %88 = arith.mulf %87, %85 : vector<16x32xf32>
    %89 = arith.mulf %80, %60 : vector<16x32xf32>
    %90 = arith.addf %88, %89 : vector<16x32xf32>
    %91 = vector.extract_strided_slice %29 {offsets = [32, 0], sizes = [16, 96], strides = [1, 1]} : vector<96x96xf32> to vector<16x96xf32>
    %cst_36 = arith.constant dense<0.000000e+00> : vector<16x96xf32>
    %92 = tpu.matmul %90, %24, %cst_36 {dimension_numbers = #tpu.dot_dimension_numbers<[1], [0], [0], [1], [0, 0, 1, 1], [], []>} : vector<16x32xf32>, vector<32x96xf32>, vector<16x96xf32> -> vector<16x96xf32>
    %93 = vector.broadcast %26 : vector<1x96xf32> to vector<16x96xf32>
    %94 = arith.addf %92, %93 : vector<16x96xf32>
    %95 = vector.extract_strided_slice %91 {offsets = [0, 0], sizes = [16, 32], strides = [1, 1]} : vector<16x96xf32> to vector<16x32xf32>
    %96 = vector.extract_strided_slice %94 {offsets = [0, 0], sizes = [16, 32], strides = [1, 1]} : vector<16x96xf32> to vector<16x32xf32>
    %97 = arith.addf %95, %96 : vector<16x32xf32>
    %98 = arith.negf %97 : vector<16x32xf32>
    %99 = math.exp %98 : vector<16x32xf32>
    %cst_37 = arith.constant 1.000000e+00 : f32
    %100 = vector.broadcast %cst_37 : f32 to vector<16x32xf32>
    %101 = arith.addf %100, %99 : vector<16x32xf32>
    %102 = arith.divf %100, %101 : vector<16x32xf32>
    %103 = vector.extract_strided_slice %91 {offsets = [0, 32], sizes = [16, 32], strides = [1, 1]} : vector<16x96xf32> to vector<16x32xf32>
    %104 = vector.extract_strided_slice %94 {offsets = [0, 32], sizes = [16, 32], strides = [1, 1]} : vector<16x96xf32> to vector<16x32xf32>
    %105 = arith.addf %103, %104 : vector<16x32xf32>
    %106 = arith.negf %105 : vector<16x32xf32>
    %107 = math.exp %106 : vector<16x32xf32>
    %cst_38 = arith.constant 1.000000e+00 : f32
    %108 = vector.broadcast %cst_38 : f32 to vector<16x32xf32>
    %109 = arith.addf %108, %107 : vector<16x32xf32>
    %110 = arith.divf %108, %109 : vector<16x32xf32>
    %111 = vector.extract_strided_slice %91 {offsets = [0, 64], sizes = [16, 32], strides = [1, 1]} : vector<16x96xf32> to vector<16x32xf32>
    %112 = vector.extract_strided_slice %94 {offsets = [0, 64], sizes = [16, 32], strides = [1, 1]} : vector<16x96xf32> to vector<16x32xf32>
    %113 = arith.mulf %102, %112 : vector<16x32xf32>
    %114 = arith.addf %111, %113 : vector<16x32xf32>
    %115 = math.tanh %114 : vector<16x32xf32>
    %cst_39 = arith.constant 1.000000e+00 : f32
    %116 = vector.broadcast %cst_39 : f32 to vector<16x32xf32>
    %117 = arith.subf %116, %110 : vector<16x32xf32>
    %118 = arith.mulf %117, %115 : vector<16x32xf32>
    %119 = arith.mulf %110, %90 : vector<16x32xf32>
    %120 = arith.addf %118, %119 : vector<16x32xf32>
    %121 = vector.extract_strided_slice %29 {offsets = [48, 0], sizes = [16, 96], strides = [1, 1]} : vector<96x96xf32> to vector<16x96xf32>
    %cst_40 = arith.constant dense<0.000000e+00> : vector<16x96xf32>
    %122 = tpu.matmul %120, %24, %cst_40 {dimension_numbers = #tpu.dot_dimension_numbers<[1], [0], [0], [1], [0, 0, 1, 1], [], []>} : vector<16x32xf32>, vector<32x96xf32>, vector<16x96xf32> -> vector<16x96xf32>
    %123 = vector.broadcast %26 : vector<1x96xf32> to vector<16x96xf32>
    %124 = arith.addf %122, %123 : vector<16x96xf32>
    %125 = vector.extract_strided_slice %121 {offsets = [0, 0], sizes = [16, 32], strides = [1, 1]} : vector<16x96xf32> to vector<16x32xf32>
    %126 = vector.extract_strided_slice %124 {offsets = [0, 0], sizes = [16, 32], strides = [1, 1]} : vector<16x96xf32> to vector<16x32xf32>
    %127 = arith.addf %125, %126 : vector<16x32xf32>
    %128 = arith.negf %127 : vector<16x32xf32>
    %129 = math.exp %128 : vector<16x32xf32>
    %cst_41 = arith.constant 1.000000e+00 : f32
    %130 = vector.broadcast %cst_41 : f32 to vector<16x32xf32>
    %131 = arith.addf %130, %129 : vector<16x32xf32>
    %132 = arith.divf %130, %131 : vector<16x32xf32>
    %133 = vector.extract_strided_slice %121 {offsets = [0, 32], sizes = [16, 32], strides = [1, 1]} : vector<16x96xf32> to vector<16x32xf32>
    %134 = vector.extract_strided_slice %124 {offsets = [0, 32], sizes = [16, 32], strides = [1, 1]} : vector<16x96xf32> to vector<16x32xf32>
    %135 = arith.addf %133, %134 : vector<16x32xf32>
    %136 = arith.negf %135 : vector<16x32xf32>
    %137 = math.exp %136 : vector<16x32xf32>
    %cst_42 = arith.constant 1.000000e+00 : f32
    %138 = vector.broadcast %cst_42 : f32 to vector<16x32xf32>
    %139 = arith.addf %138, %137 : vector<16x32xf32>
    %140 = arith.divf %138, %139 : vector<16x32xf32>
    %141 = vector.extract_strided_slice %121 {offsets = [0, 64], sizes = [16, 32], strides = [1, 1]} : vector<16x96xf32> to vector<16x32xf32>
    %142 = vector.extract_strided_slice %124 {offsets = [0, 64], sizes = [16, 32], strides = [1, 1]} : vector<16x96xf32> to vector<16x32xf32>
    %143 = arith.mulf %132, %142 : vector<16x32xf32>
    %144 = arith.addf %141, %143 : vector<16x32xf32>
    %145 = math.tanh %144 : vector<16x32xf32>
    %cst_43 = arith.constant 1.000000e+00 : f32
    %146 = vector.broadcast %cst_43 : f32 to vector<16x32xf32>
    %147 = arith.subf %146, %140 : vector<16x32xf32>
    %148 = arith.mulf %147, %145 : vector<16x32xf32>
    %149 = arith.mulf %140, %120 : vector<16x32xf32>
    %150 = arith.addf %148, %149 : vector<16x32xf32>
    %151 = vector.extract_strided_slice %29 {offsets = [64, 0], sizes = [16, 96], strides = [1, 1]} : vector<96x96xf32> to vector<16x96xf32>
    %cst_44 = arith.constant dense<0.000000e+00> : vector<16x96xf32>
    %152 = tpu.matmul %150, %24, %cst_44 {dimension_numbers = #tpu.dot_dimension_numbers<[1], [0], [0], [1], [0, 0, 1, 1], [], []>} : vector<16x32xf32>, vector<32x96xf32>, vector<16x96xf32> -> vector<16x96xf32>
    %153 = vector.broadcast %26 : vector<1x96xf32> to vector<16x96xf32>
    %154 = arith.addf %152, %153 : vector<16x96xf32>
    %155 = vector.extract_strided_slice %151 {offsets = [0, 0], sizes = [16, 32], strides = [1, 1]} : vector<16x96xf32> to vector<16x32xf32>
    %156 = vector.extract_strided_slice %154 {offsets = [0, 0], sizes = [16, 32], strides = [1, 1]} : vector<16x96xf32> to vector<16x32xf32>
    %157 = arith.addf %155, %156 : vector<16x32xf32>
    %158 = arith.negf %157 : vector<16x32xf32>
    %159 = math.exp %158 : vector<16x32xf32>
    %cst_45 = arith.constant 1.000000e+00 : f32
    %160 = vector.broadcast %cst_45 : f32 to vector<16x32xf32>
    %161 = arith.addf %160, %159 : vector<16x32xf32>
    %162 = arith.divf %160, %161 : vector<16x32xf32>
    %163 = vector.extract_strided_slice %151 {offsets = [0, 32], sizes = [16, 32], strides = [1, 1]} : vector<16x96xf32> to vector<16x32xf32>
    %164 = vector.extract_strided_slice %154 {offsets = [0, 32], sizes = [16, 32], strides = [1, 1]} : vector<16x96xf32> to vector<16x32xf32>
    %165 = arith.addf %163, %164 : vector<16x32xf32>
    %166 = arith.negf %165 : vector<16x32xf32>
    %167 = math.exp %166 : vector<16x32xf32>
    %cst_46 = arith.constant 1.000000e+00 : f32
    %168 = vector.broadcast %cst_46 : f32 to vector<16x32xf32>
    %169 = arith.addf %168, %167 : vector<16x32xf32>
    %170 = arith.divf %168, %169 : vector<16x32xf32>
    %171 = vector.extract_strided_slice %151 {offsets = [0, 64], sizes = [16, 32], strides = [1, 1]} : vector<16x96xf32> to vector<16x32xf32>
    %172 = vector.extract_strided_slice %154 {offsets = [0, 64], sizes = [16, 32], strides = [1, 1]} : vector<16x96xf32> to vector<16x32xf32>
    %173 = arith.mulf %162, %172 : vector<16x32xf32>
    %174 = arith.addf %171, %173 : vector<16x32xf32>
    %175 = math.tanh %174 : vector<16x32xf32>
    %cst_47 = arith.constant 1.000000e+00 : f32
    %176 = vector.broadcast %cst_47 : f32 to vector<16x32xf32>
    %177 = arith.subf %176, %170 : vector<16x32xf32>
    %178 = arith.mulf %177, %175 : vector<16x32xf32>
    %179 = arith.mulf %170, %150 : vector<16x32xf32>
    %180 = arith.addf %178, %179 : vector<16x32xf32>
    %181 = vector.extract_strided_slice %29 {offsets = [80, 0], sizes = [16, 96], strides = [1, 1]} : vector<96x96xf32> to vector<16x96xf32>
    %cst_48 = arith.constant dense<0.000000e+00> : vector<16x96xf32>
    %182 = tpu.matmul %180, %24, %cst_48 {dimension_numbers = #tpu.dot_dimension_numbers<[1], [0], [0], [1], [0, 0, 1, 1], [], []>} : vector<16x32xf32>, vector<32x96xf32>, vector<16x96xf32> -> vector<16x96xf32>
    %183 = vector.broadcast %26 : vector<1x96xf32> to vector<16x96xf32>
    %184 = arith.addf %182, %183 : vector<16x96xf32>
    %185 = vector.extract_strided_slice %181 {offsets = [0, 0], sizes = [16, 32], strides = [1, 1]} : vector<16x96xf32> to vector<16x32xf32>
    %186 = vector.extract_strided_slice %184 {offsets = [0, 0], sizes = [16, 32], strides = [1, 1]} : vector<16x96xf32> to vector<16x32xf32>
    %187 = arith.addf %185, %186 : vector<16x32xf32>
    %188 = arith.negf %187 : vector<16x32xf32>
    %189 = math.exp %188 : vector<16x32xf32>
    %cst_49 = arith.constant 1.000000e+00 : f32
    %190 = vector.broadcast %cst_49 : f32 to vector<16x32xf32>
    %191 = arith.addf %190, %189 : vector<16x32xf32>
    %192 = arith.divf %190, %191 : vector<16x32xf32>
    %193 = vector.extract_strided_slice %181 {offsets = [0, 32], sizes = [16, 32], strides = [1, 1]} : vector<16x96xf32> to vector<16x32xf32>
    %194 = vector.extract_strided_slice %184 {offsets = [0, 32], sizes = [16, 32], strides = [1, 1]} : vector<16x96xf32> to vector<16x32xf32>
    %195 = arith.addf %193, %194 : vector<16x32xf32>
    %196 = arith.negf %195 : vector<16x32xf32>
    %197 = math.exp %196 : vector<16x32xf32>
    %cst_50 = arith.constant 1.000000e+00 : f32
    %198 = vector.broadcast %cst_50 : f32 to vector<16x32xf32>
    %199 = arith.addf %198, %197 : vector<16x32xf32>
    %200 = arith.divf %198, %199 : vector<16x32xf32>
    %201 = vector.extract_strided_slice %181 {offsets = [0, 64], sizes = [16, 32], strides = [1, 1]} : vector<16x96xf32> to vector<16x32xf32>
    %202 = vector.extract_strided_slice %184 {offsets = [0, 64], sizes = [16, 32], strides = [1, 1]} : vector<16x96xf32> to vector<16x32xf32>
    %203 = arith.mulf %192, %202 : vector<16x32xf32>
    %204 = arith.addf %201, %203 : vector<16x32xf32>
    %205 = math.tanh %204 : vector<16x32xf32>
    %cst_51 = arith.constant 1.000000e+00 : f32
    %206 = vector.broadcast %cst_51 : f32 to vector<16x32xf32>
    %207 = arith.subf %206, %200 : vector<16x32xf32>
    %208 = arith.mulf %207, %205 : vector<16x32xf32>
    %209 = arith.mulf %200, %180 : vector<16x32xf32>
    %210 = arith.addf %208, %209 : vector<16x32xf32>
    %211 = tpu.concatenate %60, %90, %120, %150, %180, %210 in 0 : vector<16x32xf32>, vector<16x32xf32>, vector<16x32xf32>, vector<16x32xf32>, vector<16x32xf32>, vector<16x32xf32> -> vector<96x32xf32>
    %c0_52 = arith.constant 0 : index
    %c0_53 = arith.constant 0 : index
    %212 = vector.load %arg11[%c0_52, %c0_53] : memref<32x96xf32, #tpu.memory_space<vmem>>, vector<32x96xf32>
    %c0_54 = arith.constant 0 : index
    %c0_55 = arith.constant 0 : index
    %213 = vector.load %arg12[%c0_54, %c0_55] : memref<32x96xf32, #tpu.memory_space<vmem>>, vector<32x96xf32>
    %c0_56 = arith.constant 0 : index
    %c0_57 = arith.constant 0 : index
    %214 = vector.load %arg13[%c0_56, %c0_57] : memref<1x96xf32, #tpu.memory_space<vmem>>, vector<1x96xf32>
    %c0_58 = arith.constant 0 : index
    %c0_59 = arith.constant 0 : index
    %215 = vector.load %arg14[%c0_58, %c0_59] : memref<1x96xf32, #tpu.memory_space<vmem>>, vector<1x96xf32>
    %cst_60 = arith.constant dense<0.000000e+00> : vector<96x96xf32>
    %216 = tpu.matmul %211, %212, %cst_60 {dimension_numbers = #tpu.dot_dimension_numbers<[1], [0], [0], [1], [0, 0, 1, 1], [], []>} : vector<96x32xf32>, vector<32x96xf32>, vector<96x96xf32> -> vector<96x96xf32>
    %217 = vector.broadcast %214 : vector<1x96xf32> to vector<96x96xf32>
    %218 = arith.addf %216, %217 : vector<96x96xf32>
    %cst_61 = arith.constant 0.000000e+00 : f32
    %219 = vector.broadcast %cst_61 : f32 to vector<16x32xf32>
    %220 = vector.extract_strided_slice %218 {offsets = [0, 0], sizes = [16, 96], strides = [1, 1]} : vector<96x96xf32> to vector<16x96xf32>
    %cst_62 = arith.constant dense<0.000000e+00> : vector<16x96xf32>
    %221 = tpu.matmul %219, %213, %cst_62 {dimension_numbers = #tpu.dot_dimension_numbers<[1], [0], [0], [1], [0, 0, 1, 1], [], []>} : vector<16x32xf32>, vector<32x96xf32>, vector<16x96xf32> -> vector<16x96xf32>
    %222 = vector.broadcast %215 : vector<1x96xf32> to vector<16x96xf32>
    %223 = arith.addf %221, %222 : vector<16x96xf32>
    %224 = vector.extract_strided_slice %220 {offsets = [0, 0], sizes = [16, 32], strides = [1, 1]} : vector<16x96xf32> to vector<16x32xf32>
    %225 = vector.extract_strided_slice %223 {offsets = [0, 0], sizes = [16, 32], strides = [1, 1]} : vector<16x96xf32> to vector<16x32xf32>
    %226 = arith.addf %224, %225 : vector<16x32xf32>
    %227 = arith.negf %226 : vector<16x32xf32>
    %228 = math.exp %227 : vector<16x32xf32>
    %cst_63 = arith.constant 1.000000e+00 : f32
    %229 = vector.broadcast %cst_63 : f32 to vector<16x32xf32>
    %230 = arith.addf %229, %228 : vector<16x32xf32>
    %231 = arith.divf %229, %230 : vector<16x32xf32>
    %232 = vector.extract_strided_slice %220 {offsets = [0, 32], sizes = [16, 32], strides = [1, 1]} : vector<16x96xf32> to vector<16x32xf32>
    %233 = vector.extract_strided_slice %223 {offsets = [0, 32], sizes = [16, 32], strides = [1, 1]} : vector<16x96xf32> to vector<16x32xf32>
    %234 = arith.addf %232, %233 : vector<16x32xf32>
    %235 = arith.negf %234 : vector<16x32xf32>
    %236 = math.exp %235 : vector<16x32xf32>
    %cst_64 = arith.constant 1.000000e+00 : f32
    %237 = vector.broadcast %cst_64 : f32 to vector<16x32xf32>
    %238 = arith.addf %237, %236 : vector<16x32xf32>
    %239 = arith.divf %237, %238 : vector<16x32xf32>
    %240 = vector.extract_strided_slice %220 {offsets = [0, 64], sizes = [16, 32], strides = [1, 1]} : vector<16x96xf32> to vector<16x32xf32>
    %241 = vector.extract_strided_slice %223 {offsets = [0, 64], sizes = [16, 32], strides = [1, 1]} : vector<16x96xf32> to vector<16x32xf32>
    %242 = arith.mulf %231, %241 : vector<16x32xf32>
    %243 = arith.addf %240, %242 : vector<16x32xf32>
    %244 = math.tanh %243 : vector<16x32xf32>
    %cst_65 = arith.constant 1.000000e+00 : f32
    %245 = vector.broadcast %cst_65 : f32 to vector<16x32xf32>
    %246 = arith.subf %245, %239 : vector<16x32xf32>
    %247 = arith.mulf %246, %244 : vector<16x32xf32>
    %248 = arith.mulf %239, %219 : vector<16x32xf32>
    %249 = arith.addf %247, %248 : vector<16x32xf32>
    %250 = vector.extract_strided_slice %218 {offsets = [16, 0], sizes = [16, 96], strides = [1, 1]} : vector<96x96xf32> to vector<16x96xf32>
    %cst_66 = arith.constant dense<0.000000e+00> : vector<16x96xf32>
    %251 = tpu.matmul %249, %213, %cst_66 {dimension_numbers = #tpu.dot_dimension_numbers<[1], [0], [0], [1], [0, 0, 1, 1], [], []>} : vector<16x32xf32>, vector<32x96xf32>, vector<16x96xf32> -> vector<16x96xf32>
    %252 = vector.broadcast %215 : vector<1x96xf32> to vector<16x96xf32>
    %253 = arith.addf %251, %252 : vector<16x96xf32>
    %254 = vector.extract_strided_slice %250 {offsets = [0, 0], sizes = [16, 32], strides = [1, 1]} : vector<16x96xf32> to vector<16x32xf32>
    %255 = vector.extract_strided_slice %253 {offsets = [0, 0], sizes = [16, 32], strides = [1, 1]} : vector<16x96xf32> to vector<16x32xf32>
    %256 = arith.addf %254, %255 : vector<16x32xf32>
    %257 = arith.negf %256 : vector<16x32xf32>
    %258 = math.exp %257 : vector<16x32xf32>
    %cst_67 = arith.constant 1.000000e+00 : f32
    %259 = vector.broadcast %cst_67 : f32 to vector<16x32xf32>
    %260 = arith.addf %259, %258 : vector<16x32xf32>
    %261 = arith.divf %259, %260 : vector<16x32xf32>
    %262 = vector.extract_strided_slice %250 {offsets = [0, 32], sizes = [16, 32], strides = [1, 1]} : vector<16x96xf32> to vector<16x32xf32>
    %263 = vector.extract_strided_slice %253 {offsets = [0, 32], sizes = [16, 32], strides = [1, 1]} : vector<16x96xf32> to vector<16x32xf32>
    %264 = arith.addf %262, %263 : vector<16x32xf32>
    %265 = arith.negf %264 : vector<16x32xf32>
    %266 = math.exp %265 : vector<16x32xf32>
    %cst_68 = arith.constant 1.000000e+00 : f32
    %267 = vector.broadcast %cst_68 : f32 to vector<16x32xf32>
    %268 = arith.addf %267, %266 : vector<16x32xf32>
    %269 = arith.divf %267, %268 : vector<16x32xf32>
    %270 = vector.extract_strided_slice %250 {offsets = [0, 64], sizes = [16, 32], strides = [1, 1]} : vector<16x96xf32> to vector<16x32xf32>
    %271 = vector.extract_strided_slice %253 {offsets = [0, 64], sizes = [16, 32], strides = [1, 1]} : vector<16x96xf32> to vector<16x32xf32>
    %272 = arith.mulf %261, %271 : vector<16x32xf32>
    %273 = arith.addf %270, %272 : vector<16x32xf32>
    %274 = math.tanh %273 : vector<16x32xf32>
    %cst_69 = arith.constant 1.000000e+00 : f32
    %275 = vector.broadcast %cst_69 : f32 to vector<16x32xf32>
    %276 = arith.subf %275, %269 : vector<16x32xf32>
    %277 = arith.mulf %276, %274 : vector<16x32xf32>
    %278 = arith.mulf %269, %249 : vector<16x32xf32>
    %279 = arith.addf %277, %278 : vector<16x32xf32>
    %280 = vector.extract_strided_slice %218 {offsets = [32, 0], sizes = [16, 96], strides = [1, 1]} : vector<96x96xf32> to vector<16x96xf32>
    %cst_70 = arith.constant dense<0.000000e+00> : vector<16x96xf32>
    %281 = tpu.matmul %279, %213, %cst_70 {dimension_numbers = #tpu.dot_dimension_numbers<[1], [0], [0], [1], [0, 0, 1, 1], [], []>} : vector<16x32xf32>, vector<32x96xf32>, vector<16x96xf32> -> vector<16x96xf32>
    %282 = vector.broadcast %215 : vector<1x96xf32> to vector<16x96xf32>
    %283 = arith.addf %281, %282 : vector<16x96xf32>
    %284 = vector.extract_strided_slice %280 {offsets = [0, 0], sizes = [16, 32], strides = [1, 1]} : vector<16x96xf32> to vector<16x32xf32>
    %285 = vector.extract_strided_slice %283 {offsets = [0, 0], sizes = [16, 32], strides = [1, 1]} : vector<16x96xf32> to vector<16x32xf32>
    %286 = arith.addf %284, %285 : vector<16x32xf32>
    %287 = arith.negf %286 : vector<16x32xf32>
    %288 = math.exp %287 : vector<16x32xf32>
    %cst_71 = arith.constant 1.000000e+00 : f32
    %289 = vector.broadcast %cst_71 : f32 to vector<16x32xf32>
    %290 = arith.addf %289, %288 : vector<16x32xf32>
    %291 = arith.divf %289, %290 : vector<16x32xf32>
    %292 = vector.extract_strided_slice %280 {offsets = [0, 32], sizes = [16, 32], strides = [1, 1]} : vector<16x96xf32> to vector<16x32xf32>
    %293 = vector.extract_strided_slice %283 {offsets = [0, 32], sizes = [16, 32], strides = [1, 1]} : vector<16x96xf32> to vector<16x32xf32>
    %294 = arith.addf %292, %293 : vector<16x32xf32>
    %295 = arith.negf %294 : vector<16x32xf32>
    %296 = math.exp %295 : vector<16x32xf32>
    %cst_72 = arith.constant 1.000000e+00 : f32
    %297 = vector.broadcast %cst_72 : f32 to vector<16x32xf32>
    %298 = arith.addf %297, %296 : vector<16x32xf32>
    %299 = arith.divf %297, %298 : vector<16x32xf32>
    %300 = vector.extract_strided_slice %280 {offsets = [0, 64], sizes = [16, 32], strides = [1, 1]} : vector<16x96xf32> to vector<16x32xf32>
    %301 = vector.extract_strided_slice %283 {offsets = [0, 64], sizes = [16, 32], strides = [1, 1]} : vector<16x96xf32> to vector<16x32xf32>
    %302 = arith.mulf %291, %301 : vector<16x32xf32>
    %303 = arith.addf %300, %302 : vector<16x32xf32>
    %304 = math.tanh %303 : vector<16x32xf32>
    %cst_73 = arith.constant 1.000000e+00 : f32
    %305 = vector.broadcast %cst_73 : f32 to vector<16x32xf32>
    %306 = arith.subf %305, %299 : vector<16x32xf32>
    %307 = arith.mulf %306, %304 : vector<16x32xf32>
    %308 = arith.mulf %299, %279 : vector<16x32xf32>
    %309 = arith.addf %307, %308 : vector<16x32xf32>
    %310 = vector.extract_strided_slice %218 {offsets = [48, 0], sizes = [16, 96], strides = [1, 1]} : vector<96x96xf32> to vector<16x96xf32>
    %cst_74 = arith.constant dense<0.000000e+00> : vector<16x96xf32>
    %311 = tpu.matmul %309, %213, %cst_74 {dimension_numbers = #tpu.dot_dimension_numbers<[1], [0], [0], [1], [0, 0, 1, 1], [], []>} : vector<16x32xf32>, vector<32x96xf32>, vector<16x96xf32> -> vector<16x96xf32>
    %312 = vector.broadcast %215 : vector<1x96xf32> to vector<16x96xf32>
    %313 = arith.addf %311, %312 : vector<16x96xf32>
    %314 = vector.extract_strided_slice %310 {offsets = [0, 0], sizes = [16, 32], strides = [1, 1]} : vector<16x96xf32> to vector<16x32xf32>
    %315 = vector.extract_strided_slice %313 {offsets = [0, 0], sizes = [16, 32], strides = [1, 1]} : vector<16x96xf32> to vector<16x32xf32>
    %316 = arith.addf %314, %315 : vector<16x32xf32>
    %317 = arith.negf %316 : vector<16x32xf32>
    %318 = math.exp %317 : vector<16x32xf32>
    %cst_75 = arith.constant 1.000000e+00 : f32
    %319 = vector.broadcast %cst_75 : f32 to vector<16x32xf32>
    %320 = arith.addf %319, %318 : vector<16x32xf32>
    %321 = arith.divf %319, %320 : vector<16x32xf32>
    %322 = vector.extract_strided_slice %310 {offsets = [0, 32], sizes = [16, 32], strides = [1, 1]} : vector<16x96xf32> to vector<16x32xf32>
    %323 = vector.extract_strided_slice %313 {offsets = [0, 32], sizes = [16, 32], strides = [1, 1]} : vector<16x96xf32> to vector<16x32xf32>
    %324 = arith.addf %322, %323 : vector<16x32xf32>
    %325 = arith.negf %324 : vector<16x32xf32>
    %326 = math.exp %325 : vector<16x32xf32>
    %cst_76 = arith.constant 1.000000e+00 : f32
    %327 = vector.broadcast %cst_76 : f32 to vector<16x32xf32>
    %328 = arith.addf %327, %326 : vector<16x32xf32>
    %329 = arith.divf %327, %328 : vector<16x32xf32>
    %330 = vector.extract_strided_slice %310 {offsets = [0, 64], sizes = [16, 32], strides = [1, 1]} : vector<16x96xf32> to vector<16x32xf32>
    %331 = vector.extract_strided_slice %313 {offsets = [0, 64], sizes = [16, 32], strides = [1, 1]} : vector<16x96xf32> to vector<16x32xf32>
    %332 = arith.mulf %321, %331 : vector<16x32xf32>
    %333 = arith.addf %330, %332 : vector<16x32xf32>
    %334 = math.tanh %333 : vector<16x32xf32>
    %cst_77 = arith.constant 1.000000e+00 : f32
    %335 = vector.broadcast %cst_77 : f32 to vector<16x32xf32>
    %336 = arith.subf %335, %329 : vector<16x32xf32>
    %337 = arith.mulf %336, %334 : vector<16x32xf32>
    %338 = arith.mulf %329, %309 : vector<16x32xf32>
    %339 = arith.addf %337, %338 : vector<16x32xf32>
    %340 = vector.extract_strided_slice %218 {offsets = [64, 0], sizes = [16, 96], strides = [1, 1]} : vector<96x96xf32> to vector<16x96xf32>
    %cst_78 = arith.constant dense<0.000000e+00> : vector<16x96xf32>
    %341 = tpu.matmul %339, %213, %cst_78 {dimension_numbers = #tpu.dot_dimension_numbers<[1], [0], [0], [1], [0, 0, 1, 1], [], []>} : vector<16x32xf32>, vector<32x96xf32>, vector<16x96xf32> -> vector<16x96xf32>
    %342 = vector.broadcast %215 : vector<1x96xf32> to vector<16x96xf32>
    %343 = arith.addf %341, %342 : vector<16x96xf32>
    %344 = vector.extract_strided_slice %340 {offsets = [0, 0], sizes = [16, 32], strides = [1, 1]} : vector<16x96xf32> to vector<16x32xf32>
    %345 = vector.extract_strided_slice %343 {offsets = [0, 0], sizes = [16, 32], strides = [1, 1]} : vector<16x96xf32> to vector<16x32xf32>
    %346 = arith.addf %344, %345 : vector<16x32xf32>
    %347 = arith.negf %346 : vector<16x32xf32>
    %348 = math.exp %347 : vector<16x32xf32>
    %cst_79 = arith.constant 1.000000e+00 : f32
    %349 = vector.broadcast %cst_79 : f32 to vector<16x32xf32>
    %350 = arith.addf %349, %348 : vector<16x32xf32>
    %351 = arith.divf %349, %350 : vector<16x32xf32>
    %352 = vector.extract_strided_slice %340 {offsets = [0, 32], sizes = [16, 32], strides = [1, 1]} : vector<16x96xf32> to vector<16x32xf32>
    %353 = vector.extract_strided_slice %343 {offsets = [0, 32], sizes = [16, 32], strides = [1, 1]} : vector<16x96xf32> to vector<16x32xf32>
    %354 = arith.addf %352, %353 : vector<16x32xf32>
    %355 = arith.negf %354 : vector<16x32xf32>
    %356 = math.exp %355 : vector<16x32xf32>
    %cst_80 = arith.constant 1.000000e+00 : f32
    %357 = vector.broadcast %cst_80 : f32 to vector<16x32xf32>
    %358 = arith.addf %357, %356 : vector<16x32xf32>
    %359 = arith.divf %357, %358 : vector<16x32xf32>
    %360 = vector.extract_strided_slice %340 {offsets = [0, 64], sizes = [16, 32], strides = [1, 1]} : vector<16x96xf32> to vector<16x32xf32>
    %361 = vector.extract_strided_slice %343 {offsets = [0, 64], sizes = [16, 32], strides = [1, 1]} : vector<16x96xf32> to vector<16x32xf32>
    %362 = arith.mulf %351, %361 : vector<16x32xf32>
    %363 = arith.addf %360, %362 : vector<16x32xf32>
    %364 = math.tanh %363 : vector<16x32xf32>
    %cst_81 = arith.constant 1.000000e+00 : f32
    %365 = vector.broadcast %cst_81 : f32 to vector<16x32xf32>
    %366 = arith.subf %365, %359 : vector<16x32xf32>
    %367 = arith.mulf %366, %364 : vector<16x32xf32>
    %368 = arith.mulf %359, %339 : vector<16x32xf32>
    %369 = arith.addf %367, %368 : vector<16x32xf32>
    %370 = vector.extract_strided_slice %218 {offsets = [80, 0], sizes = [16, 96], strides = [1, 1]} : vector<96x96xf32> to vector<16x96xf32>
    %cst_82 = arith.constant dense<0.000000e+00> : vector<16x96xf32>
    %371 = tpu.matmul %369, %213, %cst_82 {dimension_numbers = #tpu.dot_dimension_numbers<[1], [0], [0], [1], [0, 0, 1, 1], [], []>} : vector<16x32xf32>, vector<32x96xf32>, vector<16x96xf32> -> vector<16x96xf32>
    %372 = vector.broadcast %215 : vector<1x96xf32> to vector<16x96xf32>
    %373 = arith.addf %371, %372 : vector<16x96xf32>
    %374 = vector.extract_strided_slice %370 {offsets = [0, 0], sizes = [16, 32], strides = [1, 1]} : vector<16x96xf32> to vector<16x32xf32>
    %375 = vector.extract_strided_slice %373 {offsets = [0, 0], sizes = [16, 32], strides = [1, 1]} : vector<16x96xf32> to vector<16x32xf32>
    %376 = arith.addf %374, %375 : vector<16x32xf32>
    %377 = arith.negf %376 : vector<16x32xf32>
    %378 = math.exp %377 : vector<16x32xf32>
    %cst_83 = arith.constant 1.000000e+00 : f32
    %379 = vector.broadcast %cst_83 : f32 to vector<16x32xf32>
    %380 = arith.addf %379, %378 : vector<16x32xf32>
    %381 = arith.divf %379, %380 : vector<16x32xf32>
    %382 = vector.extract_strided_slice %370 {offsets = [0, 32], sizes = [16, 32], strides = [1, 1]} : vector<16x96xf32> to vector<16x32xf32>
    %383 = vector.extract_strided_slice %373 {offsets = [0, 32], sizes = [16, 32], strides = [1, 1]} : vector<16x96xf32> to vector<16x32xf32>
    %384 = arith.addf %382, %383 : vector<16x32xf32>
    %385 = arith.negf %384 : vector<16x32xf32>
    %386 = math.exp %385 : vector<16x32xf32>
    %cst_84 = arith.constant 1.000000e+00 : f32
    %387 = vector.broadcast %cst_84 : f32 to vector<16x32xf32>
    %388 = arith.addf %387, %386 : vector<16x32xf32>
    %389 = arith.divf %387, %388 : vector<16x32xf32>
    %390 = vector.extract_strided_slice %370 {offsets = [0, 64], sizes = [16, 32], strides = [1, 1]} : vector<16x96xf32> to vector<16x32xf32>
    %391 = vector.extract_strided_slice %373 {offsets = [0, 64], sizes = [16, 32], strides = [1, 1]} : vector<16x96xf32> to vector<16x32xf32>
    %392 = arith.mulf %381, %391 : vector<16x32xf32>
    %393 = arith.addf %390, %392 : vector<16x32xf32>
    %394 = math.tanh %393 : vector<16x32xf32>
    %cst_85 = arith.constant 1.000000e+00 : f32
    %395 = vector.broadcast %cst_85 : f32 to vector<16x32xf32>
    %396 = arith.subf %395, %389 : vector<16x32xf32>
    %397 = arith.mulf %396, %394 : vector<16x32xf32>
    %398 = arith.mulf %389, %369 : vector<16x32xf32>
    %399 = arith.addf %397, %398 : vector<16x32xf32>
    %400 = tpu.concatenate %249, %279, %309, %339, %369, %399 in 1 : vector<16x32xf32>, vector<16x32xf32>, vector<16x32xf32>, vector<16x32xf32>, vector<16x32xf32>, vector<16x32xf32> -> vector<16x192xf32>
    %c0_86 = arith.constant 0 : index
    %c0_87 = arith.constant 0 : index
    %401 = vector.load %arg15[%c0_86, %c0_87] : memref<16x192xf32, #tpu.memory_space<vmem>>, vector<16x192xf32>
    tpu.vector_store %arg15[%c0_86, %c0_87], %400 {strides = array<i32>} : memref<16x192xf32, #tpu.memory_space<vmem>>, vector<16x192xf32>,
    return
  }
}

</mosaic_0001>

<llo_original>
// kernel: lstmgcn_forward.1
$region0: #{lstmgcn_forward.1}
  #allocation0 [shape = 'u32[]', space=smem, size = 0x4, offset = 0x4, fixed_abs, tag = 'smem constant byte address 0x4 - core index']
  #allocation1 [shape = 'u32[144,128]{1,0:T(1,128)}', space=vmem, size = 0x12000, scoped, tag = 'internal scratch']
  %s0 = inlined_call_operand.vmem [shape: f32[6,16,16], index: 0, kind: input, shape index: {}]
  %s1 = inlined_call_operand.vmem [shape: f32[6,16,8], index: 1, kind: input, shape index: {}]
  %s2 = inlined_call_operand.vmem [shape: f32[16,8], index: 2, kind: input, shape index: {}]
  %s3 = inlined_call_operand.vmem [shape: f32[8,16], index: 3, kind: input, shape index: {}]
  %s4 = inlined_call_operand.vmem [shape: f32[1,16], index: 4, kind: input, shape index: {}]
  %s5 = inlined_call_operand.vmem [shape: f32[16,32], index: 5, kind: input, shape index: {}]
  %s6 = inlined_call_operand.vmem [shape: f32[1,32], index: 6, kind: input, shape index: {}]
  %s7 = inlined_call_operand.vmem [shape: f32[32,96], index: 7, kind: input, shape index: {}]
  %s8 = inlined_call_operand.vmem [shape: f32[32,96], index: 8, kind: input, shape index: {}]
  %s9 = inlined_call_operand.vmem [shape: f32[1,96], index: 9, kind: input, shape index: {}]
  %s10 = inlined_call_operand.vmem [shape: f32[1,96], index: 10, kind: input, shape index: {}]
  %s11 = inlined_call_operand.vmem [shape: f32[32,96], index: 11, kind: input, shape index: {}]
  %s12 = inlined_call_operand.vmem [shape: f32[32,96], index: 12, kind: input, shape index: {}]
  %s13 = inlined_call_operand.vmem [shape: f32[1,96], index: 13, kind: input, shape index: {}]
  %s14 = inlined_call_operand.vmem [shape: f32[1,96], index: 14, kind: input, shape index: {}]
  %s15 = inlined_call_operand.vmem [shape: f32[16,192], index: 15, kind: output, shape index: {}]
  %s16 = sld [smem:[#allocation0]]
  $region70: #{lstmgcn_forward.1} parent=0
    _
  %s18 = ssub.s32 1, %s16
  %s19 = scalar_select 0, %s18, %s16
  // Predicated region
  $region2: #{lstmgcn_forward.1} parent=0 // pred_check
    _
  $region3: #{lstmgcn_forward.1} parent=0 // pred_check_branch
    %21 = sbr.rel (0) target = $region5
  $region4: #{lstmgcn_forward.1} parent=0 // pred_region
    _
  $region5: #{lstmgcn_forward.1} parent=0 // pred_fallthru
    _
  // Predicated region
  $region6: #{lstmgcn_forward.1} parent=0 // pred_check
    _
  $region7: #{lstmgcn_forward.1} parent=0 // pred_check_branch
    %23 = sbr.rel (0) target = $region9
  $region8: #{lstmgcn_forward.1} parent=0 // pred_region
    _
  $region9: #{lstmgcn_forward.1} parent=0 // pred_fallthru
    _
  // Predicated region
  $region10: #{lstmgcn_forward.1} parent=0 // pred_check
    _
  $region11: #{lstmgcn_forward.1} parent=0 // pred_check_branch
    %25 = sbr.rel (0) target = $region13
  $region12: #{lstmgcn_forward.1} parent=0 // pred_region
    _
  $region13: #{lstmgcn_forward.1} parent=0 // pred_fallthru
    _
  // Predicated region
  $region14: #{lstmgcn_forward.1} parent=0 // pred_check
    _
  $region15: #{lstmgcn_forward.1} parent=0 // pred_check_branch
    %27 = sbr.rel (0) target = $region17
  $region16: #{lstmgcn_forward.1} parent=0 // pred_region
    _
  $region17: #{lstmgcn_forward.1} parent=0 // pred_fallthru
    _
  // Predicated region
  $region18: #{lstmgcn_forward.1} parent=0 // pred_check
    _
  $region19: #{lstmgcn_forward.1} parent=0 // pred_check_branch
    %29 = sbr.rel (0) target = $region21
  $region20: #{lstmgcn_forward.1} parent=0 // pred_region
    _
  $region21: #{lstmgcn_forward.1} parent=0 // pred_fallthru
    _
  // Predicated region
  $region22: #{lstmgcn_forward.1} parent=0 // pred_check
    _
  $region23: #{lstmgcn_forward.1} parent=0 // pred_check_branch
    %31 = sbr.rel (0) target = $region25
  $region24: #{lstmgcn_forward.1} parent=0 // pred_region
    _
  $region25: #{lstmgcn_forward.1} parent=0 // pred_fallthru
    _
  // Predicated region
  $region26: #{lstmgcn_forward.1} parent=0 // pred_check
    _
  $region27: #{lstmgcn_forward.1} parent=0 // pred_check_branch
    %33 = sbr.rel (0) target = $region29
  $region28: #{lstmgcn_forward.1} parent=0 // pred_region
    _
  $region29: #{lstmgcn_forward.1} parent=0 // pred_fallthru
    _
  // Predicated region
  $region30: #{lstmgcn_forward.1} parent=0 // pred_check
    _
  $region31: #{lstmgcn_forward.1} parent=0 // pred_check_branch
    %35 = sbr.rel (0) target = $region33
  $region32: #{lstmgcn_forward.1} parent=0 // pred_region
    _
  $region33: #{lstmgcn_forward.1} parent=0 // pred_fallthru
    _
  // Predicated region
  $region34: #{lstmgcn_forward.1} parent=0 // pred_check
    _
  $region35: #{lstmgcn_forward.1} parent=0 // pred_check_branch
    %37 = sbr.rel (0) target = $region37
  $region36: #{lstmgcn_forward.1} parent=0 // pred_region
    _
  $region37: #{lstmgcn_forward.1} parent=0 // pred_fallthru
    _
  // Predicated region
  $region38: #{lstmgcn_forward.1} parent=0 // pred_check
    _
  $region39: #{lstmgcn_forward.1} parent=0 // pred_check_branch
    %39 = sbr.rel (0) target = $region41
  $region40: #{lstmgcn_forward.1} parent=0 // pred_region
    _
  $region41: #{lstmgcn_forward.1} parent=0 // pred_fallthru
    _
  // Predicated region
  $region42: #{lstmgcn_forward.1} parent=0 // pred_check
    _
  $region43: #{lstmgcn_forward.1} parent=0 // pred_check_branch
    %41 = sbr.rel (0) target = $region45
  $region44: #{lstmgcn_forward.1} parent=0 // pred_region
    _
  $region45: #{lstmgcn_forward.1} parent=0 // pred_fallthru
    _
  // Predicated region
  $region46: #{lstmgcn_forward.1} parent=0 // pred_check
    _
  $region47: #{lstmgcn_forward.1} parent=0 // pred_check_branch
    %43 = sbr.rel (0) target = $region49
  $region48: #{lstmgcn_forward.1} parent=0 // pred_region
    _
  $region49: #{lstmgcn_forward.1} parent=0 // pred_fallthru
    _
  // Predicated region
  $region50: #{lstmgcn_forward.1} parent=0 // pred_check
    _
  $region51: #{lstmgcn_forward.1} parent=0 // pred_check_branch
    %45 = sbr.rel (0) target = $region53
  $region52: #{lstmgcn_forward.1} parent=0 // pred_region
    _
  $region53: #{lstmgcn_forward.1} parent=0 // pred_fallthru
    _
  // Predicated region
  $region54: #{lstmgcn_forward.1} parent=0 // pred_check
    _
  $region55: #{lstmgcn_forward.1} parent=0 // pred_check_branch
    %47 = sbr.rel (0) target = $region57
  $region56: #{lstmgcn_forward.1} parent=0 // pred_region
    _
  $region57: #{lstmgcn_forward.1} parent=0 // pred_fallthru
    _
  // Predicated region
  $region58: #{lstmgcn_forward.1} parent=0 // pred_check
    _
  $region59: #{lstmgcn_forward.1} parent=0 // pred_check_branch
    %49 = sbr.rel (0) target = $region61
  $region60: #{lstmgcn_forward.1} parent=0 // pred_region
    _
  $region61: #{lstmgcn_forward.1} parent=0 // pred_fallthru
    _
  %v50 = vld [vmem:[%s0] sm:$0xff]
  %v51 = vld [vmem:[%s0 + $0x8] sm:$0xff]
  %v52 = vld [vmem:[%s0 + $0x10] sm:$0xff]
  %v53 = vld [vmem:[%s0 + $0x18] sm:$0xff]
  %v54 = vld [vmem:[%s0 + $0x20] sm:$0xff]
  %v55 = vld [vmem:[%s0 + $0x28] sm:$0xff]
  %v56 = vld [vmem:[%s0 + $0x30] sm:$0xff]
  %v57 = vld [vmem:[%s0 + $0x38] sm:$0xff]
  %v58 = vld [vmem:[%s0 + $0x40] sm:$0xff]
  %v59 = vld [vmem:[%s0 + $0x48] sm:$0xff]
  %v60 = vld [vmem:[%s0 + $0x50] sm:$0xff]
  %v61 = vld [vmem:[%s0 + $0x58] sm:$0xff]
  %v62 = vld [vmem:[%s1] sm:$0xff]
  %v63 = vld [vmem:[%s1 + $0x8] sm:$0xff]
  %v64 = vld [vmem:[%s1 + $0x10] sm:$0xff]
  %v65 = vld [vmem:[%s1 + $0x18] sm:$0xff]
  %v66 = vld [vmem:[%s1 + $0x20] sm:$0xff]
  %v67 = vld [vmem:[%s1 + $0x28] sm:$0xff]
  %v68 = vld [vmem:[%s1 + $0x30] sm:$0xff]
  %v69 = vld [vmem:[%s1 + $0x38] sm:$0xff]
  %v70 = vld [vmem:[%s1 + $0x40] sm:$0xff]
  %v71 = vld [vmem:[%s1 + $0x48] sm:$0xff]
  %v72 = vld [vmem:[%s1 + $0x50] sm:$0xff]
  %v73 = vld [vmem:[%s1 + $0x58] sm:$0xff]
  %v74 = vld [vmem:[%s2] sm:$0xff]
  %v75 = vld [vmem:[%s2 + $0x8] sm:$0xff]
  %v76 = vmul.f32 %v62, %v74
  %v77 = vmul.f32 %v63, %v75
  %v78 = vmul.f32 %v64, %v74
  %v79 = vmul.f32 %v65, %v75
  %v80 = vmul.f32 %v66, %v74
  %v81 = vmul.f32 %v67, %v75
  %v82 = vmul.f32 %v68, %v74
  %v83 = vmul.f32 %v69, %v75
  %v84 = vmul.f32 %v70, %v74
  %v85 = vmul.f32 %v71, %v75
  %v86 = vmul.f32 %v72, %v74
  %v87 = vmul.f32 %v73, %v75
  %v88 = vld [vmem:[%s3] sm:$0xff]
  %v89 = vld [vmem:[%s4] sm:$0x1]
  %vm90 = vcmask 64512
  %v92 = vsel %vm90, %v76, 0
  %v95 = vsel %vm90, %v77, 0
  %v98 = vsel %vm90, %v78, 0
  %v101 = vsel %vm90, %v79, 0
  %v104 = vsel %vm90, %v80, 0
  %v107 = vsel %vm90, %v81, 0
  %v110 = vsel %vm90, %v82, 0
  %v113 = vsel %vm90, %v83, 0
  %v116 = vsel %vm90, %v84, 0
  %v119 = vsel %vm90, %v85, 0
  %v122 = vsel %vm90, %v86, 0
  %v125 = vsel %vm90, %v87, 0
  %127 = vmatprep.subr.mxu0 0.0
  %128 = vmatpush1.msra.mxu0 %v88
  %129 = vmatprep.subr.mxu0 0.0
  %130 = vmatpush1.msra.mxu0 0.0
  %131 = vmatprep.subr.mxu0 0.0
  %132 = vmatpush1.msra.mxu0 0.0
  %133 = vmatprep.subr.mxu0 0.0
  %134 = vmatpush1.msra.mxu0 0.0
  %135 = vmatprep.subr.mxu0 0.0
  %136 = vmatpush1.msra.mxu0 0.0
  %137 = vmatprep.subr.mxu0 0.0
  %138 = vmatpush1.msra.mxu0 0.0
  %139 = vmatprep.subr.mxu0 0.0
  %140 = vmatpush1.msra.mxu0 0.0
  %141 = vmatprep.subr.mxu0 0.0
  %142 = vmatpush1.msra.mxu0 0.0
  %143 = vmatprep.subr.mxu0 0.0
  %144 = vmatpush1.msra.mxu0 0.0
  %145 = vmatprep.subr.mxu0 0.0
  %146 = vmatpush1.msra.mxu0 0.0
  %147 = vmatprep.subr.mxu0 0.0
  %148 = vmatpush1.msra.mxu0 0.0
  %149 = vmatprep.subr.mxu0 0.0
  %150 = vmatpush1.msra.mxu0 0.0
  %151 = vmatprep.subr.mxu0 0.0
  %152 = vmatpush1.msra.mxu0 0.0
  %153 = vmatprep.subr.mxu0 0.0
  %154 = vmatpush1.msra.mxu0 0.0
  %155 = vmatprep.subr.mxu0 0.0
  %156 = vmatpush1.msra.mxu0 0.0
  %157 = vmatprep.subr.mxu0 0.0
  %158 = vmatpush1.msra.mxu0 0.0
  %159 = vmatprep.subr.mxu0 0.0
  %160 = vmatpush1.msra.mxu0 0.0
  %161 = vmatprep.subr.mxu0 0.0
  %162 = vmatpush1.msra.mxu0 0.0
  %163 = vmatprep.subr.mxu0 0.0
  %164 = vmatpush1.msra.mxu0 0.0
  %165 = vmatprep.subr.mxu0 0.0
  %166 = vmatpush1.msra.mxu0 0.0
  %167 = vmatprep.subr.mxu0 0.0
  %168 = vmatpush1.msra.mxu0 0.0
  %169 = vmatprep.subr.mxu0 0.0
  %170 = vmatpush1.msra.mxu0 0.0
  %171 = vmatprep.subr.mxu0 0.0
  %172 = vmatpush1.msra.mxu0 0.0
  %173 = vmatprep.subr.mxu0 0.0
  %174 = vmatpush1.msra.mxu0 0.0
  %175 = vmatprep.subr.mxu0 0.0
  %176 = vmatpush1.msra.mxu0 0.0
  %177 = vmatprep.subr.mxu0 0.0
  %178 = vmatpush1.msra.mxu0 0.0
  %179 = vmatprep.subr.mxu0 0.0
  %180 = vmatpush1.msra.mxu0 0.0
  %181 = vmatprep.subr.mxu0 0.0
  %182 = vmatpush1.msra.mxu0 0.0
  %183 = vmatprep.subr.mxu0 0.0
  %184 = vmatpush1.msra.mxu0 0.0
  %185 = vmatprep.subr.mxu0 0.0
  %186 = vmatpush1.msra.mxu0 0.0
  %187 = vmatprep.subr.mxu0 0.0
  %188 = vmatpush1.msra.mxu0 0.0
  %189 = vmatprep.subr.mxu0 0.0
  %190 = vmatpush1.msra.mxu0 0.0
  %191 = vmatprep.mubr.f32.mxu0 0.0
  %192 = vmatmul.mubr.f32.gmra.mrb[0].mxu0 %v92
  %v193 = vpop.f32.mrb[0].mxu0
  %v194 = vadd.f32 0.0, %v193
  %v195 = vpop.f32.mrb[0].mxu0
  %196 = vmatprep.mubr.f32.mxu0 0.0
  %197 = vmatmul.mubr.f32.gmra.mrb[0].mxu0 %v95
  %v198 = vpop.f32.mrb[0].mxu0
  %v199 = vadd.f32 0.0, %v198
  %v200 = vpop.f32.mrb[0].mxu0
  %201 = vmatprep.mubr.f32.mxu0 0.0
  %202 = vmatmul.mubr.f32.gmra.mrb[0].mxu0 %v98
  %v203 = vpop.f32.mrb[0].mxu0
  %v204 = vadd.f32 0.0, %v203
  %v205 = vpop.f32.mrb[0].mxu0
  %206 = vmatprep.mubr.f32.mxu0 0.0
  %207 = vmatmul.mubr.f32.gmra.mrb[0].mxu0 %v101
  %v208 = vpop.f32.mrb[0].mxu0
  %v209 = vadd.f32 0.0, %v208
  %v210 = vpop.f32.mrb[0].mxu0
  %211 = vmatprep.mubr.f32.mxu0 0.0
  %212 = vmatmul.mubr.f32.gmra.mrb[0].mxu0 %v104
  %v213 = vpop.f32.mrb[0].mxu0
  %v214 = vadd.f32 0.0, %v213
  %v215 = vpop.f32.mrb[0].mxu0
  %216 = vmatprep.mubr.f32.mxu0 0.0
  %217 = vmatmul.mubr.f32.gmra.mrb[0].mxu0 %v107
  %v218 = vpop.f32.mrb[0].mxu0
  %v219 = vadd.f32 0.0, %v218
  %v220 = vpop.f32.mrb[0].mxu0
  %221 = vmatprep.mubr.f32.mxu0 0.0
  %222 = vmatmul.mubr.f32.gmra.mrb[0].mxu0 %v110
  %v223 = vpop.f32.mrb[0].mxu0
  %v224 = vadd.f32 0.0, %v223
  %v225 = vpop.f32.mrb[0].mxu0
  %226 = vmatprep.mubr.f32.mxu0 0.0
  %227 = vmatmul.mubr.f32.gmra.mrb[0].mxu0 %v113
  %v228 = vpop.f32.mrb[0].mxu0
  %v229 = vadd.f32 0.0, %v228
  %v230 = vpop.f32.mrb[0].mxu0
  %231 = vmatprep.mubr.f32.mxu0 0.0
  %232 = vmatmul.mubr.f32.gmra.mrb[0].mxu0 %v116
  %v233 = vpop.f32.mrb[0].mxu0
  %v234 = vadd.f32 0.0, %v233
  %v235 = vpop.f32.mrb[0].mxu0
  %236 = vmatprep.mubr.f32.mxu0 0.0
  %237 = vmatmul.mubr.f32.gmra.mrb[0].mxu0 %v119
  %v238 = vpop.f32.mrb[0].mxu0
  %v239 = vadd.f32 0.0, %v238
  %v240 = vpop.f32.mrb[0].mxu0
  %241 = vmatprep.mubr.f32.mxu0 0.0
  %242 = vmatmul.mubr.f32.gmra.mrb[0].mxu0 %v122
  %v243 = vpop.f32.mrb[0].mxu0
  %v244 = vadd.f32 0.0, %v243
  %v245 = vpop.f32.mrb[0].mxu0
  %246 = vmatprep.mubr.f32.mxu0 0.0
  %247 = vmatmul.mubr.f32.gmra.mrb[0].mxu0 %v125
  %v248 = vpop.f32.mrb[0].mxu0
  %v249 = vadd.f32 0.0, %v248
  %v250 = vpop.f32.mrb[0].mxu0
  %251 = vdwg.mxu0
  %vm252 = vcmask 130048
  %v254 = vsel %vm252, %v50, 0
  %v257 = vsel %vm252, %v51, 0
  %259 = vmatprep.subr.mxu0 0.0
  %260 = vmatpush1.msra.mxu0 %v194
  %261 = vmatprep.subr.mxu0 0.0
  %262 = vmatpush1.msra.mxu0 %v199
  %263 = vmatprep.subr.mxu0 0.0
  %264 = vmatpush1.msra.mxu0 0.0
  %265 = vmatprep.subr.mxu0 0.0
  %266 = vmatpush1.msra.mxu0 0.0
  %267 = vmatprep.subr.mxu0 0.0
  %268 = vmatpush1.msra.mxu0 0.0
  %269 = vmatprep.subr.mxu0 0.0
  %270 = vmatpush1.msra.mxu0 0.0
  %271 = vmatprep.subr.mxu0 0.0
  %272 = vmatpush1.msra.mxu0 0.0
  %273 = vmatprep.subr.mxu0 0.0
  %274 = vmatpush1.msra.mxu0 0.0
  %275 = vmatprep.subr.mxu0 0.0
  %276 = vmatpush1.msra.mxu0 0.0
  %277 = vmatprep.subr.mxu0 0.0
  %278 = vmatpush1.msra.mxu0 0.0
  %279 = vmatprep.subr.mxu0 0.0
  %280 = vmatpush1.msra.mxu0 0.0
  %281 = vmatprep.subr.mxu0 0.0
  %282 = vmatpush1.msra.mxu0 0.0
  %283 = vmatprep.subr.mxu0 0.0
  %284 = vmatpush1.msra.mxu0 0.0
  %285 = vmatprep.subr.mxu0 0.0
  %286 = vmatpush1.msra.mxu0 0.0
  %287 = vmatprep.subr.mxu0 0.0
  %288 = vmatpush1.msra.mxu0 0.0
  %289 = vmatprep.subr.mxu0 0.0
  %290 = vmatpush1.msra.mxu0 0.0
  %291 = vmatprep.subr.mxu0 0.0
  %292 = vmatpush1.msra.mxu0 0.0
  %293 = vmatprep.subr.mxu0 0.0
  %294 = vmatpush1.msra.mxu0 0.0
  %295 = vmatprep.subr.mxu0 0.0
  %296 = vmatpush1.msra.mxu0 0.0
  %297 = vmatprep.subr.mxu0 0.0
  %298 = vmatpush1.msra.mxu0 0.0
  %299 = vmatprep.subr.mxu0 0.0
  %300 = vmatpush1.msra.mxu0 0.0
  %301 = vmatprep.subr.mxu0 0.0
  %302 = vmatpush1.msra.mxu0 0.0
  %303 = vmatprep.subr.mxu0 0.0
  %304 = vmatpush1.msra.mxu0 0.0
  %305 = vmatprep.subr.mxu0 0.0
  %306 = vmatpush1.msra.mxu0 0.0
  %307 = vmatprep.subr.mxu0 0.0
  %308 = vmatpush1.msra.mxu0 0.0
  %309 = vmatprep.subr.mxu0 0.0
  %310 = vmatpush1.msra.mxu0 0.0
  %311 = vmatprep.subr.mxu0 0.0
  %312 = vmatpush1.msra.mxu0 0.0
  %313 = vmatprep.subr.mxu0 0.0
  %314 = vmatpush1.msra.mxu0 0.0
  %315 = vmatprep.subr.mxu0 0.0
  %316 = vmatpush1.msra.mxu0 0.0
  %317 = vmatprep.subr.mxu0 0.0
  %318 = vmatpush1.msra.mxu0 0.0
  %319 = vmatprep.subr.mxu0 0.0
  %320 = vmatpush1.msra.mxu0 0.0
  %321 = vmatprep.subr.mxu0 0.0
  %322 = vmatpush1.msra.mxu0 0.0
  %323 = vmatprep.mubr.f32.mxu0 0.0
  %324 = vmatmul.mubr.f32.gmra.mrb[0].mxu0 %v254
  %v325 = vpop.f32.mrb[0].mxu0
  %v326 = vadd.f32 0.0, %v325
  %v327 = vpop.f32.mrb[0].mxu0
  %328 = vmatprep.mubr.f32.mxu0 0.0
  %329 = vmatmul.mubr.f32.gmra.mrb[0].mxu0 %v257
  %v330 = vpop.f32.mrb[0].mxu0
  %v331 = vadd.f32 0.0, %v330
  %v332 = vpop.f32.mrb[0].mxu0
  %333 = vdwg.mxu0
  %v335 = vsel %vm252, %v52, 0
  %v338 = vsel %vm252, %v53, 0
  %340 = vmatprep.subr.mxu0 0.0
  %341 = vmatpush1.msra.mxu0 %v204
  %342 = vmatprep.subr.mxu0 0.0
  %343 = vmatpush1.msra.mxu0 %v209
  %344 = vmatprep.subr.mxu0 0.0
  %345 = vmatpush1.msra.mxu0 0.0
  %346 = vmatprep.subr.mxu0 0.0
  %347 = vmatpush1.msra.mxu0 0.0
  %348 = vmatprep.subr.mxu0 0.0
  %349 = vmatpush1.msra.mxu0 0.0
  %350 = vmatprep.subr.mxu0 0.0
  %351 = vmatpush1.msra.mxu0 0.0
  %352 = vmatprep.subr.mxu0 0.0
  %353 = vmatpush1.msra.mxu0 0.0
  %354 = vmatprep.subr.mxu0 0.0
  %355 = vmatpush1.msra.mxu0 0.0
  %356 = vmatprep.subr.mxu0 0.0
  %357 = vmatpush1.msra.mxu0 0.0
  %358 = vmatprep.subr.mxu0 0.0
  %359 = vmatpush1.msra.mxu0 0.0
  %360 = vmatprep.subr.mxu0 0.0
  %361 = vmatpush1.msra.mxu0 0.0
  %362 = vmatprep.subr.mxu0 0.0
  %363 = vmatpush1.msra.mxu0 0.0
  %364 = vmatprep.subr.mxu0 0.0
  %365 = vmatpush1.msra.mxu0 0.0
  %366 = vmatprep.subr.mxu0 0.0
  %367 = vmatpush1.msra.mxu0 0.0
  %368 = vmatprep.subr.mxu0 0.0
  %369 = vmatpush1.msra.mxu0 0.0
  %370 = vmatprep.subr.mxu0 0.0
  %371 = vmatpush1.msra.mxu0 0.0
  %372 = vmatprep.subr.mxu0 0.0
  %373 = vmatpush1.msra.mxu0 0.0
  %374 = vmatprep.subr.mxu0 0.0
  %375 = vmatpush1.msra.mxu0 0.0
  %376 = vmatprep.subr.mxu0 0.0
  %377 = vmatpush1.msra.mxu0 0.0
  %378 = vmatprep.subr.mxu0 0.0
  %379 = vmatpush1.msra.mxu0 0.0
  %380 = vmatprep.subr.mxu0 0.0
  %381 = vmatpush1.msra.mxu0 0.0
  %382 = vmatprep.subr.mxu0 0.0
  %383 = vmatpush1.msra.mxu0 0.0
  %384 = vmatprep.subr.mxu0 0.0
  %385 = vmatpush1.msra.mxu0 0.0
  %386 = vmatprep.subr.mxu0 0.0
  %387 = vmatpush1.msra.mxu0 0.0
  %388 = vmatprep.subr.mxu0 0.0
  %389 = vmatpush1.msra.mxu0 0.0
  %390 = vmatprep.subr.mxu0 0.0
  %391 = vmatpush1.msra.mxu0 0.0
  %392 = vmatprep.subr.mxu0 0.0
  %393 = vmatpush1.msra.mxu0 0.0
  %394 = vmatprep.subr.mxu0 0.0
  %395 = vmatpush1.msra.mxu0 0.0
  %396 = vmatprep.subr.mxu0 0.0
  %397 = vmatpush1.msra.mxu0 0.0
  %398 = vmatprep.subr.mxu0 0.0
  %399 = vmatpush1.msra.mxu0 0.0
  %400 = vmatprep.subr.mxu0 0.0
  %401 = vmatpush1.msra.mxu0 0.0
  %402 = vmatprep.subr.mxu0 0.0
  %403 = vmatpush1.msra.mxu0 0.0
  %404 = vmatprep.mubr.f32.mxu0 0.0
  %405 = vmatmul.mubr.f32.gmra.mrb[0].mxu0 %v335
  %v406 = vpop.f32.mrb[0].mxu0
  %v407 = vadd.f32 0.0, %v406
  %v408 = vpop.f32.mrb[0].mxu0
  %409 = vmatprep.mubr.f32.mxu0 0.0
  %410 = vmatmul.mubr.f32.gmra.mrb[0].mxu0 %v338
  %v411 = vpop.f32.mrb[0].mxu0
  %v412 = vadd.f32 0.0, %v411
  %v413 = vpop.f32.mrb[0].mxu0
  %414 = vdwg.mxu0
  %v416 = vsel %vm252, %v54, 0
  %v419 = vsel %vm252, %v55, 0
  %421 = vmatprep.subr.mxu0 0.0
  %422 = vmatpush1.msra.mxu0 %v214
  %423 = vmatprep.subr.mxu0 0.0
  %424 = vmatpush1.msra.mxu0 %v219
  %425 = vmatprep.subr.mxu0 0.0
  %426 = vmatpush1.msra.mxu0 0.0
  %427 = vmatprep.subr.mxu0 0.0
  %428 = vmatpush1.msra.mxu0 0.0
  %429 = vmatprep.subr.mxu0 0.0
  %430 = vmatpush1.msra.mxu0 0.0
  %431 = vmatprep.subr.mxu0 0.0
  %432 = vmatpush1.msra.mxu0 0.0
  %433 = vmatprep.subr.mxu0 0.0
  %434 = vmatpush1.msra.mxu0 0.0
  %435 = vmatprep.subr.mxu0 0.0
  %436 = vmatpush1.msra.mxu0 0.0
  %437 = vmatprep.subr.mxu0 0.0
  %438 = vmatpush1.msra.mxu0 0.0
  %439 = vmatprep.subr.mxu0 0.0
  %440 = vmatpush1.msra.mxu0 0.0
  %441 = vmatprep.subr.mxu0 0.0
  %442 = vmatpush1.msra.mxu0 0.0
  %443 = vmatprep.subr.mxu0 0.0
  %444 = vmatpush1.msra.mxu0 0.0
  %445 = vmatprep.subr.mxu0 0.0
  %446 = vmatpush1.msra.mxu0 0.0
  %447 = vmatprep.subr.mxu0 0.0
  %448 = vmatpush1.msra.mxu0 0.0
  %449 = vmatprep.subr.mxu0 0.0
  %450 = vmatpush1.msra.mxu0 0.0
  %451 = vmatprep.subr.mxu0 0.0
  %452 = vmatpush1.msra.mxu0 0.0
  %453 = vmatprep.subr.mxu0 0.0
  %454 = vmatpush1.msra.mxu0 0.0
  %455 = vmatprep.subr.mxu0 0.0
  %456 = vmatpush1.msra.mxu0 0.0
  %457 = vmatprep.subr.mxu0 0.0
  %458 = vmatpush1.msra.mxu0 0.0
  %459 = vmatprep.subr.mxu0 0.0
  %460 = vmatpush1.msra.mxu0 0.0
  %461 = vmatprep.subr.mxu0 0.0
  %462 = vmatpush1.msra.mxu0 0.0
  %463 = vmatprep.subr.mxu0 0.0
  %464 = vmatpush1.msra.mxu0 0.0
  %465 = vmatprep.subr.mxu0 0.0
  %466 = vmatpush1.msra.mxu0 0.0
  %467 = vmatprep.subr.mxu0 0.0
  %468 = vmatpush1.msra.mxu0 0.0
  %469 = vmatprep.subr.mxu0 0.0
  %470 = vmatpush1.msra.mxu0 0.0
  %471 = vmatprep.subr.mxu0 0.0
  %472 = vmatpush1.msra.mxu0 0.0
  %473 = vmatprep.subr.mxu0 0.0
  %474 = vmatpush1.msra.mxu0 0.0
  %475 = vmatprep.subr.mxu0 0.0
  %476 = vmatpush1.msra.mxu0 0.0
  %477 = vmatprep.subr.mxu0 0.0
  %478 = vmatpush1.msra.mxu0 0.0
  %479 = vmatprep.subr.mxu0 0.0
  %480 = vmatpush1.msra.mxu0 0.0
  %481 = vmatprep.subr.mxu0 0.0
  %482 = vmatpush1.msra.mxu0 0.0
  %483 = vmatprep.subr.mxu0 0.0
  %484 = vmatpush1.msra.mxu0 0.0
  %485 = vmatprep.mubr.f32.mxu0 0.0
  %486 = vmatmul.mubr.f32.gmra.mrb[0].mxu0 %v416
  %v487 = vpop.f32.mrb[0].mxu0
  %v488 = vadd.f32 0.0, %v487
  %v489 = vpop.f32.mrb[0].mxu0
  %490 = vmatprep.mubr.f32.mxu0 0.0
  %491 = vmatmul.mubr.f32.gmra.mrb[0].mxu0 %v419
  %v492 = vpop.f32.mrb[0].mxu0
  %v493 = vadd.f32 0.0, %v492
  %v494 = vpop.f32.mrb[0].mxu0
  %495 = vdwg.mxu0
  %v497 = vsel %vm252, %v56, 0
  %v500 = vsel %vm252, %v57, 0
  %502 = vmatprep.subr.mxu0 0.0
  %503 = vmatpush1.msra.mxu0 %v224
  %504 = vmatprep.subr.mxu0 0.0
  %505 = vmatpush1.msra.mxu0 %v229
  %506 = vmatprep.subr.mxu0 0.0
  %507 = vmatpush1.msra.mxu0 0.0
  %508 = vmatprep.subr.mxu0 0.0
  %509 = vmatpush1.msra.mxu0 0.0
  %510 = vmatprep.subr.mxu0 0.0
  %511 = vmatpush1.msra.mxu0 0.0
  %512 = vmatprep.subr.mxu0 0.0
  %513 = vmatpush1.msra.mxu0 0.0
  %514 = vmatprep.subr.mxu0 0.0
  %515 = vmatpush1.msra.mxu0 0.0
  %516 = vmatprep.subr.mxu0 0.0
  %517 = vmatpush1.msra.mxu0 0.0
  %518 = vmatprep.subr.mxu0 0.0
  %519 = vmatpush1.msra.mxu0 0.0
  %520 = vmatprep.subr.mxu0 0.0
  %521 = vmatpush1.msra.mxu0 0.0
  %522 = vmatprep.subr.mxu0 0.0
  %523 = vmatpush1.msra.mxu0 0.0
  %524 = vmatprep.subr.mxu0 0.0
  %525 = vmatpush1.msra.mxu0 0.0
  %526 = vmatprep.subr.mxu0 0.0
  %527 = vmatpush1.msra.mxu0 0.0
  %528 = vmatprep.subr.mxu0 0.0
  %529 = vmatpush1.msra.mxu0 0.0
  %530 = vmatprep.subr.mxu0 0.0
  %531 = vmatpush1.msra.mxu0 0.0
  %532 = vmatprep.subr.mxu0 0.0
  %533 = vmatpush1.msra.mxu0 0.0
  %534 = vmatprep.subr.mxu0 0.0
  %535 = vmatpush1.msra.mxu0 0.0
  %536 = vmatprep.subr.mxu0 0.0
  %537 = vmatpush1.msra.mxu0 0.0
  %538 = vmatprep.subr.mxu0 0.0
  %539 = vmatpush1.msra.mxu0 0.0
  %540 = vmatprep.subr.mxu0 0.0
  %541 = vmatpush1.msra.mxu0 0.0
  %542 = vmatprep.subr.mxu0 0.0
  %543 = vmatpush1.msra.mxu0 0.0
  %544 = vmatprep.subr.mxu0 0.0
  %545 = vmatpush1.msra.mxu0 0.0
  %546 = vmatprep.subr.mxu0 0.0
  %547 = vmatpush1.msra.mxu0 0.0
  %548 = vmatprep.subr.mxu0 0.0
  %549 = vmatpush1.msra.mxu0 0.0
  %550 = vmatprep.subr.mxu0 0.0
  %551 = vmatpush1.msra.mxu0 0.0
  %552 = vmatprep.subr.mxu0 0.0
  %553 = vmatpush1.msra.mxu0 0.0
  %554 = vmatprep.subr.mxu0 0.0
  %555 = vmatpush1.msra.mxu0 0.0
  %556 = vmatprep.subr.mxu0 0.0
  %557 = vmatpush1.msra.mxu0 0.0
  %558 = vmatprep.subr.mxu0 0.0
  %559 = vmatpush1.msra.mxu0 0.0
  %560 = vmatprep.subr.mxu0 0.0
  %561 = vmatpush1.msra.mxu0 0.0
  %562 = vmatprep.subr.mxu0 0.0
  %563 = vmatpush1.msra.mxu0 0.0
  %564 = vmatprep.subr.mxu0 0.0
  %565 = vmatpush1.msra.mxu0 0.0
  %566 = vmatprep.mubr.f32.mxu0 0.0
  %567 = vmatmul.mubr.f32.gmra.mrb[0].mxu0 %v497
  %v568 = vpop.f32.mrb[0].mxu0
  %v569 = vadd.f32 0.0, %v568
  %v570 = vpop.f32.mrb[0].mxu0
  %571 = vmatprep.mubr.f32.mxu0 0.0
  %572 = vmatmul.mubr.f32.gmra.mrb[0].mxu0 %v500
  %v573 = vpop.f32.mrb[0].mxu0
  %v574 = vadd.f32 0.0, %v573
  %v575 = vpop.f32.mrb[0].mxu0
  %576 = vdwg.mxu0
  %v578 = vsel %vm252, %v58, 0
  %v581 = vsel %vm252, %v59, 0
  %583 = vmatprep.subr.mxu0 0.0
  %584 = vmatpush1.msra.mxu0 %v234
  %585 = vmatprep.subr.mxu0 0.0
  %586 = vmatpush1.msra.mxu0 %v239
  %587 = vmatprep.subr.mxu0 0.0
  %588 = vmatpush1.msra.mxu0 0.0
  %589 = vmatprep.subr.mxu0 0.0
  %590 = vmatpush1.msra.mxu0 0.0
  %591 = vmatprep.subr.mxu0 0.0
  %592 = vmatpush1.msra.mxu0 0.0
  %593 = vmatprep.subr.mxu0 0.0
  %594 = vmatpush1.msra.mxu0 0.0
  %595 = vmatprep.subr.mxu0 0.0
  %596 = vmatpush1.msra.mxu0 0.0
  %597 = vmatprep.subr.mxu0 0.0
  %598 = vmatpush1.msra.mxu0 0.0
  %599 = vmatprep.subr.mxu0 0.0
  %600 = vmatpush1.msra.mxu0 0.0
  %601 = vmatprep.subr.mxu0 0.0
  %602 = vmatpush1.msra.mxu0 0.0
  %603 = vmatprep.subr.mxu0 0.0
  %604 = vmatpush1.msra.mxu0 0.0
  %605 = vmatprep.subr.mxu0 0.0
  %606 = vmatpush1.msra.mxu0 0.0
  %607 = vmatprep.subr.mxu0 0.0
  %608 = vmatpush1.msra.mxu0 0.0
  %609 = vmatprep.subr.mxu0 0.0
  %610 = vmatpush1.msra.mxu0 0.0
  %611 = vmatprep.subr.mxu0 0.0
  %612 = vmatpush1.msra.mxu0 0.0
  %613 = vmatprep.subr.mxu0 0.0
  %614 = vmatpush1.msra.mxu0 0.0
  %615 = vmatprep.subr.mxu0 0.0
  %616 = vmatpush1.msra.mxu0 0.0
  %617 = vmatprep.subr.mxu0 0.0
  %618 = vmatpush1.msra.mxu0 0.0
  %619 = vmatprep.subr.mxu0 0.0
  %620 = vmatpush1.msra.mxu0 0.0
  %621 = vmatprep.subr.mxu0 0.0
  %622 = vmatpush1.msra.mxu0 0.0
  %623 = vmatprep.subr.mxu0 0.0
  %624 = vmatpush1.msra.mxu0 0.0
  %625 = vmatprep.subr.mxu0 0.0
  %626 = vmatpush1.msra.mxu0 0.0
  %627 = vmatprep.subr.mxu0 0.0
  %628 = vmatpush1.msra.mxu0 0.0
  %629 = vmatprep.subr.mxu0 0.0
  %630 = vmatpush1.msra.mxu0 0.0
  %631 = vmatprep.subr.mxu0 0.0
  %632 = vmatpush1.msra.mxu0 0.0
  %633 = vmatprep.subr.mxu0 0.0
  %634 = vmatpush1.msra.mxu0 0.0
  %635 = vmatprep.subr.mxu0 0.0
  %636 = vmatpush1.msra.mxu0 0.0
  %637 = vmatprep.subr.mxu0 0.0
  %638 = vmatpush1.msra.mxu0 0.0
  %639 = vmatprep.subr.mxu0 0.0
  %640 = vmatpush1.msra.mxu0 0.0
  %641 = vmatprep.subr.mxu0 0.0
  %642 = vmatpush1.msra.mxu0 0.0
  %643 = vmatprep.subr.mxu0 0.0
  %644 = vmatpush1.msra.mxu0 0.0
  %645 = vmatprep.subr.mxu0 0.0
  %646 = vmatpush1.msra.mxu0 0.0
  %647 = vmatprep.mubr.f32.mxu0 0.0
  %648 = vmatmul.mubr.f32.gmra.mrb[0].mxu0 %v578
  %v649 = vpop.f32.mrb[0].mxu0
  %v650 = vadd.f32 0.0, %v649
  %v651 = vpop.f32.mrb[0].mxu0
  %652 = vmatprep.mubr.f32.mxu0 0.0
  %653 = vmatmul.mubr.f32.gmra.mrb[0].mxu0 %v581
  %v654 = vpop.f32.mrb[0].mxu0
  %v655 = vadd.f32 0.0, %v654
  %v656 = vpop.f32.mrb[0].mxu0
  %657 = vdwg.mxu0
  %v659 = vsel %vm252, %v60, 0
  %v662 = vsel %vm252, %v61, 0
  %664 = vmatprep.subr.mxu0 0.0
  %665 = vmatpush1.msra.mxu0 %v244
  %666 = vmatprep.subr.mxu0 0.0
  %667 = vmatpush1.msra.mxu0 %v249
  %668 = vmatprep.subr.mxu0 0.0
  %669 = vmatpush1.msra.mxu0 0.0
  %670 = vmatprep.subr.mxu0 0.0
  %671 = vmatpush1.msra.mxu0 0.0
  %672 = vmatprep.subr.mxu0 0.0
  %673 = vmatpush1.msra.mxu0 0.0
  %674 = vmatprep.subr.mxu0 0.0
  %675 = vmatpush1.msra.mxu0 0.0
  %676 = vmatprep.subr.mxu0 0.0
  %677 = vmatpush1.msra.mxu0 0.0
  %678 = vmatprep.subr.mxu0 0.0
  %679 = vmatpush1.msra.mxu0 0.0
  %680 = vmatprep.subr.mxu0 0.0
  %681 = vmatpush1.msra.mxu0 0.0
  %682 = vmatprep.subr.mxu0 0.0
  %683 = vmatpush1.msra.mxu0 0.0
  %684 = vmatprep.subr.mxu0 0.0
  %685 = vmatpush1.msra.mxu0 0.0
  %686 = vmatprep.subr.mxu0 0.0
  %687 = vmatpush1.msra.mxu0 0.0
  %688 = vmatprep.subr.mxu0 0.0
  %689 = vmatpush1.msra.mxu0 0.0
  %690 = vmatprep.subr.mxu0 0.0
  %691 = vmatpush1.msra.mxu0 0.0
  %692 = vmatprep.subr.mxu0 0.0
  %693 = vmatpush1.msra.mxu0 0.0
  %694 = vmatprep.subr.mxu0 0.0
  %695 = vmatpush1.msra.mxu0 0.0
  %696 = vmatprep.subr.mxu0 0.0
  %697 = vmatpush1.msra.mxu0 0.0
  %698 = vmatprep.subr.mxu0 0.0
  %699 = vmatpush1.msra.mxu0 0.0
  %700 = vmatprep.subr.mxu0 0.0
  %701 = vmatpush1.msra.mxu0 0.0
  %702 = vmatprep.subr.mxu0 0.0
  %703 = vmatpush1.msra.mxu0 0.0
  %704 = vmatprep.subr.mxu0 0.0
  %705 = vmatpush1.msra.mxu0 0.0
  %706 = vmatprep.subr.mxu0 0.0
  %707 = vmatpush1.msra.mxu0 0.0
  %708 = vmatprep.subr.mxu0 0.0
  %709 = vmatpush1.msra.mxu0 0.0
  %710 = vmatprep.subr.mxu0 0.0
  %711 = vmatpush1.msra.mxu0 0.0
  %712 = vmatprep.subr.mxu0 0.0
  %713 = vmatpush1.msra.mxu0 0.0
  %714 = vmatprep.subr.mxu0 0.0
  %715 = vmatpush1.msra.mxu0 0.0
  %716 = vmatprep.subr.mxu0 0.0
  %717 = vmatpush1.msra.mxu0 0.0
  %718 = vmatprep.subr.mxu0 0.0
  %719 = vmatpush1.msra.mxu0 0.0
  %720 = vmatprep.subr.mxu0 0.0
  %721 = vmatpush1.msra.mxu0 0.0
  %722 = vmatprep.subr.mxu0 0.0
  %723 = vmatpush1.msra.mxu0 0.0
  %724 = vmatprep.subr.mxu0 0.0
  %725 = vmatpush1.msra.mxu0 0.0
  %726 = vmatprep.subr.mxu0 0.0
  %727 = vmatpush1.msra.mxu0 0.0
  %728 = vmatprep.mubr.f32.mxu0 0.0
  %729 = vmatmul.mubr.f32.gmra.mrb[0].mxu0 %v659
  %v730 = vpop.f32.mrb[0].mxu0
  %v731 = vadd.f32 0.0, %v730
  %v732 = vpop.f32.mrb[0].mxu0
  %733 = vmatprep.mubr.f32.mxu0 0.0
  %734 = vmatmul.mubr.f32.gmra.mrb[0].mxu0 %v662
  %v735 = vpop.f32.mrb[0].mxu0
  %v736 = vadd.f32 0.0, %v735
  %v737 = vpop.f32.mrb[0].mxu0
  %738 = vdwg.mxu0
  %v740 = vlaneseq
  %v741 = vshrl.u32 %v740, 7
  %v742 = vsub.s32 0, %v741
  %v743 = vrot.slane %v89, %v742
  %v745 = vadd.f32 %v326, %v743
  %v746 = vadd.f32 %v331, %v743
  %v747 = vadd.f32 %v407, %v743
  %v748 = vadd.f32 %v412, %v743
  %v749 = vadd.f32 %v488, %v743
  %v750 = vadd.f32 %v493, %v743
  %v751 = vadd.f32 %v569, %v743
  %v752 = vadd.f32 %v574, %v743
  %v753 = vadd.f32 %v650, %v743
  %v754 = vadd.f32 %v655, %v743
  %v755 = vadd.f32 %v731, %v743
  %v756 = vadd.f32 %v736, %v743
  %v757 = vld [vmem:[%s5] sm:$0xff]
  %v758 = vld [vmem:[%s5 + $0x8] sm:$0xff]
  %v759 = vld [vmem:[%s6] sm:$0x1]
  %v761 = vsel %vm252, %v745, 0
  %v764 = vsel %vm252, %v746, 0
  %v767 = vsel %vm252, %v747, 0
  %v770 = vsel %vm252, %v748, 0
  %v773 = vsel %vm252, %v749, 0
  %v776 = vsel %vm252, %v750, 0
  %v779 = vsel %vm252, %v751, 0
  %v782 = vsel %vm252, %v752, 0
  %v785 = vsel %vm252, %v753, 0
  %v788 = vsel %vm252, %v754, 0
  %v791 = vsel %vm252, %v755, 0
  %v794 = vsel %vm252, %v756, 0
  %796 = vmatprep.subr.mxu0 0.0
  %797 = vmatpush1.msra.mxu0 %v757
  %798 = vmatprep.subr.mxu0 0.0
  %799 = vmatpush1.msra.mxu0 %v758
  %800 = vmatprep.subr.mxu0 0.0
  %801 = vmatpush1.msra.mxu0 0.0
  %802 = vmatprep.subr.mxu0 0.0
  %803 = vmatpush1.msra.mxu0 0.0
  %804 = vmatprep.subr.mxu0 0.0
  %805 = vmatpush1.msra.mxu0 0.0
  %806 = vmatprep.subr.mxu0 0.0
  %807 = vmatpush1.msra.mxu0 0.0
  %808 = vmatprep.subr.mxu0 0.0
  %809 = vmatpush1.msra.mxu0 0.0
  %810 = vmatprep.subr.mxu0 0.0
  %811 = vmatpush1.msra.mxu0 0.0
  %812 = vmatprep.subr.mxu0 0.0
  %813 = vmatpush1.msra.mxu0 0.0
  %814 = vmatprep.subr.mxu0 0.0
  %815 = vmatpush1.msra.mxu0 0.0
  %816 = vmatprep.subr.mxu0 0.0
  %817 = vmatpush1.msra.mxu0 0.0
  %818 = vmatprep.subr.mxu0 0.0
  %819 = vmatpush1.msra.mxu0 0.0
  %820 = vmatprep.subr.mxu0 0.0
  %821 = vmatpush1.msra.mxu0 0.0
  %822 = vmatprep.subr.mxu0 0.0
  %823 = vmatpush1.msra.mxu0 0.0
  %824 = vmatprep.subr.mxu0 0.0
  %825 = vmatpush1.msra.mxu0 0.0
  %826 = vmatprep.subr.mxu0 0.0
  %827 = vmatpush1.msra.mxu0 0.0
  %828 = vmatprep.subr.mxu0 0.0
  %829 = vmatpush1.msra.mxu0 0.0
  %830 = vmatprep.subr.mxu0 0.0
  %831 = vmatpush1.msra.mxu0 0.0
  %832 = vmatprep.subr.mxu0 0.0
  %833 = vmatpush1.msra.mxu0 0.0
  %834 = vmatprep.subr.mxu0 0.0
  %835 = vmatpush1.msra.mxu0 0.0
  %836 = vmatprep.subr.mxu0 0.0
  %837 = vmatpush1.msra.mxu0 0.0
  %838 = vmatprep.subr.mxu0 0.0
  %839 = vmatpush1.msra.mxu0 0.0
  %840 = vmatprep.subr.mxu0 0.0
  %841 = vmatpush1.msra.mxu0 0.0
  %842 = vmatprep.subr.mxu0 0.0
  %843 = vmatpush1.msra.mxu0 0.0
  %844 = vmatprep.subr.mxu0 0.0
  %845 = vmatpush1.msra.mxu0 0.0
  %846 = vmatprep.subr.mxu0 0.0
  %847 = vmatpush1.msra.mxu0 0.0
  %848 = vmatprep.subr.mxu0 0.0
  %849 = vmatpush1.msra.mxu0 0.0
  %850 = vmatprep.subr.mxu0 0.0
  %851 = vmatpush1.msra.mxu0 0.0
  %852 = vmatprep.subr.mxu0 0.0
  %853 = vmatpush1.msra.mxu0 0.0
  %854 = vmatprep.subr.mxu0 0.0
  %855 = vmatpush1.msra.mxu0 0.0
  %856 = vmatprep.subr.mxu0 0.0
  %857 = vmatpush1.msra.mxu0 0.0
  %858 = vmatprep.subr.mxu0 0.0
  %859 = vmatpush1.msra.mxu0 0.0
  %860 = vmatprep.mubr.f32.mxu0 0.0
  %861 = vmatmul.mubr.f32.gmra.mrb[0].mxu0 %v761
  %v862 = vpop.f32.mrb[0].mxu0
  %v863 = vadd.f32 0.0, %v862
  %v864 = vpop.f32.mrb[0].mxu0
  %865 = vmatprep.mubr.f32.mxu0 0.0
  %866 = vmatmul.mubr.f32.gmra.mrb[0].mxu0 %v764
  %v867 = vpop.f32.mrb[0].mxu0
  %v868 = vadd.f32 0.0, %v867
  %v869 = vpop.f32.mrb[0].mxu0
  %870 = vmatprep.mubr.f32.mxu0 0.0
  %871 = vmatmul.mubr.f32.gmra.mrb[0].mxu0 %v767
  %v872 = vpop.f32.mrb[0].mxu0
  %v873 = vadd.f32 0.0, %v872
  %v874 = vpop.f32.mrb[0].mxu0
  %875 = vmatprep.mubr.f32.mxu0 0.0
  %876 = vmatmul.mubr.f32.gmra.mrb[0].mxu0 %v770
  %v877 = vpop.f32.mrb[0].mxu0
  %v878 = vadd.f32 0.0, %v877
  %v879 = vpop.f32.mrb[0].mxu0
  %880 = vmatprep.mubr.f32.mxu0 0.0
  %881 = vmatmul.mubr.f32.gmra.mrb[0].mxu0 %v773
  %v882 = vpop.f32.mrb[0].mxu0
  %v883 = vadd.f32 0.0, %v882
  %v884 = vpop.f32.mrb[0].mxu0
  %885 = vmatprep.mubr.f32.mxu0 0.0
  %886 = vmatmul.mubr.f32.gmra.mrb[0].mxu0 %v776
  %v887 = vpop.f32.mrb[0].mxu0
  %v888 = vadd.f32 0.0, %v887
  %v889 = vpop.f32.mrb[0].mxu0
  %890 = vmatprep.mubr.f32.mxu0 0.0
  %891 = vmatmul.mubr.f32.gmra.mrb[0].mxu0 %v779
  %v892 = vpop.f32.mrb[0].mxu0
  %v893 = vadd.f32 0.0, %v892
  %v894 = vpop.f32.mrb[0].mxu0
  %895 = vmatprep.mubr.f32.mxu0 0.0
  %896 = vmatmul.mubr.f32.gmra.mrb[0].mxu0 %v782
  %v897 = vpop.f32.mrb[0].mxu0
  %v898 = vadd.f32 0.0, %v897
  %v899 = vpop.f32.mrb[0].mxu0
  %900 = vmatprep.mubr.f32.mxu0 0.0
  %901 = vmatmul.mubr.f32.gmra.mrb[0].mxu0 %v785
  %v902 = vpop.f32.mrb[0].mxu0
  %v903 = vadd.f32 0.0, %v902
  %v904 = vpop.f32.mrb[0].mxu0
  %905 = vmatprep.mubr.f32.mxu0 0.0
  %906 = vmatmul.mubr.f32.gmra.mrb[0].mxu0 %v788
  %v907 = vpop.f32.mrb[0].mxu0
  %v908 = vadd.f32 0.0, %v907
  %v909 = vpop.f32.mrb[0].mxu0
  %910 = vmatprep.mubr.f32.mxu0 0.0
  %911 = vmatmul.mubr.f32.gmra.mrb[0].mxu0 %v791
  %v912 = vpop.f32.mrb[0].mxu0
  %v913 = vadd.f32 0.0, %v912
  %v914 = vpop.f32.mrb[0].mxu0
  %915 = vmatprep.mubr.f32.mxu0 0.0
  %916 = vmatmul.mubr.f32.gmra.mrb[0].mxu0 %v794
  %v917 = vpop.f32.mrb[0].mxu0
  %v918 = vadd.f32 0.0, %v917
  %v919 = vpop.f32.mrb[0].mxu0
  %920 = vdwg.mxu0
  %921 = vmatprep.subr.mxu0 0.0
  %922 = vmatpush1.msra.mxu0 %v863
  %923 = vmatprep.subr.mxu0 0.0
  %924 = vmatpush1.msra.mxu0 %v868
  %925 = vmatprep.subr.mxu0 0.0
  %926 = vmatpush1.msra.mxu0 0.0
  %927 = vmatprep.subr.mxu0 0.0
  %928 = vmatpush1.msra.mxu0 0.0
  %929 = vmatprep.subr.mxu0 0.0
  %930 = vmatpush1.msra.mxu0 0.0
  %931 = vmatprep.subr.mxu0 0.0
  %932 = vmatpush1.msra.mxu0 0.0
  %933 = vmatprep.subr.mxu0 0.0
  %934 = vmatpush1.msra.mxu0 0.0
  %935 = vmatprep.subr.mxu0 0.0
  %936 = vmatpush1.msra.mxu0 0.0
  %937 = vmatprep.subr.mxu0 0.0
  %938 = vmatpush1.msra.mxu0 0.0
  %939 = vmatprep.subr.mxu0 0.0
  %940 = vmatpush1.msra.mxu0 0.0
  %941 = vmatprep.subr.mxu0 0.0
  %942 = vmatpush1.msra.mxu0 0.0
  %943 = vmatprep.subr.mxu0 0.0
  %944 = vmatpush1.msra.mxu0 0.0
  %945 = vmatprep.subr.mxu0 0.0
  %946 = vmatpush1.msra.mxu0 0.0
  %947 = vmatprep.subr.mxu0 0.0
  %948 = vmatpush1.msra.mxu0 0.0
  %949 = vmatprep.subr.mxu0 0.0
  %950 = vmatpush1.msra.mxu0 0.0
  %951 = vmatprep.subr.mxu0 0.0
  %952 = vmatpush1.msra.mxu0 0.0
  %953 = vmatprep.subr.mxu0 0.0
  %954 = vmatpush1.msra.mxu0 0.0
  %955 = vmatprep.subr.mxu0 0.0
  %956 = vmatpush1.msra.mxu0 0.0
  %957 = vmatprep.subr.mxu0 0.0
  %958 = vmatpush1.msra.mxu0 0.0
  %959 = vmatprep.subr.mxu0 0.0
  %960 = vmatpush1.msra.mxu0 0.0
  %961 = vmatprep.subr.mxu0 0.0
  %962 = vmatpush1.msra.mxu0 0.0
  %963 = vmatprep.subr.mxu0 0.0
  %964 = vmatpush1.msra.mxu0 0.0
  %965 = vmatprep.subr.mxu0 0.0
  %966 = vmatpush1.msra.mxu0 0.0
  %967 = vmatprep.subr.mxu0 0.0
  %968 = vmatpush1.msra.mxu0 0.0
  %969 = vmatprep.subr.mxu0 0.0
  %970 = vmatpush1.msra.mxu0 0.0
  %971 = vmatprep.subr.mxu0 0.0
  %972 = vmatpush1.msra.mxu0 0.0
  %973 = vmatprep.subr.mxu0 0.0
  %974 = vmatpush1.msra.mxu0 0.0
  %975 = vmatprep.subr.mxu0 0.0
  %976 = vmatpush1.msra.mxu0 0.0
  %977 = vmatprep.subr.mxu0 0.0
  %978 = vmatpush1.msra.mxu0 0.0
  %979 = vmatprep.subr.mxu0 0.0
  %980 = vmatpush1.msra.mxu0 0.0
  %981 = vmatprep.subr.mxu0 0.0
  %982 = vmatpush1.msra.mxu0 0.0
  %983 = vmatprep.subr.mxu0 0.0
  %984 = vmatpush1.msra.mxu0 0.0
  %985 = vmatprep.mubr.f32.mxu0 0.0
  %986 = vmatmul.mubr.f32.gmra.mrb[0].mxu0 %v254
  %v987 = vpop.f32.mrb[0].mxu0
  %v988 = vadd.f32 0.0, %v987
  %v989 = vpop.f32.mrb[0].mxu0
  %990 = vmatprep.mubr.f32.mxu0 0.0
  %991 = vmatmul.mubr.f32.gmra.mrb[0].mxu0 %v257
  %v992 = vpop.f32.mrb[0].mxu0
  %v993 = vadd.f32 0.0, %v992
  %v994 = vpop.f32.mrb[0].mxu0
  %995 = vdwg.mxu0
  %996 = vmatprep.subr.mxu0 0.0
  %997 = vmatpush1.msra.mxu0 %v873
  %998 = vmatprep.subr.mxu0 0.0
  %999 = vmatpush1.msra.mxu0 %v878
  %1000 = vmatprep.subr.mxu0 0.0
  %1001 = vmatpush1.msra.mxu0 0.0
  %1002 = vmatprep.subr.mxu0 0.0
  %1003 = vmatpush1.msra.mxu0 0.0
  %1004 = vmatprep.subr.mxu0 0.0
  %1005 = vmatpush1.msra.mxu0 0.0
  %1006 = vmatprep.subr.mxu0 0.0
  %1007 = vmatpush1.msra.mxu0 0.0
  %1008 = vmatprep.subr.mxu0 0.0
  %1009 = vmatpush1.msra.mxu0 0.0
  %1010 = vmatprep.subr.mxu0 0.0
  %1011 = vmatpush1.msra.mxu0 0.0
  %1012 = vmatprep.subr.mxu0 0.0
  %1013 = vmatpush1.msra.mxu0 0.0
  %1014 = vmatprep.subr.mxu0 0.0
  %1015 = vmatpush1.msra.mxu0 0.0
  %1016 = vmatprep.subr.mxu0 0.0
  %1017 = vmatpush1.msra.mxu0 0.0
  %1018 = vmatprep.subr.mxu0 0.0
  %1019 = vmatpush1.msra.mxu0 0.0
  %1020 = vmatprep.subr.mxu0 0.0
  %1021 = vmatpush1.msra.mxu0 0.0
  %1022 = vmatprep.subr.mxu0 0.0
  %1023 = vmatpush1.msra.mxu0 0.0
  %1024 = vmatprep.subr.mxu0 0.0
  %1025 = vmatpush1.msra.mxu0 0.0
  %1026 = vmatprep.subr.mxu0 0.0
  %1027 = vmatpush1.msra.mxu0 0.0
  %1028 = vmatprep.subr.mxu0 0.0
  %1029 = vmatpush1.msra.mxu0 0.0
  %1030 = vmatprep.subr.mxu0 0.0
  %1031 = vmatpush1.msra.mxu0 0.0
  %1032 = vmatprep.subr.mxu0 0.0
  %1033 = vmatpush1.msra.mxu0 0.0
  %1034 = vmatprep.subr.mxu0 0.0
  %1035 = vmatpush1.msra.mxu0 0.0
  %1036 = vmatprep.subr.mxu0 0.0
  %1037 = vmatpush1.msra.mxu0 0.0
  %1038 = vmatprep.subr.mxu0 0.0
  %1039 = vmatpush1.msra.mxu0 0.0
  %1040 = vmatprep.subr.mxu0 0.0
  %1041 = vmatpush1.msra.mxu0 0.0
  %1042 = vmatprep.subr.mxu0 0.0
  %1043 = vmatpush1.msra.mxu0 0.0
  %1044 = vmatprep.subr.mxu0 0.0
  %1045 = vmatpush1.msra.mxu0 0.0
  %1046 = vmatprep.subr.mxu0 0.0
  %1047 = vmatpush1.msra.mxu0 0.0
  %1048 = vmatprep.subr.mxu0 0.0
  %1049 = vmatpush1.msra.mxu0 0.0
  %1050 = vmatprep.subr.mxu0 0.0
  %1051 = vmatpush1.msra.mxu0 0.0
  %1052 = vmatprep.subr.mxu0 0.0
  %1053 = vmatpush1.msra.mxu0 0.0
  %1054 = vmatprep.subr.mxu0 0.0
  %1055 = vmatpush1.msra.mxu0 0.0
  %1056 = vmatprep.subr.mxu0 0.0
  %1057 = vmatpush1.msra.mxu0 0.0
  %1058 = vmatprep.subr.mxu0 0.0
  %1059 = vmatpush1.msra.mxu0 0.0
  %1060 = vmatprep.mubr.f32.mxu0 0.0
  %1061 = vmatmul.mubr.f32.gmra.mrb[0].mxu0 %v335
  %v1062 = vpop.f32.mrb[0].mxu0
  %v1063 = vadd.f32 0.0, %v1062
  %v1064 = vpop.f32.mrb[0].mxu0
  %1065 = vmatprep.mubr.f32.mxu0 0.0
  %1066 = vmatmul.mubr.f32.gmra.mrb[0].mxu0 %v338
  %v1067 = vpop.f32.mrb[0].mxu0
  %v1068 = vadd.f32 0.0, %v1067
  %v1069 = vpop.f32.mrb[0].mxu0
  %1070 = vdwg.mxu0
  %1071 = vmatprep.subr.mxu0 0.0
  %1072 = vmatpush1.msra.mxu0 %v883
  %1073 = vmatprep.subr.mxu0 0.0
  %1074 = vmatpush1.msra.mxu0 %v888
  %1075 = vmatprep.subr.mxu0 0.0
  %1076 = vmatpush1.msra.mxu0 0.0
  %1077 = vmatprep.subr.mxu0 0.0
  %1078 = vmatpush1.msra.mxu0 0.0
  %1079 = vmatprep.subr.mxu0 0.0
  %1080 = vmatpush1.msra.mxu0 0.0
  %1081 = vmatprep.subr.mxu0 0.0
  %1082 = vmatpush1.msra.mxu0 0.0
  %1083 = vmatprep.subr.mxu0 0.0
  %1084 = vmatpush1.msra.mxu0 0.0
  %1085 = vmatprep.subr.mxu0 0.0
  %1086 = vmatpush1.msra.mxu0 0.0
  %1087 = vmatprep.subr.mxu0 0.0
  %1088 = vmatpush1.msra.mxu0 0.0
  %1089 = vmatprep.subr.mxu0 0.0
  %1090 = vmatpush1.msra.mxu0 0.0
  %1091 = vmatprep.subr.mxu0 0.0
  %1092 = vmatpush1.msra.mxu0 0.0
  %1093 = vmatprep.subr.mxu0 0.0
  %1094 = vmatpush1.msra.mxu0 0.0
  %1095 = vmatprep.subr.mxu0 0.0
  %1096 = vmatpush1.msra.mxu0 0.0
  %1097 = vmatprep.subr.mxu0 0.0
  %1098 = vmatpush1.msra.mxu0 0.0
  %1099 = vmatprep.subr.mxu0 0.0
  %1100 = vmatpush1.msra.mxu0 0.0
  %1101 = vmatprep.subr.mxu0 0.0
  %1102 = vmatpush1.msra.mxu0 0.0
  %1103 = vmatprep.subr.mxu0 0.0
  %1104 = vmatpush1.msra.mxu0 0.0
  %1105 = vmatprep.subr.mxu0 0.0
  %1106 = vmatpush1.msra.mxu0 0.0
  %1107 = vmatprep.subr.mxu0 0.0
  %1108 = vmatpush1.msra.mxu0 0.0
  %1109 = vmatprep.subr.mxu0 0.0
  %1110 = vmatpush1.msra.mxu0 0.0
  %1111 = vmatprep.subr.mxu0 0.0
  %1112 = vmatpush1.msra.mxu0 0.0
  %1113 = vmatprep.subr.mxu0 0.0
  %1114 = vmatpush1.msra.mxu0 0.0
  %1115 = vmatprep.subr.mxu0 0.0
  %1116 = vmatpush1.msra.mxu0 0.0
  %1117 = vmatprep.subr.mxu0 0.0
  %1118 = vmatpush1.msra.mxu0 0.0
  %1119 = vmatprep.subr.mxu0 0.0
  %1120 = vmatpush1.msra.mxu0 0.0
  %1121 = vmatprep.subr.mxu0 0.0
  %1122 = vmatpush1.msra.mxu0 0.0
  %1123 = vmatprep.subr.mxu0 0.0
  %1124 = vmatpush1.msra.mxu0 0.0
  %1125 = vmatprep.subr.mxu0 0.0
  %1126 = vmatpush1.msra.mxu0 0.0
  %1127 = vmatprep.subr.mxu0 0.0
  %1128 = vmatpush1.msra.mxu0 0.0
  %1129 = vmatprep.subr.mxu0 0.0
  %1130 = vmatpush1.msra.mxu0 0.0
  %1131 = vmatprep.subr.mxu0 0.0
  %1132 = vmatpush1.msra.mxu0 0.0
  %1133 = vmatprep.subr.mxu0 0.0
  %1134 = vmatpush1.msra.mxu0 0.0
  %1135 = vmatprep.mubr.f32.mxu0 0.0
  %1136 = vmatmul.mubr.f32.gmra.mrb[0].mxu0 %v416
  %v1137 = vpop.f32.mrb[0].mxu0
  %v1138 = vadd.f32 0.0, %v1137
  %v1139 = vpop.f32.mrb[0].mxu0
  %1140 = vmatprep.mubr.f32.mxu0 0.0
  %1141 = vmatmul.mubr.f32.gmra.mrb[0].mxu0 %v419
  %v1142 = vpop.f32.mrb[0].mxu0
  %v1143 = vadd.f32 0.0, %v1142
  %v1144 = vpop.f32.mrb[0].mxu0
  %1145 = vdwg.mxu0
  %1146 = vmatprep.subr.mxu0 0.0
  %1147 = vmatpush1.msra.mxu0 %v893
  %1148 = vmatprep.subr.mxu0 0.0
  %1149 = vmatpush1.msra.mxu0 %v898
  %1150 = vmatprep.subr.mxu0 0.0
  %1151 = vmatpush1.msra.mxu0 0.0
  %1152 = vmatprep.subr.mxu0 0.0
  %1153 = vmatpush1.msra.mxu0 0.0
  %1154 = vmatprep.subr.mxu0 0.0
  %1155 = vmatpush1.msra.mxu0 0.0
  %1156 = vmatprep.subr.mxu0 0.0
  %1157 = vmatpush1.msra.mxu0 0.0
  %1158 = vmatprep.subr.mxu0 0.0
  %1159 = vmatpush1.msra.mxu0 0.0
  %1160 = vmatprep.subr.mxu0 0.0
  %1161 = vmatpush1.msra.mxu0 0.0
  %1162 = vmatprep.subr.mxu0 0.0
  %1163 = vmatpush1.msra.mxu0 0.0
  %1164 = vmatprep.subr.mxu0 0.0
  %1165 = vmatpush1.msra.mxu0 0.0
  %1166 = vmatprep.subr.mxu0 0.0
  %1167 = vmatpush1.msra.mxu0 0.0
  %1168 = vmatprep.subr.mxu0 0.0
  %1169 = vmatpush1.msra.mxu0 0.0
  %1170 = vmatprep.subr.mxu0 0.0
  %1171 = vmatpush1.msra.mxu0 0.0
  %1172 = vmatprep.subr.mxu0 0.0
  %1173 = vmatpush1.msra.mxu0 0.0
  %1174 = vmatprep.subr.mxu0 0.0
  %1175 = vmatpush1.msra.mxu0 0.0
  %1176 = vmatprep.subr.mxu0 0.0
  %1177 = vmatpush1.msra.mxu0 0.0
  %1178 = vmatprep.subr.mxu0 0.0
  %1179 = vmatpush1.msra.mxu0 0.0
  %1180 = vmatprep.subr.mxu0 0.0
  %1181 = vmatpush1.msra.mxu0 0.0
  %1182 = vmatprep.subr.mxu0 0.0
  %1183 = vmatpush1.msra.mxu0 0.0
  %1184 = vmatprep.subr.mxu0 0.0
  %1185 = vmatpush1.msra.mxu0 0.0
  %1186 = vmatprep.subr.mxu0 0.0
  %1187 = vmatpush1.msra.mxu0 0.0
  %1188 = vmatprep.subr.mxu0 0.0
  %1189 = vmatpush1.msra.mxu0 0.0
  %1190 = vmatprep.subr.mxu0 0.0
  %1191 = vmatpush1.msra.mxu0 0.0
  %1192 = vmatprep.subr.mxu0 0.0
  %1193 = vmatpush1.msra.mxu0 0.0
  %1194 = vmatprep.subr.mxu0 0.0
  %1195 = vmatpush1.msra.mxu0 0.0
  %1196 = vmatprep.subr.mxu0 0.0
  %1197 = vmatpush1.msra.mxu0 0.0
  %1198 = vmatprep.subr.mxu0 0.0
  %1199 = vmatpush1.msra.mxu0 0.0
  %1200 = vmatprep.subr.mxu0 0.0
  %1201 = vmatpush1.msra.mxu0 0.0
  %1202 = vmatprep.subr.mxu0 0.0
  %1203 = vmatpush1.msra.mxu0 0.0
  %1204 = vmatprep.subr.mxu0 0.0
  %1205 = vmatpush1.msra.mxu0 0.0
  %1206 = vmatprep.subr.mxu0 0.0
  %1207 = vmatpush1.msra.mxu0 0.0
  %1208 = vmatprep.subr.mxu0 0.0
  %1209 = vmatpush1.msra.mxu0 0.0
  %1210 = vmatprep.mubr.f32.mxu0 0.0
  %1211 = vmatmul.mubr.f32.gmra.mrb[0].mxu0 %v497
  %v1212 = vpop.f32.mrb[0].mxu0
  %v1213 = vadd.f32 0.0, %v1212
  %v1214 = vpop.f32.mrb[0].mxu0
  %1215 = vmatprep.mubr.f32.mxu0 0.0
  %1216 = vmatmul.mubr.f32.gmra.mrb[0].mxu0 %v500
  %v1217 = vpop.f32.mrb[0].mxu0
  %v1218 = vadd.f32 0.0, %v1217
  %v1219 = vpop.f32.mrb[0].mxu0
  %1220 = vdwg.mxu0
  %1221 = vmatprep.subr.mxu0 0.0
  %1222 = vmatpush1.msra.mxu0 %v903
  %1223 = vmatprep.subr.mxu0 0.0
  %1224 = vmatpush1.msra.mxu0 %v908
  %1225 = vmatprep.subr.mxu0 0.0
  %1226 = vmatpush1.msra.mxu0 0.0
  %1227 = vmatprep.subr.mxu0 0.0
  %1228 = vmatpush1.msra.mxu0 0.0
  %1229 = vmatprep.subr.mxu0 0.0
  %1230 = vmatpush1.msra.mxu0 0.0
  %1231 = vmatprep.subr.mxu0 0.0
  %1232 = vmatpush1.msra.mxu0 0.0
  %1233 = vmatprep.subr.mxu0 0.0
  %1234 = vmatpush1.msra.mxu0 0.0
  %1235 = vmatprep.subr.mxu0 0.0
  %1236 = vmatpush1.msra.mxu0 0.0
  %1237 = vmatprep.subr.mxu0 0.0
  %1238 = vmatpush1.msra.mxu0 0.0
  %1239 = vmatprep.subr.mxu0 0.0
  %1240 = vmatpush1.msra.mxu0 0.0
  %1241 = vmatprep.subr.mxu0 0.0
  %1242 = vmatpush1.msra.mxu0 0.0
  %1243 = vmatprep.subr.mxu0 0.0
  %1244 = vmatpush1.msra.mxu0 0.0
  %1245 = vmatprep.subr.mxu0 0.0
  %1246 = vmatpush1.msra.mxu0 0.0
  %1247 = vmatprep.subr.mxu0 0.0
  %1248 = vmatpush1.msra.mxu0 0.0
  %1249 = vmatprep.subr.mxu0 0.0
  %1250 = vmatpush1.msra.mxu0 0.0
  %1251 = vmatprep.subr.mxu0 0.0
  %1252 = vmatpush1.msra.mxu0 0.0
  %1253 = vmatprep.subr.mxu0 0.0
  %1254 = vmatpush1.msra.mxu0 0.0
  %1255 = vmatprep.subr.mxu0 0.0
  %1256 = vmatpush1.msra.mxu0 0.0
  %1257 = vmatprep.subr.mxu0 0.0
  %1258 = vmatpush1.msra.mxu0 0.0
  %1259 = vmatprep.subr.mxu0 0.0
  %1260 = vmatpush1.msra.mxu0 0.0
  %1261 = vmatprep.subr.mxu0 0.0
  %1262 = vmatpush1.msra.mxu0 0.0
  %1263 = vmatprep.subr.mxu0 0.0
  %1264 = vmatpush1.msra.mxu0 0.0
  %1265 = vmatprep.subr.mxu0 0.0
  %1266 = vmatpush1.msra.mxu0 0.0
  %1267 = vmatprep.subr.mxu0 0.0
  %1268 = vmatpush1.msra.mxu0 0.0
  %1269 = vmatprep.subr.mxu0 0.0
  %1270 = vmatpush1.msra.mxu0 0.0
  %1271 = vmatprep.subr.mxu0 0.0
  %1272 = vmatpush1.msra.mxu0 0.0
  %1273 = vmatprep.subr.mxu0 0.0
  %1274 = vmatpush1.msra.mxu0 0.0
  %1275 = vmatprep.subr.mxu0 0.0
  %1276 = vmatpush1.msra.mxu0 0.0
  %1277 = vmatprep.subr.mxu0 0.0
  %1278 = vmatpush1.msra.mxu0 0.0
  %1279 = vmatprep.subr.mxu0 0.0
  %1280 = vmatpush1.msra.mxu0 0.0
  %1281 = vmatprep.subr.mxu0 0.0
  %1282 = vmatpush1.msra.mxu0 0.0
  %1283 = vmatprep.subr.mxu0 0.0
  %1284 = vmatpush1.msra.mxu0 0.0
  %1285 = vmatprep.mubr.f32.mxu0 0.0
  %1286 = vmatmul.mubr.f32.gmra.mrb[0].mxu0 %v578
  %v1287 = vpop.f32.mrb[0].mxu0
  %v1288 = vadd.f32 0.0, %v1287
  %v1289 = vpop.f32.mrb[0].mxu0
  %1290 = vmatprep.mubr.f32.mxu0 0.0
  %1291 = vmatmul.mubr.f32.gmra.mrb[0].mxu0 %v581
  %v1292 = vpop.f32.mrb[0].mxu0
  %v1293 = vadd.f32 0.0, %v1292
  %v1294 = vpop.f32.mrb[0].mxu0
  %1295 = vdwg.mxu0
  %1296 = vmatprep.subr.mxu0 0.0
  %1297 = vmatpush1.msra.mxu0 %v913
  %1298 = vmatprep.subr.mxu0 0.0
  %1299 = vmatpush1.msra.mxu0 %v918
  %1300 = vmatprep.subr.mxu0 0.0
  %1301 = vmatpush1.msra.mxu0 0.0
  %1302 = vmatprep.subr.mxu0 0.0
  %1303 = vmatpush1.msra.mxu0 0.0
  %1304 = vmatprep.subr.mxu0 0.0
  %1305 = vmatpush1.msra.mxu0 0.0
  %1306 = vmatprep.subr.mxu0 0.0
  %1307 = vmatpush1.msra.mxu0 0.0
  %1308 = vmatprep.subr.mxu0 0.0
  %1309 = vmatpush1.msra.mxu0 0.0
  %1310 = vmatprep.subr.mxu0 0.0
  %1311 = vmatpush1.msra.mxu0 0.0
  %1312 = vmatprep.subr.mxu0 0.0
  %1313 = vmatpush1.msra.mxu0 0.0
  %1314 = vmatprep.subr.mxu0 0.0
  %1315 = vmatpush1.msra.mxu0 0.0
  %1316 = vmatprep.subr.mxu0 0.0
  %1317 = vmatpush1.msra.mxu0 0.0
  %1318 = vmatprep.subr.mxu0 0.0
  %1319 = vmatpush1.msra.mxu0 0.0
  %1320 = vmatprep.subr.mxu0 0.0
  %1321 = vmatpush1.msra.mxu0 0.0
  %1322 = vmatprep.subr.mxu0 0.0
  %1323 = vmatpush1.msra.mxu0 0.0
  %1324 = vmatprep.subr.mxu0 0.0
  %1325 = vmatpush1.msra.mxu0 0.0
  %1326 = vmatprep.subr.mxu0 0.0
  %1327 = vmatpush1.msra.mxu0 0.0
  %1328 = vmatprep.subr.mxu0 0.0
  %1329 = vmatpush1.msra.mxu0 0.0
  %1330 = vmatprep.subr.mxu0 0.0
  %1331 = vmatpush1.msra.mxu0 0.0
  %1332 = vmatprep.subr.mxu0 0.0
  %1333 = vmatpush1.msra.mxu0 0.0
  %1334 = vmatprep.subr.mxu0 0.0
  %1335 = vmatpush1.msra.mxu0 0.0
  %1336 = vmatprep.subr.mxu0 0.0
  %1337 = vmatpush1.msra.mxu0 0.0
  %1338 = vmatprep.subr.mxu0 0.0
  %1339 = vmatpush1.msra.mxu0 0.0
  %1340 = vmatprep.subr.mxu0 0.0
  %1341 = vmatpush1.msra.mxu0 0.0
  %1342 = vmatprep.subr.mxu0 0.0
  %1343 = vmatpush1.msra.mxu0 0.0
  %1344 = vmatprep.subr.mxu0 0.0
  %1345 = vmatpush1.msra.mxu0 0.0
  %1346 = vmatprep.subr.mxu0 0.0
  %1347 = vmatpush1.msra.mxu0 0.0
  %1348 = vmatprep.subr.mxu0 0.0
  %1349 = vmatpush1.msra.mxu0 0.0
  %1350 = vmatprep.subr.mxu0 0.0
  %1351 = vmatpush1.msra.mxu0 0.0
  %1352 = vmatprep.subr.mxu0 0.0
  %1353 = vmatpush1.msra.mxu0 0.0
  %1354 = vmatprep.subr.mxu0 0.0
  %1355 = vmatpush1.msra.mxu0 0.0
  %1356 = vmatprep.subr.mxu0 0.0
  %1357 = vmatpush1.msra.mxu0 0.0
  %1358 = vmatprep.subr.mxu0 0.0
  %1359 = vmatpush1.msra.mxu0 0.0
  %1360 = vmatprep.mubr.f32.mxu0 0.0
  %1361 = vmatmul.mubr.f32.gmra.mrb[0].mxu0 %v659
  %v1362 = vpop.f32.mrb[0].mxu0
  %v1363 = vadd.f32 0.0, %v1362
  %v1364 = vpop.f32.mrb[0].mxu0
  %1365 = vmatprep.mubr.f32.mxu0 0.0
  %1366 = vmatmul.mubr.f32.gmra.mrb[0].mxu0 %v662
  %v1367 = vpop.f32.mrb[0].mxu0
  %v1368 = vadd.f32 0.0, %v1367
  %v1369 = vpop.f32.mrb[0].mxu0
  %1370 = vdwg.mxu0
  %v1372 = vlaneseq
  %v1373 = vshrl.u32 %v1372, 7
  %v1374 = vsub.s32 0, %v1373
  %v1375 = vrot.slane %v759, %v1374
  %v1377 = vadd.f32 %v988, %v1375
  %v1378 = vadd.f32 %v993, %v1375
  %v1379 = vadd.f32 %v1063, %v1375
  %v1380 = vadd.f32 %v1068, %v1375
  %v1381 = vadd.f32 %v1138, %v1375
  %v1382 = vadd.f32 %v1143, %v1375
  %v1383 = vadd.f32 %v1213, %v1375
  %v1384 = vadd.f32 %v1218, %v1375
  %v1385 = vadd.f32 %v1288, %v1375
  %v1386 = vadd.f32 %v1293, %v1375
  %v1387 = vadd.f32 %v1363, %v1375
  %v1388 = vadd.f32 %v1368, %v1375
  %v1389 = vld [vmem:[%s7] sm:$0xff]
  %v1390 = vld [vmem:[%s7 + $0x8] sm:$0xff]
  %v1391 = vld [vmem:[%s7 + $0x10] sm:$0xff]
  %v1392 = vld [vmem:[%s7 + $0x18] sm:$0xff]
  %v1393 = vld [vmem:[%s8] sm:$0xff]
  %v1394 = vld [vmem:[%s8 + $0x8] sm:$0xff]
  %v1395 = vld [vmem:[%s8 + $0x10] sm:$0xff]
  %v1396 = vld [vmem:[%s8 + $0x18] sm:$0xff]
  %v1397 = vld [vmem:[%s9] sm:$0x1]
  %v1398 = vld [vmem:[%s10] sm:$0x1]
  %v1400 = vlaneseq
  %v1401 = vshrl.u32 %v1400, 7
  %v1402 = vsub.s32 0, %v1401
  %v1403 = vrot.slane %v1397, %v1402
  %vm1405 = vcmask 261120
  %v1407 = vsel %vm1405, %v1377, 0
  %v1410 = vsel %vm1405, %v1378, 0
  %v1413 = vsel %vm1405, %v1379, 0
  %v1416 = vsel %vm1405, %v1380, 0
  %v1419 = vsel %vm1405, %v1381, 0
  %v1422 = vsel %vm1405, %v1382, 0
  %v1425 = vsel %vm1405, %v1383, 0
  %v1428 = vsel %vm1405, %v1384, 0
  %v1431 = vsel %vm1405, %v1385, 0
  %v1434 = vsel %vm1405, %v1386, 0
  %v1437 = vsel %vm1405, %v1387, 0
  %v1440 = vsel %vm1405, %v1388, 0
  %1442 = vmatprep.subr.mxu0 0.0
  %1443 = vmatpush1.msra.mxu0 %v1389
  %1444 = vmatprep.subr.mxu0 0.0
  %1445 = vmatpush1.msra.mxu0 %v1390
  %1446 = vmatprep.subr.mxu0 0.0
  %1447 = vmatpush1.msra.mxu0 %v1391
  %1448 = vmatprep.subr.mxu0 0.0
  %1449 = vmatpush1.msra.mxu0 %v1392
  %1450 = vmatprep.subr.mxu0 0.0
  %1451 = vmatpush1.msra.mxu0 0.0
  %1452 = vmatprep.subr.mxu0 0.0
  %1453 = vmatpush1.msra.mxu0 0.0
  %1454 = vmatprep.subr.mxu0 0.0
  %1455 = vmatpush1.msra.mxu0 0.0
  %1456 = vmatprep.subr.mxu0 0.0
  %1457 = vmatpush1.msra.mxu0 0.0
  %1458 = vmatprep.subr.mxu0 0.0
  %1459 = vmatpush1.msra.mxu0 0.0
  %1460 = vmatprep.subr.mxu0 0.0
  %1461 = vmatpush1.msra.mxu0 0.0
  %1462 = vmatprep.subr.mxu0 0.0
  %1463 = vmatpush1.msra.mxu0 0.0
  %1464 = vmatprep.subr.mxu0 0.0
  %1465 = vmatpush1.msra.mxu0 0.0
  %1466 = vmatprep.subr.mxu0 0.0
  %1467 = vmatpush1.msra.mxu0 0.0
  %1468 = vmatprep.subr.mxu0 0.0
  %1469 = vmatpush1.msra.mxu0 0.0
  %1470 = vmatprep.subr.mxu0 0.0
  %1471 = vmatpush1.msra.mxu0 0.0
  %1472 = vmatprep.subr.mxu0 0.0
  %1473 = vmatpush1.msra.mxu0 0.0
  %1474 = vmatprep.subr.mxu0 0.0
  %1475 = vmatpush1.msra.mxu0 0.0
  %1476 = vmatprep.subr.mxu0 0.0
  %1477 = vmatpush1.msra.mxu0 0.0
  %1478 = vmatprep.subr.mxu0 0.0
  %1479 = vmatpush1.msra.mxu0 0.0
  %1480 = vmatprep.subr.mxu0 0.0
  %1481 = vmatpush1.msra.mxu0 0.0
  %1482 = vmatprep.subr.mxu0 0.0
  %1483 = vmatpush1.msra.mxu0 0.0
  %1484 = vmatprep.subr.mxu0 0.0
  %1485 = vmatpush1.msra.mxu0 0.0
  %1486 = vmatprep.subr.mxu0 0.0
  %1487 = vmatpush1.msra.mxu0 0.0
  %1488 = vmatprep.subr.mxu0 0.0
  %1489 = vmatpush1.msra.mxu0 0.0
  %1490 = vmatprep.subr.mxu0 0.0
  %1491 = vmatpush1.msra.mxu0 0.0
  %1492 = vmatprep.subr.mxu0 0.0
  %1493 = vmatpush1.msra.mxu0 0.0
  %1494 = vmatprep.subr.mxu0 0.0
  %1495 = vmatpush1.msra.mxu0 0.0
  %1496 = vmatprep.subr.mxu0 0.0
  %1497 = vmatpush1.msra.mxu0 0.0
  %1498 = vmatprep.subr.mxu0 0.0
  %1499 = vmatpush1.msra.mxu0 0.0
  %1500 = vmatprep.subr.mxu0 0.0
  %1501 = vmatpush1.msra.mxu0 0.0
  %1502 = vmatprep.subr.mxu0 0.0
  %1503 = vmatpush1.msra.mxu0 0.0
  %1504 = vmatprep.subr.mxu0 0.0
  %1505 = vmatpush1.msra.mxu0 0.0
  %1506 = vmatprep.mubr.f32.mxu0 0.0
  %1507 = vmatmul.mubr.f32.gmra.mrb[0].mxu0 %v1407
  %v1508 = vpop.f32.mrb[0].mxu0
  %v1509 = vadd.f32 %v1403, %v1508
  %v1510 = vpop.f32.mrb[0].mxu0
  %1511 = vmatprep.mubr.f32.mxu0 0.0
  %1512 = vmatmul.mubr.f32.gmra.mrb[0].mxu0 %v1410
  %v1513 = vpop.f32.mrb[0].mxu0
  %v1514 = vadd.f32 %v1403, %v1513
  %v1515 = vpop.f32.mrb[0].mxu0
  %1516 = vmatprep.mubr.f32.mxu0 0.0
  %1517 = vmatmul.mubr.f32.gmra.mrb[0].mxu0 %v1413
  %v1518 = vpop.f32.mrb[0].mxu0
  %v1519 = vadd.f32 %v1403, %v1518
  %v1520 = vpop.f32.mrb[0].mxu0
  %1521 = vmatprep.mubr.f32.mxu0 0.0
  %1522 = vmatmul.mubr.f32.gmra.mrb[0].mxu0 %v1416
  %v1523 = vpop.f32.mrb[0].mxu0
  %v1524 = vadd.f32 %v1403, %v1523
  %v1525 = vpop.f32.mrb[0].mxu0
  %1526 = vmatprep.mubr.f32.mxu0 0.0
  %1527 = vmatmul.mubr.f32.gmra.mrb[0].mxu0 %v1419
  %v1528 = vpop.f32.mrb[0].mxu0
  %v1529 = vadd.f32 %v1403, %v1528
  %v1530 = vpop.f32.mrb[0].mxu0
  %1531 = vmatprep.mubr.f32.mxu0 0.0
  %1532 = vmatmul.mubr.f32.gmra.mrb[0].mxu0 %v1422
  %v1533 = vpop.f32.mrb[0].mxu0
  %v1534 = vadd.f32 %v1403, %v1533
  %v1535 = vpop.f32.mrb[0].mxu0
  %1536 = vmatprep.mubr.f32.mxu0 0.0
  %1537 = vmatmul.mubr.f32.gmra.mrb[0].mxu0 %v1425
  %v1538 = vpop.f32.mrb[0].mxu0
  %v1539 = vadd.f32 %v1403, %v1538
  %v1540 = vpop.f32.mrb[0].mxu0
  %1541 = vmatprep.mubr.f32.mxu0 0.0
  %1542 = vmatmul.mubr.f32.gmra.mrb[0].mxu0 %v1428
  %v1543 = vpop.f32.mrb[0].mxu0
  %v1544 = vadd.f32 %v1403, %v1543
  %v1545 = vpop.f32.mrb[0].mxu0
  %1546 = vmatprep.mubr.f32.mxu0 0.0
  %1547 = vmatmul.mubr.f32.gmra.mrb[0].mxu0 %v1431
  %v1548 = vpop.f32.mrb[0].mxu0
  %v1549 = vadd.f32 %v1403, %v1548
  %v1550 = vpop.f32.mrb[0].mxu0
  %1551 = vmatprep.mubr.f32.mxu0 0.0
  %1552 = vmatmul.mubr.f32.gmra.mrb[0].mxu0 %v1434
  %v1553 = vpop.f32.mrb[0].mxu0
  %v1554 = vadd.f32 %v1403, %v1553
  %v1555 = vpop.f32.mrb[0].mxu0
  %1556 = vmatprep.mubr.f32.mxu0 0.0
  %1557 = vmatmul.mubr.f32.gmra.mrb[0].mxu0 %v1437
  %v1558 = vpop.f32.mrb[0].mxu0
  %v1559 = vadd.f32 %v1403, %v1558
  %v1560 = vpop.f32.mrb[0].mxu0
  %1561 = vmatprep.mubr.f32.mxu0 0.0
  %1562 = vmatmul.mubr.f32.gmra.mrb[0].mxu0 %v1440
  %v1563 = vpop.f32.mrb[0].mxu0
  %v1564 = vadd.f32 %v1403, %v1563
  %v1565 = vpop.f32.mrb[0].mxu0
  %1566 = vdwg.mxu0
  %v1568 = vlaneseq
  %v1569 = vshrl.u32 %v1568, 7
  %v1570 = vsub.s32 0, %v1569
  %v1571 = vrot.slane %v1398, %v1570
  %v1574 = vsel %vm1405, 0.0, 0
  %1576 = vmatprep.subr.mxu0 0.0
  %1577 = vmatpush1.msra.mxu0 %v1393
  %1578 = vmatprep.subr.mxu0 0.0
  %1579 = vmatpush1.msra.mxu0 %v1394
  %1580 = vmatprep.subr.mxu0 0.0
  %1581 = vmatpush1.msra.mxu0 %v1395
  %1582 = vmatprep.subr.mxu0 0.0
  %1583 = vmatpush1.msra.mxu0 %v1396
  %1584 = vmatprep.subr.mxu0 0.0
  %1585 = vmatpush1.msra.mxu0 0.0
  %1586 = vmatprep.subr.mxu0 0.0
  %1587 = vmatpush1.msra.mxu0 0.0
  %1588 = vmatprep.subr.mxu0 0.0
  %1589 = vmatpush1.msra.mxu0 0.0
  %1590 = vmatprep.subr.mxu0 0.0
  %1591 = vmatpush1.msra.mxu0 0.0
  %1592 = vmatprep.subr.mxu0 0.0
  %1593 = vmatpush1.msra.mxu0 0.0
  %1594 = vmatprep.subr.mxu0 0.0
  %1595 = vmatpush1.msra.mxu0 0.0
  %1596 = vmatprep.subr.mxu0 0.0
  %1597 = vmatpush1.msra.mxu0 0.0
  %1598 = vmatprep.subr.mxu0 0.0
  %1599 = vmatpush1.msra.mxu0 0.0
  %1600 = vmatprep.subr.mxu0 0.0
  %1601 = vmatpush1.msra.mxu0 0.0
  %1602 = vmatprep.subr.mxu0 0.0
  %1603 = vmatpush1.msra.mxu0 0.0
  %1604 = vmatprep.subr.mxu0 0.0
  %1605 = vmatpush1.msra.mxu0 0.0
  %1606 = vmatprep.subr.mxu0 0.0
  %1607 = vmatpush1.msra.mxu0 0.0
  %1608 = vmatprep.subr.mxu0 0.0
  %1609 = vmatpush1.msra.mxu0 0.0
  %1610 = vmatprep.subr.mxu0 0.0
  %1611 = vmatpush1.msra.mxu0 0.0
  %1612 = vmatprep.subr.mxu0 0.0
  %1613 = vmatpush1.msra.mxu0 0.0
  %1614 = vmatprep.subr.mxu0 0.0
  %1615 = vmatpush1.msra.mxu0 0.0
  %1616 = vmatprep.subr.mxu0 0.0
  %1617 = vmatpush1.msra.mxu0 0.0
  %1618 = vmatprep.subr.mxu0 0.0
  %1619 = vmatpush1.msra.mxu0 0.0
  %1620 = vmatprep.subr.mxu0 0.0
  %1621 = vmatpush1.msra.mxu0 0.0
  %1622 = vmatprep.subr.mxu0 0.0
  %1623 = vmatpush1.msra.mxu0 0.0
  %1624 = vmatprep.subr.mxu0 0.0
  %1625 = vmatpush1.msra.mxu0 0.0
  %1626 = vmatprep.subr.mxu0 0.0
  %1627 = vmatpush1.msra.mxu0 0.0
  %1628 = vmatprep.subr.mxu0 0.0
  %1629 = vmatpush1.msra.mxu0 0.0
  %1630 = vmatprep.subr.mxu0 0.0
  %1631 = vmatpush1.msra.mxu0 0.0
  %1632 = vmatprep.subr.mxu0 0.0
  %1633 = vmatpush1.msra.mxu0 0.0
  %1634 = vmatprep.subr.mxu0 0.0
  %1635 = vmatpush1.msra.mxu0 0.0
  %1636 = vmatprep.subr.mxu0 0.0
  %1637 = vmatpush1.msra.mxu0 0.0
  %1638 = vmatprep.subr.mxu0 0.0
  %1639 = vmatpush1.msra.mxu0 0.0
  %1640 = vmatprep.mubr.f32.mxu0 0.0
  %1641 = vmatmul.mubr.f32.gmra.mrb[0].mxu0 %v1574
  %v1642 = vpop.f32.mrb[0].mxu0
  %v1643 = vadd.f32 %v1571, %v1642
  %v1644 = vpop.f32.mrb[0].mxu0
  %1645 = vmatprep.mubr.f32.mxu0 0.0
  %1646 = vmatmul.mubr.f32.gmra.mrb[0].mxu0 %v1574
  %v1647 = vpop.f32.mrb[0].mxu0
  %v1648 = vadd.f32 %v1571, %v1647
  %v1649 = vpop.f32.mrb[0].mxu0
  %1650 = vdwg.mxu0
  %v1651 = vadd.f32 %v1509, %v1643
  %v1652 = vadd.f32 %v1514, %v1648
  %v1653 = vxor.u32 %v1651, 2147483648
  %v1654 = vxor.u32 %v1652, 2147483648
  %v1655 = vmul.f32 %v1653, 1.442695
  %v1656 = vpow.pop %v1655
  %v1657 = vmul.f32 %v1654, 1.442695
  %v1658 = vpow.pop %v1657
  %v1659 = vadd.f32 %v1656, 1.0
  %v1660 = vadd.f32 %v1658, 1.0
  %v1661 = vrcp.pop %v1659
  %v1662 = vmul.f32 1.0, %v1661
  %v1663 = vrcp.pop %v1660
  %v1664 = vmul.f32 1.0, %v1663
  %1667 = vrot.lane.b32.xlu0 %v1643, 64
  %v1668 = vpop.permute.xlu0 %1667
  %1669 = vrot.lane.b32.xlu0 %v1648, 64
  %v1670 = vpop.permute.xlu0 %1669
  %v1673 = vmul.f32 %v1662, %v1668
  %v1674 = vmul.f32 %v1664, %v1670
  %1677 = vrot.lane.b32.xlu0 %v1673, 64
  %v1678 = vpop.permute.xlu0 %1677
  %1679 = vrot.lane.b32.xlu0 %v1674, 64
  %v1680 = vpop.permute.xlu0 %1679
  %v1683 = vadd.f32 %v1509, %v1678
  %v1684 = vadd.f32 %v1514, %v1680
  %v1685 = vtanh.pop %v1683
  %v1686 = vtanh.pop %v1684
  %v1687 = vsub.f32 1.0, %v1662
  %v1688 = vsub.f32 1.0, %v1664
  %1691 = vrot.lane.b32.xlu0 %v1685, 96
  %v1692 = vpop.permute.xlu0 %1691
  %1693 = vrot.lane.b32.xlu0 %v1686, 96
  %v1694 = vpop.permute.xlu0 %1693
  %v1697 = vmul.f32 %v1687, %v1692
  %v1698 = vmul.f32 %v1688, %v1694
  %v1699 = vmul.f32 %v1662, 0.0
  %v1700 = vmul.f32 %v1664, 0.0
  %v1701 = vadd.f32 %v1697, %v1699
  %v1702 = vadd.f32 %v1698, %v1700
  %1705 = vrot.lane.b32.xlu0 %v1701, 96
  %v1706 = vpop.permute.xlu0 %1705
  %1707 = vrot.lane.b32.xlu0 %v1702, 96
  %v1708 = vpop.permute.xlu0 %1707
  %v1709 = vsel %vm1405, %v1706, 0
  %v1711 = vsel %vm1405, %v1708, 0
  %1713 = vmatprep.subr.mxu0 0.0
  %1714 = vmatpush1.msra.mxu0 %v1393
  %1715 = vmatprep.subr.mxu0 0.0
  %1716 = vmatpush1.msra.mxu0 %v1394
  %1717 = vmatprep.subr.mxu0 0.0
  %1718 = vmatpush1.msra.mxu0 %v1395
  %1719 = vmatprep.subr.mxu0 0.0
  %1720 = vmatpush1.msra.mxu0 %v1396
  %1721 = vmatprep.subr.mxu0 0.0
  %1722 = vmatpush1.msra.mxu0 0.0
  %1723 = vmatprep.subr.mxu0 0.0
  %1724 = vmatpush1.msra.mxu0 0.0
  %1725 = vmatprep.subr.mxu0 0.0
  %1726 = vmatpush1.msra.mxu0 0.0
  %1727 = vmatprep.subr.mxu0 0.0
  %1728 = vmatpush1.msra.mxu0 0.0
  %1729 = vmatprep.subr.mxu0 0.0
  %1730 = vmatpush1.msra.mxu0 0.0
  %1731 = vmatprep.subr.mxu0 0.0
  %1732 = vmatpush1.msra.mxu0 0.0
  %1733 = vmatprep.subr.mxu0 0.0
  %1734 = vmatpush1.msra.mxu0 0.0
  %1735 = vmatprep.subr.mxu0 0.0
  %1736 = vmatpush1.msra.mxu0 0.0
  %1737 = vmatprep.subr.mxu0 0.0
  %1738 = vmatpush1.msra.mxu0 0.0
  %1739 = vmatprep.subr.mxu0 0.0
  %1740 = vmatpush1.msra.mxu0 0.0
  %1741 = vmatprep.subr.mxu0 0.0
  %1742 = vmatpush1.msra.mxu0 0.0
  %1743 = vmatprep.subr.mxu0 0.0
  %1744 = vmatpush1.msra.mxu0 0.0
  %1745 = vmatprep.subr.mxu0 0.0
  %1746 = vmatpush1.msra.mxu0 0.0
  %1747 = vmatprep.subr.mxu0 0.0
  %1748 = vmatpush1.msra.mxu0 0.0
  %1749 = vmatprep.subr.mxu0 0.0
  %1750 = vmatpush1.msra.mxu0 0.0
  %1751 = vmatprep.subr.mxu0 0.0
  %1752 = vmatpush1.msra.mxu0 0.0
  %1753 = vmatprep.subr.mxu0 0.0
  %1754 = vmatpush1.msra.mxu0 0.0
  %1755 = vmatprep.subr.mxu0 0.0
  %1756 = vmatpush1.msra.mxu0 0.0
  %1757 = vmatprep.subr.mxu0 0.0
  %1758 = vmatpush1.msra.mxu0 0.0
  %1759 = vmatprep.subr.mxu0 0.0
  %1760 = vmatpush1.msra.mxu0 0.0
  %1761 = vmatprep.subr.mxu0 0.0
  %1762 = vmatpush1.msra.mxu0 0.0
  %1763 = vmatprep.subr.mxu0 0.0
  %1764 = vmatpush1.msra.mxu0 0.0
  %1765 = vmatprep.subr.mxu0 0.0
  %1766 = vmatpush1.msra.mxu0 0.0
  %1767 = vmatprep.subr.mxu0 0.0
  %1768 = vmatpush1.msra.mxu0 0.0
  %1769 = vmatprep.subr.mxu0 0.0
  %1770 = vmatpush1.msra.mxu0 0.0
  %1771 = vmatprep.subr.mxu0 0.0
  %1772 = vmatpush1.msra.mxu0 0.0
  %1773 = vmatprep.subr.mxu0 0.0
  %1774 = vmatpush1.msra.mxu0 0.0
  %1775 = vmatprep.subr.mxu0 0.0
  %1776 = vmatpush1.msra.mxu0 0.0
  %1777 = vmatprep.mubr.f32.mxu0 0.0
  %1778 = vmatmul.mubr.f32.gmra.mrb[0].mxu0 %v1709
  %v1779 = vpop.f32.mrb[0].mxu0
  %v1780 = vadd.f32 %v1571, %v1779
  %v1781 = vpop.f32.mrb[0].mxu0
  %1782 = vmatprep.mubr.f32.mxu0 0.0
  %1783 = vmatmul.mubr.f32.gmra.mrb[0].mxu0 %v1711
  %v1784 = vpop.f32.mrb[0].mxu0
  %v1785 = vadd.f32 %v1571, %v1784
  %v1786 = vpop.f32.mrb[0].mxu0
  %1787 = vdwg.mxu0
  %v1788 = vadd.f32 %v1519, %v1780
  %v1789 = vadd.f32 %v1524, %v1785
  %v1790 = vxor.u32 %v1788, 2147483648
  %v1791 = vxor.u32 %v1789, 2147483648
  %v1792 = vmul.f32 %v1790, 1.442695
  %v1793 = vpow.pop %v1792
  %v1794 = vmul.f32 %v1791, 1.442695
  %v1795 = vpow.pop %v1794
  %v1796 = vadd.f32 %v1793, 1.0
  %v1797 = vadd.f32 %v1795, 1.0
  %v1798 = vrcp.pop %v1796
  %v1799 = vmul.f32 1.0, %v1798
  %v1800 = vrcp.pop %v1797
  %v1801 = vmul.f32 1.0, %v1800
  %1804 = vrot.lane.b32.xlu0 %v1780, 64
  %v1805 = vpop.permute.xlu0 %1804
  %1806 = vrot.lane.b32.xlu0 %v1785, 64
  %v1807 = vpop.permute.xlu0 %1806
  %v1810 = vmul.f32 %v1799, %v1805
  %v1811 = vmul.f32 %v1801, %v1807
  %1814 = vrot.lane.b32.xlu0 %v1810, 64
  %v1815 = vpop.permute.xlu0 %1814
  %1816 = vrot.lane.b32.xlu0 %v1811, 64
  %v1817 = vpop.permute.xlu0 %1816
  %v1820 = vadd.f32 %v1519, %v1815
  %v1821 = vadd.f32 %v1524, %v1817
  %v1822 = vtanh.pop %v1820
  %v1823 = vtanh.pop %v1821
  %v1824 = vsub.f32 1.0, %v1799
  %v1825 = vsub.f32 1.0, %v1801
  %1828 = vrot.lane.b32.xlu0 %v1822, 96
  %v1829 = vpop.permute.xlu0 %1828
  %1830 = vrot.lane.b32.xlu0 %v1823, 96
  %v1831 = vpop.permute.xlu0 %1830
  %v1834 = vmul.f32 %v1824, %v1829
  %v1835 = vmul.f32 %v1825, %v1831
  %v1836 = vmul.f32 %v1799, %v1701
  %v1837 = vmul.f32 %v1801, %v1702
  %v1838 = vadd.f32 %v1834, %v1836
  %v1839 = vadd.f32 %v1835, %v1837
  %1842 = vrot.lane.b32.xlu0 %v1838, 96
  %v1843 = vpop.permute.xlu0 %1842
  %1844 = vrot.lane.b32.xlu0 %v1839, 96
  %v1845 = vpop.permute.xlu0 %1844
  %v1846 = vsel %vm1405, %v1843, 0
  %v1848 = vsel %vm1405, %v1845, 0
  %1850 = vmatprep.subr.mxu0 0.0
  %1851 = vmatpush1.msra.mxu0 %v1393
  %1852 = vmatprep.subr.mxu0 0.0
  %1853 = vmatpush1.msra.mxu0 %v1394
  %1854 = vmatprep.subr.mxu0 0.0
  %1855 = vmatpush1.msra.mxu0 %v1395
  %1856 = vmatprep.subr.mxu0 0.0
  %1857 = vmatpush1.msra.mxu0 %v1396
  %1858 = vmatprep.subr.mxu0 0.0
  %1859 = vmatpush1.msra.mxu0 0.0
  %1860 = vmatprep.subr.mxu0 0.0
  %1861 = vmatpush1.msra.mxu0 0.0
  %1862 = vmatprep.subr.mxu0 0.0
  %1863 = vmatpush1.msra.mxu0 0.0
  %1864 = vmatprep.subr.mxu0 0.0
  %1865 = vmatpush1.msra.mxu0 0.0
  %1866 = vmatprep.subr.mxu0 0.0
  %1867 = vmatpush1.msra.mxu0 0.0
  %1868 = vmatprep.subr.mxu0 0.0
  %1869 = vmatpush1.msra.mxu0 0.0
  %1870 = vmatprep.subr.mxu0 0.0
  %1871 = vmatpush1.msra.mxu0 0.0
  %1872 = vmatprep.subr.mxu0 0.0
  %1873 = vmatpush1.msra.mxu0 0.0
  %1874 = vmatprep.subr.mxu0 0.0
  %1875 = vmatpush1.msra.mxu0 0.0
  %1876 = vmatprep.subr.mxu0 0.0
  %1877 = vmatpush1.msra.mxu0 0.0
  %1878 = vmatprep.subr.mxu0 0.0
  %1879 = vmatpush1.msra.mxu0 0.0
  %1880 = vmatprep.subr.mxu0 0.0
  %1881 = vmatpush1.msra.mxu0 0.0
  %1882 = vmatprep.subr.mxu0 0.0
  %1883 = vmatpush1.msra.mxu0 0.0
  %1884 = vmatprep.subr.mxu0 0.0
  %1885 = vmatpush1.msra.mxu0 0.0
  %1886 = vmatprep.subr.mxu0 0.0
  %1887 = vmatpush1.msra.mxu0 0.0
  %1888 = vmatprep.subr.mxu0 0.0
  %1889 = vmatpush1.msra.mxu0 0.0
  %1890 = vmatprep.subr.mxu0 0.0
  %1891 = vmatpush1.msra.mxu0 0.0
  %1892 = vmatprep.subr.mxu0 0.0
  %1893 = vmatpush1.msra.mxu0 0.0
  %1894 = vmatprep.subr.mxu0 0.0
  %1895 = vmatpush1.msra.mxu0 0.0
  %1896 = vmatprep.subr.mxu0 0.0
  %1897 = vmatpush1.msra.mxu0 0.0
  %1898 = vmatprep.subr.mxu0 0.0
  %1899 = vmatpush1.msra.mxu0 0.0
  %1900 = vmatprep.subr.mxu0 0.0
  %1901 = vmatpush1.msra.mxu0 0.0
  %1902 = vmatprep.subr.mxu0 0.0
  %1903 = vmatpush1.msra.mxu0 0.0
  %1904 = vmatprep.subr.mxu0 0.0
  %1905 = vmatpush1.msra.mxu0 0.0
  %1906 = vmatprep.subr.mxu0 0.0
  %1907 = vmatpush1.msra.mxu0 0.0
  %1908 = vmatprep.subr.mxu0 0.0
  %1909 = vmatpush1.msra.mxu0 0.0
  %1910 = vmatprep.subr.mxu0 0.0
  %1911 = vmatpush1.msra.mxu0 0.0
  %1912 = vmatprep.subr.mxu0 0.0
  %1913 = vmatpush1.msra.mxu0 0.0
  %1914 = vmatprep.mubr.f32.mxu0 0.0
  %1915 = vmatmul.mubr.f32.gmra.mrb[0].mxu0 %v1846
  %v1916 = vpop.f32.mrb[0].mxu0
  %v1917 = vadd.f32 %v1571, %v1916
  %v1918 = vpop.f32.mrb[0].mxu0
  %1919 = vmatprep.mubr.f32.mxu0 0.0
  %1920 = vmatmul.mubr.f32.gmra.mrb[0].mxu0 %v1848
  %v1921 = vpop.f32.mrb[0].mxu0
  %v1922 = vadd.f32 %v1571, %v1921
  %v1923 = vpop.f32.mrb[0].mxu0
  %1924 = vdwg.mxu0
  %v1925 = vadd.f32 %v1529, %v1917
  %v1926 = vadd.f32 %v1534, %v1922
  %v1927 = vxor.u32 %v1925, 2147483648
  %v1928 = vxor.u32 %v1926, 2147483648
  %v1929 = vmul.f32 %v1927, 1.442695
  %v1930 = vpow.pop %v1929
  %v1931 = vmul.f32 %v1928, 1.442695
  %v1932 = vpow.pop %v1931
  %v1933 = vadd.f32 %v1930, 1.0
  %v1934 = vadd.f32 %v1932, 1.0
  %v1935 = vrcp.pop %v1933
  %v1936 = vmul.f32 1.0, %v1935
  %v1937 = vrcp.pop %v1934
  %v1938 = vmul.f32 1.0, %v1937
  %1941 = vrot.lane.b32.xlu0 %v1917, 64
  %v1942 = vpop.permute.xlu0 %1941
  %1943 = vrot.lane.b32.xlu0 %v1922, 64
  %v1944 = vpop.permute.xlu0 %1943
  %v1947 = vmul.f32 %v1936, %v1942
  %v1948 = vmul.f32 %v1938, %v1944
  %1951 = vrot.lane.b32.xlu0 %v1947, 64
  %v1952 = vpop.permute.xlu0 %1951
  %1953 = vrot.lane.b32.xlu0 %v1948, 64
  %v1954 = vpop.permute.xlu0 %1953
  %v1957 = vadd.f32 %v1529, %v1952
  %v1958 = vadd.f32 %v1534, %v1954
  %v1959 = vtanh.pop %v1957
  %v1960 = vtanh.pop %v1958
  %v1961 = vsub.f32 1.0, %v1936
  %v1962 = vsub.f32 1.0, %v1938
  %1965 = vrot.lane.b32.xlu0 %v1959, 96
  %v1966 = vpop.permute.xlu0 %1965
  %1967 = vrot.lane.b32.xlu0 %v1960, 96
  %v1968 = vpop.permute.xlu0 %1967
  %v1971 = vmul.f32 %v1961, %v1966
  %v1972 = vmul.f32 %v1962, %v1968
  %v1973 = vmul.f32 %v1936, %v1838
  %v1974 = vmul.f32 %v1938, %v1839
  %v1975 = vadd.f32 %v1971, %v1973
  %v1976 = vadd.f32 %v1972, %v1974
  %1979 = vrot.lane.b32.xlu0 %v1975, 96
  %v1980 = vpop.permute.xlu0 %1979
  %1981 = vrot.lane.b32.xlu0 %v1976, 96
  %v1982 = vpop.permute.xlu0 %1981
  %v1983 = vsel %vm1405, %v1980, 0
  %v1985 = vsel %vm1405, %v1982, 0
  %1987 = vmatprep.subr.mxu0 0.0
  %1988 = vmatpush1.msra.mxu0 %v1393
  %1989 = vmatprep.subr.mxu0 0.0
  %1990 = vmatpush1.msra.mxu0 %v1394
  %1991 = vmatprep.subr.mxu0 0.0
  %1992 = vmatpush1.msra.mxu0 %v1395
  %1993 = vmatprep.subr.mxu0 0.0
  %1994 = vmatpush1.msra.mxu0 %v1396
  %1995 = vmatprep.subr.mxu0 0.0
  %1996 = vmatpush1.msra.mxu0 0.0
  %1997 = vmatprep.subr.mxu0 0.0
  %1998 = vmatpush1.msra.mxu0 0.0
  %1999 = vmatprep.subr.mxu0 0.0
  %2000 = vmatpush1.msra.mxu0 0.0
  %2001 = vmatprep.subr.mxu0 0.0
  %2002 = vmatpush1.msra.mxu0 0.0
  %2003 = vmatprep.subr.mxu0 0.0
  %2004 = vmatpush1.msra.mxu0 0.0
  %2005 = vmatprep.subr.mxu0 0.0
  %2006 = vmatpush1.msra.mxu0 0.0
  %2007 = vmatprep.subr.mxu0 0.0
  %2008 = vmatpush1.msra.mxu0 0.0
  %2009 = vmatprep.subr.mxu0 0.0
  %2010 = vmatpush1.msra.mxu0 0.0
  %2011 = vmatprep.subr.mxu0 0.0
  %2012 = vmatpush1.msra.mxu0 0.0
  %2013 = vmatprep.subr.mxu0 0.0
  %2014 = vmatpush1.msra.mxu0 0.0
  %2015 = vmatprep.subr.mxu0 0.0
  %2016 = vmatpush1.msra.mxu0 0.0
  %2017 = vmatprep.subr.mxu0 0.0
  %2018 = vmatpush1.msra.mxu0 0.0
  %2019 = vmatprep.subr.mxu0 0.0
  %2020 = vmatpush1.msra.mxu0 0.0
  %2021 = vmatprep.subr.mxu0 0.0
  %2022 = vmatpush1.msra.mxu0 0.0
  %2023 = vmatprep.subr.mxu0 0.0
  %2024 = vmatpush1.msra.mxu0 0.0
  %2025 = vmatprep.subr.mxu0 0.0
  %2026 = vmatpush1.msra.mxu0 0.0
  %2027 = vmatprep.subr.mxu0 0.0
  %2028 = vmatpush1.msra.mxu0 0.0
  %2029 = vmatprep.subr.mxu0 0.0
  %2030 = vmatpush1.msra.mxu0 0.0
  %2031 = vmatprep.subr.mxu0 0.0
  %2032 = vmatpush1.msra.mxu0 0.0
  %2033 = vmatprep.subr.mxu0 0.0
  %2034 = vmatpush1.msra.mxu0 0.0
  %2035 = vmatprep.subr.mxu0 0.0
  %2036 = vmatpush1.msra.mxu0 0.0
  %2037 = vmatprep.subr.mxu0 0.0
  %2038 = vmatpush1.msra.mxu0 0.0
  %2039 = vmatprep.subr.mxu0 0.0
  %2040 = vmatpush1.msra.mxu0 0.0
  %2041 = vmatprep.subr.mxu0 0.0
  %2042 = vmatpush1.msra.mxu0 0.0
  %2043 = vmatprep.subr.mxu0 0.0
  %2044 = vmatpush1.msra.mxu0 0.0
  %2045 = vmatprep.subr.mxu0 0.0
  %2046 = vmatpush1.msra.mxu0 0.0
  %2047 = vmatprep.subr.mxu0 0.0
  %2048 = vmatpush1.msra.mxu0 0.0
  %2049 = vmatprep.subr.mxu0 0.0
  %2050 = vmatpush1.msra.mxu0 0.0
  %2051 = vmatprep.mubr.f32.mxu0 0.0
  %2052 = vmatmul.mubr.f32.gmra.mrb[0].mxu0 %v1983
  %v2053 = vpop.f32.mrb[0].mxu0
  %v2054 = vadd.f32 %v1571, %v2053
  %v2055 = vpop.f32.mrb[0].mxu0
  %2056 = vmatprep.mubr.f32.mxu0 0.0
  %2057 = vmatmul.mubr.f32.gmra.mrb[0].mxu0 %v1985
  %v2058 = vpop.f32.mrb[0].mxu0
  %v2059 = vadd.f32 %v1571, %v2058
  %v2060 = vpop.f32.mrb[0].mxu0
  %2061 = vdwg.mxu0
  %v2062 = vadd.f32 %v1539, %v2054
  %v2063 = vadd.f32 %v1544, %v2059
  %v2064 = vxor.u32 %v2062, 2147483648
  %v2065 = vxor.u32 %v2063, 2147483648
  %v2066 = vmul.f32 %v2064, 1.442695
  %v2067 = vpow.pop %v2066
  %v2068 = vmul.f32 %v2065, 1.442695
  %v2069 = vpow.pop %v2068
  %v2070 = vadd.f32 %v2067, 1.0
  %v2071 = vadd.f32 %v2069, 1.0
  %v2072 = vrcp.pop %v2070
  %v2073 = vmul.f32 1.0, %v2072
  %v2074 = vrcp.pop %v2071
  %v2075 = vmul.f32 1.0, %v2074
  %2078 = vrot.lane.b32.xlu0 %v2054, 64
  %v2079 = vpop.permute.xlu0 %2078
  %2080 = vrot.lane.b32.xlu0 %v2059, 64
  %v2081 = vpop.permute.xlu0 %2080
  %v2084 = vmul.f32 %v2073, %v2079
  %v2085 = vmul.f32 %v2075, %v2081
  %2088 = vrot.lane.b32.xlu0 %v2084, 64
  %v2089 = vpop.permute.xlu0 %2088
  %2090 = vrot.lane.b32.xlu0 %v2085, 64
  %v2091 = vpop.permute.xlu0 %2090
  %v2094 = vadd.f32 %v1539, %v2089
  %v2095 = vadd.f32 %v1544, %v2091
  %v2096 = vtanh.pop %v2094
  %v2097 = vtanh.pop %v2095
  %v2098 = vsub.f32 1.0, %v2073
  %v2099 = vsub.f32 1.0, %v2075
  %2102 = vrot.lane.b32.xlu0 %v2096, 96
  %v2103 = vpop.permute.xlu0 %2102
  %2104 = vrot.lane.b32.xlu0 %v2097, 96
  %v2105 = vpop.permute.xlu0 %2104
  %v2108 = vmul.f32 %v2098, %v2103
  %v2109 = vmul.f32 %v2099, %v2105
  %v2110 = vmul.f32 %v2073, %v1975
  %v2111 = vmul.f32 %v2075, %v1976
  %v2112 = vadd.f32 %v2108, %v2110
  %v2113 = vadd.f32 %v2109, %v2111
  %2116 = vrot.lane.b32.xlu0 %v2112, 96
  %v2117 = vpop.permute.xlu0 %2116
  %2118 = vrot.lane.b32.xlu0 %v2113, 96
  %v2119 = vpop.permute.xlu0 %2118
  %v2120 = vsel %vm1405, %v2117, 0
  %v2122 = vsel %vm1405, %v2119, 0
  %2124 = vmatprep.subr.mxu0 0.0
  %2125 = vmatpush1.msra.mxu0 %v1393
  %2126 = vmatprep.subr.mxu0 0.0
  %2127 = vmatpush1.msra.mxu0 %v1394
  %2128 = vmatprep.subr.mxu0 0.0
  %2129 = vmatpush1.msra.mxu0 %v1395
  %2130 = vmatprep.subr.mxu0 0.0
  %2131 = vmatpush1.msra.mxu0 %v1396
  %2132 = vmatprep.subr.mxu0 0.0
  %2133 = vmatpush1.msra.mxu0 0.0
  %2134 = vmatprep.subr.mxu0 0.0
  %2135 = vmatpush1.msra.mxu0 0.0
  %2136 = vmatprep.subr.mxu0 0.0
  %2137 = vmatpush1.msra.mxu0 0.0
  %2138 = vmatprep.subr.mxu0 0.0
  %2139 = vmatpush1.msra.mxu0 0.0
  %2140 = vmatprep.subr.mxu0 0.0
  %2141 = vmatpush1.msra.mxu0 0.0
  %2142 = vmatprep.subr.mxu0 0.0
  %2143 = vmatpush1.msra.mxu0 0.0
  %2144 = vmatprep.subr.mxu0 0.0
  %2145 = vmatpush1.msra.mxu0 0.0
  %2146 = vmatprep.subr.mxu0 0.0
  %2147 = vmatpush1.msra.mxu0 0.0
  %2148 = vmatprep.subr.mxu0 0.0
  %2149 = vmatpush1.msra.mxu0 0.0
  %2150 = vmatprep.subr.mxu0 0.0
  %2151 = vmatpush1.msra.mxu0 0.0
  %2152 = vmatprep.subr.mxu0 0.0
  %2153 = vmatpush1.msra.mxu0 0.0
  %2154 = vmatprep.subr.mxu0 0.0
  %2155 = vmatpush1.msra.mxu0 0.0
  %2156 = vmatprep.subr.mxu0 0.0
  %2157 = vmatpush1.msra.mxu0 0.0
  %2158 = vmatprep.subr.mxu0 0.0
  %2159 = vmatpush1.msra.mxu0 0.0
  %2160 = vmatprep.subr.mxu0 0.0
  %2161 = vmatpush1.msra.mxu0 0.0
  %2162 = vmatprep.subr.mxu0 0.0
  %2163 = vmatpush1.msra.mxu0 0.0
  %2164 = vmatprep.subr.mxu0 0.0
  %2165 = vmatpush1.msra.mxu0 0.0
  %2166 = vmatprep.subr.mxu0 0.0
  %2167 = vmatpush1.msra.mxu0 0.0
  %2168 = vmatprep.subr.mxu0 0.0
  %2169 = vmatpush1.msra.mxu0 0.0
  %2170 = vmatprep.subr.mxu0 0.0
  %2171 = vmatpush1.msra.mxu0 0.0
  %2172 = vmatprep.subr.mxu0 0.0
  %2173 = vmatpush1.msra.mxu0 0.0
  %2174 = vmatprep.subr.mxu0 0.0
  %2175 = vmatpush1.msra.mxu0 0.0
  %2176 = vmatprep.subr.mxu0 0.0
  %2177 = vmatpush1.msra.mxu0 0.0
  %2178 = vmatprep.subr.mxu0 0.0
  %2179 = vmatpush1.msra.mxu0 0.0
  %2180 = vmatprep.subr.mxu0 0.0
  %2181 = vmatpush1.msra.mxu0 0.0
  %2182 = vmatprep.subr.mxu0 0.0
  %2183 = vmatpush1.msra.mxu0 0.0
  %2184 = vmatprep.subr.mxu0 0.0
  %2185 = vmatpush1.msra.mxu0 0.0
  %2186 = vmatprep.subr.mxu0 0.0
  %2187 = vmatpush1.msra.mxu0 0.0
  %2188 = vmatprep.mubr.f32.mxu0 0.0
  %2189 = vmatmul.mubr.f32.gmra.mrb[0].mxu0 %v2120
  %v2190 = vpop.f32.mrb[0].mxu0
  %v2191 = vadd.f32 %v1571, %v2190
  %v2192 = vpop.f32.mrb[0].mxu0
  %2193 = vmatprep.mubr.f32.mxu0 0.0
  %2194 = vmatmul.mubr.f32.gmra.mrb[0].mxu0 %v2122
  %v2195 = vpop.f32.mrb[0].mxu0
  %v2196 = vadd.f32 %v1571, %v2195
  %v2197 = vpop.f32.mrb[0].mxu0
  %2198 = vdwg.mxu0
  %v2199 = vadd.f32 %v1549, %v2191
  %v2200 = vadd.f32 %v1554, %v2196
  %v2201 = vxor.u32 %v2199, 2147483648
  %v2202 = vxor.u32 %v2200, 2147483648
  %v2203 = vmul.f32 %v2201, 1.442695
  %v2204 = vpow.pop %v2203
  %v2205 = vmul.f32 %v2202, 1.442695
  %v2206 = vpow.pop %v2205
  %v2207 = vadd.f32 %v2204, 1.0
  %v2208 = vadd.f32 %v2206, 1.0
  %v2209 = vrcp.pop %v2207
  %v2210 = vmul.f32 1.0, %v2209
  %v2211 = vrcp.pop %v2208
  %v2212 = vmul.f32 1.0, %v2211
  %2215 = vrot.lane.b32.xlu0 %v2191, 64
  %v2216 = vpop.permute.xlu0 %2215
  %2217 = vrot.lane.b32.xlu0 %v2196, 64
  %v2218 = vpop.permute.xlu0 %2217
  %v2221 = vmul.f32 %v2210, %v2216
  %v2222 = vmul.f32 %v2212, %v2218
  %2225 = vrot.lane.b32.xlu0 %v2221, 64
  %v2226 = vpop.permute.xlu0 %2225
  %2227 = vrot.lane.b32.xlu0 %v2222, 64
  %v2228 = vpop.permute.xlu0 %2227
  %v2231 = vadd.f32 %v1549, %v2226
  %v2232 = vadd.f32 %v1554, %v2228
  %v2233 = vtanh.pop %v2231
  %v2234 = vtanh.pop %v2232
  %v2235 = vsub.f32 1.0, %v2210
  %v2236 = vsub.f32 1.0, %v2212
  %2239 = vrot.lane.b32.xlu0 %v2233, 96
  %v2240 = vpop.permute.xlu0 %2239
  %2241 = vrot.lane.b32.xlu0 %v2234, 96
  %v2242 = vpop.permute.xlu0 %2241
  %v2245 = vmul.f32 %v2235, %v2240
  %v2246 = vmul.f32 %v2236, %v2242
  %v2247 = vmul.f32 %v2210, %v2112
  %v2248 = vmul.f32 %v2212, %v2113
  %v2249 = vadd.f32 %v2245, %v2247
  %v2250 = vadd.f32 %v2246, %v2248
  %2253 = vrot.lane.b32.xlu0 %v2249, 96
  %v2254 = vpop.permute.xlu0 %2253
  %2255 = vrot.lane.b32.xlu0 %v2250, 96
  %v2256 = vpop.permute.xlu0 %2255
  %v2257 = vsel %vm1405, %v2254, 0
  %v2259 = vsel %vm1405, %v2256, 0
  %2261 = vmatprep.subr.mxu0 0.0
  %2262 = vmatpush1.msra.mxu0 %v1393
  %2263 = vmatprep.subr.mxu0 0.0
  %2264 = vmatpush1.msra.mxu0 %v1394
  %2265 = vmatprep.subr.mxu0 0.0
  %2266 = vmatpush1.msra.mxu0 %v1395
  %2267 = vmatprep.subr.mxu0 0.0
  %2268 = vmatpush1.msra.mxu0 %v1396
  %2269 = vmatprep.subr.mxu0 0.0
  %2270 = vmatpush1.msra.mxu0 0.0
  %2271 = vmatprep.subr.mxu0 0.0
  %2272 = vmatpush1.msra.mxu0 0.0
  %2273 = vmatprep.subr.mxu0 0.0
  %2274 = vmatpush1.msra.mxu0 0.0
  %2275 = vmatprep.subr.mxu0 0.0
  %2276 = vmatpush1.msra.mxu0 0.0
  %2277 = vmatprep.subr.mxu0 0.0
  %2278 = vmatpush1.msra.mxu0 0.0
  %2279 = vmatprep.subr.mxu0 0.0
  %2280 = vmatpush1.msra.mxu0 0.0
  %2281 = vmatprep.subr.mxu0 0.0
  %2282 = vmatpush1.msra.mxu0 0.0
  %2283 = vmatprep.subr.mxu0 0.0
  %2284 = vmatpush1.msra.mxu0 0.0
  %2285 = vmatprep.subr.mxu0 0.0
  %2286 = vmatpush1.msra.mxu0 0.0
  %2287 = vmatprep.subr.mxu0 0.0
  %2288 = vmatpush1.msra.mxu0 0.0
  %2289 = vmatprep.subr.mxu0 0.0
  %2290 = vmatpush1.msra.mxu0 0.0
  %2291 = vmatprep.subr.mxu0 0.0
  %2292 = vmatpush1.msra.mxu0 0.0
  %2293 = vmatprep.subr.mxu0 0.0
  %2294 = vmatpush1.msra.mxu0 0.0
  %2295 = vmatprep.subr.mxu0 0.0
  %2296 = vmatpush1.msra.mxu0 0.0
  %2297 = vmatprep.subr.mxu0 0.0
  %2298 = vmatpush1.msra.mxu0 0.0
  %2299 = vmatprep.subr.mxu0 0.0
  %2300 = vmatpush1.msra.mxu0 0.0
  %2301 = vmatprep.subr.mxu0 0.0
  %2302 = vmatpush1.msra.mxu0 0.0
  %2303 = vmatprep.subr.mxu0 0.0
  %2304 = vmatpush1.msra.mxu0 0.0
  %2305 = vmatprep.subr.mxu0 0.0
  %2306 = vmatpush1.msra.mxu0 0.0
  %2307 = vmatprep.subr.mxu0 0.0
  %2308 = vmatpush1.msra.mxu0 0.0
  %2309 = vmatprep.subr.mxu0 0.0
  %2310 = vmatpush1.msra.mxu0 0.0
  %2311 = vmatprep.subr.mxu0 0.0
  %2312 = vmatpush1.msra.mxu0 0.0
  %2313 = vmatprep.subr.mxu0 0.0
  %2314 = vmatpush1.msra.mxu0 0.0
  %2315 = vmatprep.subr.mxu0 0.0
  %2316 = vmatpush1.msra.mxu0 0.0
  %2317 = vmatprep.subr.mxu0 0.0
  %2318 = vmatpush1.msra.mxu0 0.0
  %2319 = vmatprep.subr.mxu0 0.0
  %2320 = vmatpush1.msra.mxu0 0.0
  %2321 = vmatprep.subr.mxu0 0.0
  %2322 = vmatpush1.msra.mxu0 0.0
  %2323 = vmatprep.subr.mxu0 0.0
  %2324 = vmatpush1.msra.mxu0 0.0
  %2325 = vmatprep.mubr.f32.mxu0 0.0
  %2326 = vmatmul.mubr.f32.gmra.mrb[0].mxu0 %v2257
  %v2327 = vpop.f32.mrb[0].mxu0
  %v2328 = vadd.f32 %v1571, %v2327
  %v2329 = vpop.f32.mrb[0].mxu0
  %2330 = vmatprep.mubr.f32.mxu0 0.0
  %2331 = vmatmul.mubr.f32.gmra.mrb[0].mxu0 %v2259
  %v2332 = vpop.f32.mrb[0].mxu0
  %v2333 = vadd.f32 %v1571, %v2332
  %v2334 = vpop.f32.mrb[0].mxu0
  %2335 = vdwg.mxu0
  %v2336 = vadd.f32 %v1559, %v2328
  %v2337 = vadd.f32 %v1564, %v2333
  %v2338 = vxor.u32 %v2336, 2147483648
  %v2339 = vxor.u32 %v2337, 2147483648
  %v2340 = vmul.f32 %v2338, 1.442695
  %v2341 = vpow.pop %v2340
  %v2342 = vmul.f32 %v2339, 1.442695
  %v2343 = vpow.pop %v2342
  %v2344 = vadd.f32 %v2341, 1.0
  %v2345 = vadd.f32 %v2343, 1.0
  %v2346 = vrcp.pop %v2344
  %v2347 = vmul.f32 1.0, %v2346
  %v2348 = vrcp.pop %v2345
  %v2349 = vmul.f32 1.0, %v2348
  %2352 = vrot.lane.b32.xlu0 %v2328, 64
  %v2353 = vpop.permute.xlu0 %2352
  %2354 = vrot.lane.b32.xlu0 %v2333, 64
  %v2355 = vpop.permute.xlu0 %2354
  %v2358 = vmul.f32 %v2347, %v2353
  %v2359 = vmul.f32 %v2349, %v2355
  %2362 = vrot.lane.b32.xlu0 %v2358, 64
  %v2363 = vpop.permute.xlu0 %2362
  %2364 = vrot.lane.b32.xlu0 %v2359, 64
  %v2365 = vpop.permute.xlu0 %2364
  %v2368 = vadd.f32 %v1559, %v2363
  %v2369 = vadd.f32 %v1564, %v2365
  %v2370 = vtanh.pop %v2368
  %v2371 = vtanh.pop %v2369
  %v2372 = vsub.f32 1.0, %v2347
  %v2373 = vsub.f32 1.0, %v2349
  %2376 = vrot.lane.b32.xlu0 %v2370, 96
  %v2377 = vpop.permute.xlu0 %2376
  %2378 = vrot.lane.b32.xlu0 %v2371, 96
  %v2379 = vpop.permute.xlu0 %2378
  %v2382 = vmul.f32 %v2372, %v2377
  %v2383 = vmul.f32 %v2373, %v2379
  %v2384 = vmul.f32 %v2347, %v2249
  %v2385 = vmul.f32 %v2349, %v2250
  %v2386 = vadd.f32 %v2382, %v2384
  %v2387 = vadd.f32 %v2383, %v2385
  %v2388 = vld [vmem:[%s11] sm:$0xff]
  %v2389 = vld [vmem:[%s11 + $0x8] sm:$0xff]
  %v2390 = vld [vmem:[%s11 + $0x10] sm:$0xff]
  %v2391 = vld [vmem:[%s11 + $0x18] sm:$0xff]
  %v2392 = vld [vmem:[%s12] sm:$0xff]
  %v2393 = vld [vmem:[%s12 + $0x8] sm:$0xff]
  %v2394 = vld [vmem:[%s12 + $0x10] sm:$0xff]
  %v2395 = vld [vmem:[%s12 + $0x18] sm:$0xff]
  %v2396 = vld [vmem:[%s13] sm:$0x1]
  %v2397 = vld [vmem:[%s14] sm:$0x1]
  %v2399 = vlaneseq
  %v2400 = vshrl.u32 %v2399, 7
  %v2401 = vsub.s32 0, %v2400
  %v2402 = vrot.slane %v2396, %v2401
  %2406 = vrot.lane.b32.xlu0 %v2386, 96
  %v2407 = vpop.permute.xlu0 %2406
  %2408 = vrot.lane.b32.xlu0 %v2387, 96
  %v2409 = vpop.permute.xlu0 %2408
  %v2410 = vsel %vm1405, %v2407, 0
  %v2412 = vsel %vm1405, %v2409, 0
  %2414 = vmatprep.subr.mxu0 0.0
  %2415 = vmatpush1.msra.mxu0 %v2388
  %2416 = vmatprep.subr.mxu0 0.0
  %2417 = vmatpush1.msra.mxu0 %v2389
  %2418 = vmatprep.subr.mxu0 0.0
  %2419 = vmatpush1.msra.mxu0 %v2390
  %2420 = vmatprep.subr.mxu0 0.0
  %2421 = vmatpush1.msra.mxu0 %v2391
  %2422 = vmatprep.subr.mxu0 0.0
  %2423 = vmatpush1.msra.mxu0 0.0
  %2424 = vmatprep.subr.mxu0 0.0
  %2425 = vmatpush1.msra.mxu0 0.0
  %2426 = vmatprep.subr.mxu0 0.0
  %2427 = vmatpush1.msra.mxu0 0.0
  %2428 = vmatprep.subr.mxu0 0.0
  %2429 = vmatpush1.msra.mxu0 0.0
  %2430 = vmatprep.subr.mxu0 0.0
  %2431 = vmatpush1.msra.mxu0 0.0
  %2432 = vmatprep.subr.mxu0 0.0
  %2433 = vmatpush1.msra.mxu0 0.0
  %2434 = vmatprep.subr.mxu0 0.0
  %2435 = vmatpush1.msra.mxu0 0.0
  %2436 = vmatprep.subr.mxu0 0.0
  %2437 = vmatpush1.msra.mxu0 0.0
  %2438 = vmatprep.subr.mxu0 0.0
  %2439 = vmatpush1.msra.mxu0 0.0
  %2440 = vmatprep.subr.mxu0 0.0
  %2441 = vmatpush1.msra.mxu0 0.0
  %2442 = vmatprep.subr.mxu0 0.0
  %2443 = vmatpush1.msra.mxu0 0.0
  %2444 = vmatprep.subr.mxu0 0.0
  %2445 = vmatpush1.msra.mxu0 0.0
  %2446 = vmatprep.subr.mxu0 0.0
  %2447 = vmatpush1.msra.mxu0 0.0
  %2448 = vmatprep.subr.mxu0 0.0
  %2449 = vmatpush1.msra.mxu0 0.0
  %2450 = vmatprep.subr.mxu0 0.0
  %2451 = vmatpush1.msra.mxu0 0.0
  %2452 = vmatprep.subr.mxu0 0.0
  %2453 = vmatpush1.msra.mxu0 0.0
  %2454 = vmatprep.subr.mxu0 0.0
  %2455 = vmatpush1.msra.mxu0 0.0
  %2456 = vmatprep.subr.mxu0 0.0
  %2457 = vmatpush1.msra.mxu0 0.0
  %2458 = vmatprep.subr.mxu0 0.0
  %2459 = vmatpush1.msra.mxu0 0.0
  %2460 = vmatprep.subr.mxu0 0.0
  %2461 = vmatpush1.msra.mxu0 0.0
  %2462 = vmatprep.subr.mxu0 0.0
  %2463 = vmatpush1.msra.mxu0 0.0
  %2464 = vmatprep.subr.mxu0 0.0
  %2465 = vmatpush1.msra.mxu0 0.0
  %2466 = vmatprep.subr.mxu0 0.0
  %2467 = vmatpush1.msra.mxu0 0.0
  %2468 = vmatprep.subr.mxu0 0.0
  %2469 = vmatpush1.msra.mxu0 0.0
  %2470 = vmatprep.subr.mxu0 0.0
  %2471 = vmatpush1.msra.mxu0 0.0
  %2472 = vmatprep.subr.mxu0 0.0
  %2473 = vmatpush1.msra.mxu0 0.0
  %2474 = vmatprep.subr.mxu0 0.0
  %2475 = vmatpush1.msra.mxu0 0.0
  %2476 = vmatprep.subr.mxu0 0.0
  %2477 = vmatpush1.msra.mxu0 0.0
  %2478 = vmatprep.mubr.f32.mxu0 0.0
  %2479 = vmatmul.mubr.f32.gmra.mrb[0].mxu0 %v1709
  %v2480 = vpop.f32.mrb[0].mxu0
  %v2481 = vadd.f32 %v2402, %v2480
  %v2482 = vpop.f32.mrb[0].mxu0
  %2483 = vmatprep.mubr.f32.mxu0 0.0
  %2484 = vmatmul.mubr.f32.gmra.mrb[0].mxu0 %v1711
  %v2485 = vpop.f32.mrb[0].mxu0
  %v2486 = vadd.f32 %v2402, %v2485
  %v2487 = vpop.f32.mrb[0].mxu0
  %2488 = vmatprep.mubr.f32.mxu0 0.0
  %2489 = vmatmul.mubr.f32.gmra.mrb[0].mxu0 %v1846
  %v2490 = vpop.f32.mrb[0].mxu0
  %v2491 = vadd.f32 %v2402, %v2490
  %v2492 = vpop.f32.mrb[0].mxu0
  %2493 = vmatprep.mubr.f32.mxu0 0.0
  %2494 = vmatmul.mubr.f32.gmra.mrb[0].mxu0 %v1848
  %v2495 = vpop.f32.mrb[0].mxu0
  %v2496 = vadd.f32 %v2402, %v2495
  %v2497 = vpop.f32.mrb[0].mxu0
  %2498 = vmatprep.mubr.f32.mxu0 0.0
  %2499 = vmatmul.mubr.f32.gmra.mrb[0].mxu0 %v1983
  %v2500 = vpop.f32.mrb[0].mxu0
  %v2501 = vadd.f32 %v2402, %v2500
  %v2502 = vpop.f32.mrb[0].mxu0
  %2503 = vmatprep.mubr.f32.mxu0 0.0
  %2504 = vmatmul.mubr.f32.gmra.mrb[0].mxu0 %v1985
  %v2505 = vpop.f32.mrb[0].mxu0
  %v2506 = vadd.f32 %v2402, %v2505
  %v2507 = vpop.f32.mrb[0].mxu0
  %2508 = vmatprep.mubr.f32.mxu0 0.0
  %2509 = vmatmul.mubr.f32.gmra.mrb[0].mxu0 %v2120
  %v2510 = vpop.f32.mrb[0].mxu0
  %v2511 = vadd.f32 %v2402, %v2510
  %v2512 = vpop.f32.mrb[0].mxu0
  %2513 = vmatprep.mubr.f32.mxu0 0.0
  %2514 = vmatmul.mubr.f32.gmra.mrb[0].mxu0 %v2122
  %v2515 = vpop.f32.mrb[0].mxu0
  %v2516 = vadd.f32 %v2402, %v2515
  %v2517 = vpop.f32.mrb[0].mxu0
  %2518 = vmatprep.mubr.f32.mxu0 0.0
  %2519 = vmatmul.mubr.f32.gmra.mrb[0].mxu0 %v2257
  %v2520 = vpop.f32.mrb[0].mxu0
  %v2521 = vadd.f32 %v2402, %v2520
  %v2522 = vpop.f32.mrb[0].mxu0
  %2523 = vmatprep.mubr.f32.mxu0 0.0
  %2524 = vmatmul.mubr.f32.gmra.mrb[0].mxu0 %v2259
  %v2525 = vpop.f32.mrb[0].mxu0
  %v2526 = vadd.f32 %v2402, %v2525
  %v2527 = vpop.f32.mrb[0].mxu0
  %2528 = vmatprep.mubr.f32.mxu0 0.0
  %2529 = vmatmul.mubr.f32.gmra.mrb[0].mxu0 %v2410
  %v2530 = vpop.f32.mrb[0].mxu0
  %v2531 = vadd.f32 %v2402, %v2530
  %v2532 = vpop.f32.mrb[0].mxu0
  %2533 = vmatprep.mubr.f32.mxu0 0.0
  %2534 = vmatmul.mubr.f32.gmra.mrb[0].mxu0 %v2412
  %v2535 = vpop.f32.mrb[0].mxu0
  %v2536 = vadd.f32 %v2402, %v2535
  %v2537 = vpop.f32.mrb[0].mxu0
  %2538 = vdwg.mxu0
  %v2540 = vlaneseq
  %v2541 = vshrl.u32 %v2540, 7
  %v2542 = vsub.s32 0, %v2541
  %v2543 = vrot.slane %v2397, %v2542
  %2545 = vmatprep.subr.mxu0 0.0
  %2546 = vmatpush1.msra.mxu0 %v2392
  %2547 = vmatprep.subr.mxu0 0.0
  %2548 = vmatpush1.msra.mxu0 %v2393
  %2549 = vmatprep.subr.mxu0 0.0
  %2550 = vmatpush1.msra.mxu0 %v2394
  %2551 = vmatprep.subr.mxu0 0.0
  %2552 = vmatpush1.msra.mxu0 %v2395
  %2553 = vmatprep.subr.mxu0 0.0
  %2554 = vmatpush1.msra.mxu0 0.0
  %2555 = vmatprep.subr.mxu0 0.0
  %2556 = vmatpush1.msra.mxu0 0.0
  %2557 = vmatprep.subr.mxu0 0.0
  %2558 = vmatpush1.msra.mxu0 0.0
  %2559 = vmatprep.subr.mxu0 0.0
  %2560 = vmatpush1.msra.mxu0 0.0
  %2561 = vmatprep.subr.mxu0 0.0
  %2562 = vmatpush1.msra.mxu0 0.0
  %2563 = vmatprep.subr.mxu0 0.0
  %2564 = vmatpush1.msra.mxu0 0.0
  %2565 = vmatprep.subr.mxu0 0.0
  %2566 = vmatpush1.msra.mxu0 0.0
  %2567 = vmatprep.subr.mxu0 0.0
  %2568 = vmatpush1.msra.mxu0 0.0
  %2569 = vmatprep.subr.mxu0 0.0
  %2570 = vmatpush1.msra.mxu0 0.0
  %2571 = vmatprep.subr.mxu0 0.0
  %2572 = vmatpush1.msra.mxu0 0.0
  %2573 = vmatprep.subr.mxu0 0.0
  %2574 = vmatpush1.msra.mxu0 0.0
  %2575 = vmatprep.subr.mxu0 0.0
  %2576 = vmatpush1.msra.mxu0 0.0
  %2577 = vmatprep.subr.mxu0 0.0
  %2578 = vmatpush1.msra.mxu0 0.0
  %2579 = vmatprep.subr.mxu0 0.0
  %2580 = vmatpush1.msra.mxu0 0.0
  %2581 = vmatprep.subr.mxu0 0.0
  %2582 = vmatpush1.msra.mxu0 0.0
  %2583 = vmatprep.subr.mxu0 0.0
  %2584 = vmatpush1.msra.mxu0 0.0
  %2585 = vmatprep.subr.mxu0 0.0
  %2586 = vmatpush1.msra.mxu0 0.0
  %2587 = vmatprep.subr.mxu0 0.0
  %2588 = vmatpush1.msra.mxu0 0.0
  %2589 = vmatprep.subr.mxu0 0.0
  %2590 = vmatpush1.msra.mxu0 0.0
  %2591 = vmatprep.subr.mxu0 0.0
  %2592 = vmatpush1.msra.mxu0 0.0
  %2593 = vmatprep.subr.mxu0 0.0
  %2594 = vmatpush1.msra.mxu0 0.0
  %2595 = vmatprep.subr.mxu0 0.0
  %2596 = vmatpush1.msra.mxu0 0.0
  %2597 = vmatprep.subr.mxu0 0.0
  %2598 = vmatpush1.msra.mxu0 0.0
  %2599 = vmatprep.subr.mxu0 0.0
  %2600 = vmatpush1.msra.mxu0 0.0
  %2601 = vmatprep.subr.mxu0 0.0
  %2602 = vmatpush1.msra.mxu0 0.0
  %2603 = vmatprep.subr.mxu0 0.0
  %2604 = vmatpush1.msra.mxu0 0.0
  %2605 = vmatprep.subr.mxu0 0.0
  %2606 = vmatpush1.msra.mxu0 0.0
  %2607 = vmatprep.subr.mxu0 0.0
  %2608 = vmatpush1.msra.mxu0 0.0
  %2609 = vmatprep.mubr.f32.mxu0 0.0
  %2610 = vmatmul.mubr.f32.gmra.mrb[0].mxu0 %v1574
  %v2611 = vpop.f32.mrb[0].mxu0
  %v2612 = vadd.f32 %v2543, %v2611
  %v2613 = vpop.f32.mrb[0].mxu0
  %2614 = vmatprep.mubr.f32.mxu0 0.0
  %2615 = vmatmul.mubr.f32.gmra.mrb[0].mxu0 %v1574
  %v2616 = vpop.f32.mrb[0].mxu0
  %v2617 = vadd.f32 %v2543, %v2616
  %v2618 = vpop.f32.mrb[0].mxu0
  %2619 = vdwg.mxu0
  %v2620 = vadd.f32 %v2481, %v2612
  %v2621 = vadd.f32 %v2486, %v2617
  %v2622 = vxor.u32 %v2620, 2147483648
  %v2623 = vxor.u32 %v2621, 2147483648
  %v2624 = vmul.f32 %v2622, 1.442695
  %v2625 = vpow.pop %v2624
  %v2626 = vmul.f32 %v2623, 1.442695
  %v2627 = vpow.pop %v2626
  %v2628 = vadd.f32 %v2625, 1.0
  %v2629 = vadd.f32 %v2627, 1.0
  %v2630 = vrcp.pop %v2628
  %v2631 = vmul.f32 1.0, %v2630
  %v2632 = vrcp.pop %v2629
  %v2633 = vmul.f32 1.0, %v2632
  %2636 = vrot.lane.b32.xlu0 %v2612, 64
  %v2637 = vpop.permute.xlu0 %2636
  %2638 = vrot.lane.b32.xlu0 %v2617, 64
  %v2639 = vpop.permute.xlu0 %2638
  %v2642 = vmul.f32 %v2631, %v2637
  %v2643 = vmul.f32 %v2633, %v2639
  %2646 = vrot.lane.b32.xlu0 %v2642, 64
  %v2647 = vpop.permute.xlu0 %2646
  %2648 = vrot.lane.b32.xlu0 %v2643, 64
  %v2649 = vpop.permute.xlu0 %2648
  %v2652 = vadd.f32 %v2481, %v2647
  %v2653 = vadd.f32 %v2486, %v2649
  %v2654 = vtanh.pop %v2652
  %v2655 = vtanh.pop %v2653
  %v2656 = vsub.f32 1.0, %v2631
  %v2657 = vsub.f32 1.0, %v2633
  %2660 = vrot.lane.b32.xlu0 %v2654, 96
  %v2661 = vpop.permute.xlu0 %2660
  %2662 = vrot.lane.b32.xlu0 %v2655, 96
  %v2663 = vpop.permute.xlu0 %2662
  %v2666 = vmul.f32 %v2656, %v2661
  %v2667 = vmul.f32 %v2657, %v2663
  %v2668 = vmul.f32 %v2631, 0.0
  %v2669 = vmul.f32 %v2633, 0.0
  %v2670 = vadd.f32 %v2666, %v2668
  %v2671 = vadd.f32 %v2667, %v2669
  %2674 = vrot.lane.b32.xlu0 %v2670, 96
  %v2675 = vpop.permute.xlu0 %2674
  %2676 = vrot.lane.b32.xlu0 %v2671, 96
  %v2677 = vpop.permute.xlu0 %2676
  %v2678 = vsel %vm1405, %v2675, 0
  %v2680 = vsel %vm1405, %v2677, 0
  %2682 = vmatprep.subr.mxu0 0.0
  %2683 = vmatpush1.msra.mxu0 %v2392
  %2684 = vmatprep.subr.mxu0 0.0
  %2685 = vmatpush1.msra.mxu0 %v2393
  %2686 = vmatprep.subr.mxu0 0.0
  %2687 = vmatpush1.msra.mxu0 %v2394
  %2688 = vmatprep.subr.mxu0 0.0
  %2689 = vmatpush1.msra.mxu0 %v2395
  %2690 = vmatprep.subr.mxu0 0.0
  %2691 = vmatpush1.msra.mxu0 0.0
  %2692 = vmatprep.subr.mxu0 0.0
  %2693 = vmatpush1.msra.mxu0 0.0
  %2694 = vmatprep.subr.mxu0 0.0
  %2695 = vmatpush1.msra.mxu0 0.0
  %2696 = vmatprep.subr.mxu0 0.0
  %2697 = vmatpush1.msra.mxu0 0.0
  %2698 = vmatprep.subr.mxu0 0.0
  %2699 = vmatpush1.msra.mxu0 0.0
  %2700 = vmatprep.subr.mxu0 0.0
  %2701 = vmatpush1.msra.mxu0 0.0
  %2702 = vmatprep.subr.mxu0 0.0
  %2703 = vmatpush1.msra.mxu0 0.0
  %2704 = vmatprep.subr.mxu0 0.0
  %2705 = vmatpush1.msra.mxu0 0.0
  %2706 = vmatprep.subr.mxu0 0.0
  %2707 = vmatpush1.msra.mxu0 0.0
  %2708 = vmatprep.subr.mxu0 0.0
  %2709 = vmatpush1.msra.mxu0 0.0
  %2710 = vmatprep.subr.mxu0 0.0
  %2711 = vmatpush1.msra.mxu0 0.0
  %2712 = vmatprep.subr.mxu0 0.0
  %2713 = vmatpush1.msra.mxu0 0.0
  %2714 = vmatprep.subr.mxu0 0.0
  %2715 = vmatpush1.msra.mxu0 0.0
  %2716 = vmatprep.subr.mxu0 0.0
  %2717 = vmatpush1.msra.mxu0 0.0
  %2718 = vmatprep.subr.mxu0 0.0
  %2719 = vmatpush1.msra.mxu0 0.0
  %2720 = vmatprep.subr.mxu0 0.0
  %2721 = vmatpush1.msra.mxu0 0.0
  %2722 = vmatprep.subr.mxu0 0.0
  %2723 = vmatpush1.msra.mxu0 0.0
  %2724 = vmatprep.subr.mxu0 0.0
  %2725 = vmatpush1.msra.mxu0 0.0
  %2726 = vmatprep.subr.mxu0 0.0
  %2727 = vmatpush1.msra.mxu0 0.0
  %2728 = vmatprep.subr.mxu0 0.0
  %2729 = vmatpush1.msra.mxu0 0.0
  %2730 = vmatprep.subr.mxu0 0.0
  %2731 = vmatpush1.msra.mxu0 0.0
  %2732 = vmatprep.subr.mxu0 0.0
  %2733 = vmatpush1.msra.mxu0 0.0
  %2734 = vmatprep.subr.mxu0 0.0
  %2735 = vmatpush1.msra.mxu0 0.0
  %2736 = vmatprep.subr.mxu0 0.0
  %2737 = vmatpush1.msra.mxu0 0.0
  %2738 = vmatprep.subr.mxu0 0.0
  %2739 = vmatpush1.msra.mxu0 0.0
  %2740 = vmatprep.subr.mxu0 0.0
  %2741 = vmatpush1.msra.mxu0 0.0
  %2742 = vmatprep.subr.mxu0 0.0
  %2743 = vmatpush1.msra.mxu0 0.0
  %2744 = vmatprep.subr.mxu0 0.0
  %2745 = vmatpush1.msra.mxu0 0.0
  %2746 = vmatprep.mubr.f32.mxu0 0.0
  %2747 = vmatmul.mubr.f32.gmra.mrb[0].mxu0 %v2678
  %v2748 = vpop.f32.mrb[0].mxu0
  %v2749 = vadd.f32 %v2543, %v2748
  %v2750 = vpop.f32.mrb[0].mxu0
  %2751 = vmatprep.mubr.f32.mxu0 0.0
  %2752 = vmatmul.mubr.f32.gmra.mrb[0].mxu0 %v2680
  %v2753 = vpop.f32.mrb[0].mxu0
  %v2754 = vadd.f32 %v2543, %v2753
  %v2755 = vpop.f32.mrb[0].mxu0
  %2756 = vdwg.mxu0
  %v2757 = vadd.f32 %v2491, %v2749
  %v2758 = vadd.f32 %v2496, %v2754
  %v2759 = vxor.u32 %v2757, 2147483648
  %v2760 = vxor.u32 %v2758, 2147483648
  %v2761 = vmul.f32 %v2759, 1.442695
  %v2762 = vpow.pop %v2761
  %v2763 = vmul.f32 %v2760, 1.442695
  %v2764 = vpow.pop %v2763
  %v2765 = vadd.f32 %v2762, 1.0
  %v2766 = vadd.f32 %v2764, 1.0
  %v2767 = vrcp.pop %v2765
  %v2768 = vmul.f32 1.0, %v2767
  %v2769 = vrcp.pop %v2766
  %v2770 = vmul.f32 1.0, %v2769
  %2773 = vrot.lane.b32.xlu0 %v2749, 64
  %v2774 = vpop.permute.xlu0 %2773
  %2775 = vrot.lane.b32.xlu0 %v2754, 64
  %v2776 = vpop.permute.xlu0 %2775
  %v2779 = vmul.f32 %v2768, %v2774
  %v2780 = vmul.f32 %v2770, %v2776
  %2783 = vrot.lane.b32.xlu0 %v2779, 64
  %v2784 = vpop.permute.xlu0 %2783
  %2785 = vrot.lane.b32.xlu0 %v2780, 64
  %v2786 = vpop.permute.xlu0 %2785
  %v2789 = vadd.f32 %v2491, %v2784
  %v2790 = vadd.f32 %v2496, %v2786
  %v2791 = vtanh.pop %v2789
  %v2792 = vtanh.pop %v2790
  %v2793 = vsub.f32 1.0, %v2768
  %v2794 = vsub.f32 1.0, %v2770
  %2797 = vrot.lane.b32.xlu0 %v2791, 96
  %v2798 = vpop.permute.xlu0 %2797
  %2799 = vrot.lane.b32.xlu0 %v2792, 96
  %v2800 = vpop.permute.xlu0 %2799
  %v2803 = vmul.f32 %v2793, %v2798
  %v2804 = vmul.f32 %v2794, %v2800
  %v2805 = vmul.f32 %v2768, %v2670
  %v2806 = vmul.f32 %v2770, %v2671
  %v2807 = vadd.f32 %v2803, %v2805
  %v2808 = vadd.f32 %v2804, %v2806
  %2811 = vrot.lane.b32.xlu0 %v2807, 96
  %v2812 = vpop.permute.xlu0 %2811
  %2813 = vrot.lane.b32.xlu0 %v2808, 96
  %v2814 = vpop.permute.xlu0 %2813
  %v2815 = vsel %vm1405, %v2812, 0
  %v2817 = vsel %vm1405, %v2814, 0
  %2819 = vmatprep.subr.mxu0 0.0
  %2820 = vmatpush1.msra.mxu0 %v2392
  %2821 = vmatprep.subr.mxu0 0.0
  %2822 = vmatpush1.msra.mxu0 %v2393
  %2823 = vmatprep.subr.mxu0 0.0
  %2824 = vmatpush1.msra.mxu0 %v2394
  %2825 = vmatprep.subr.mxu0 0.0
  %2826 = vmatpush1.msra.mxu0 %v2395
  %2827 = vmatprep.subr.mxu0 0.0
  %2828 = vmatpush1.msra.mxu0 0.0
  %2829 = vmatprep.subr.mxu0 0.0
  %2830 = vmatpush1.msra.mxu0 0.0
  %2831 = vmatprep.subr.mxu0 0.0
  %2832 = vmatpush1.msra.mxu0 0.0
  %2833 = vmatprep.subr.mxu0 0.0
  %2834 = vmatpush1.msra.mxu0 0.0
  %2835 = vmatprep.subr.mxu0 0.0
  %2836 = vmatpush1.msra.mxu0 0.0
  %2837 = vmatprep.subr.mxu0 0.0
  %2838 = vmatpush1.msra.mxu0 0.0
  %2839 = vmatprep.subr.mxu0 0.0
  %2840 = vmatpush1.msra.mxu0 0.0
  %2841 = vmatprep.subr.mxu0 0.0
  %2842 = vmatpush1.msra.mxu0 0.0
  %2843 = vmatprep.subr.mxu0 0.0
  %2844 = vmatpush1.msra.mxu0 0.0
  %2845 = vmatprep.subr.mxu0 0.0
  %2846 = vmatpush1.msra.mxu0 0.0
  %2847 = vmatprep.subr.mxu0 0.0
  %2848 = vmatpush1.msra.mxu0 0.0
  %2849 = vmatprep.subr.mxu0 0.0
  %2850 = vmatpush1.msra.mxu0 0.0
  %2851 = vmatprep.subr.mxu0 0.0
  %2852 = vmatpush1.msra.mxu0 0.0
  %2853 = vmatprep.subr.mxu0 0.0
  %2854 = vmatpush1.msra.mxu0 0.0
  %2855 = vmatprep.subr.mxu0 0.0
  %2856 = vmatpush1.msra.mxu0 0.0
  %2857 = vmatprep.subr.mxu0 0.0
  %2858 = vmatpush1.msra.mxu0 0.0
  %2859 = vmatprep.subr.mxu0 0.0
  %2860 = vmatpush1.msra.mxu0 0.0
  %2861 = vmatprep.subr.mxu0 0.0
  %2862 = vmatpush1.msra.mxu0 0.0
  %2863 = vmatprep.subr.mxu0 0.0
  %2864 = vmatpush1.msra.mxu0 0.0
  %2865 = vmatprep.subr.mxu0 0.0
  %2866 = vmatpush1.msra.mxu0 0.0
  %2867 = vmatprep.subr.mxu0 0.0
  %2868 = vmatpush1.msra.mxu0 0.0
  %2869 = vmatprep.subr.mxu0 0.0
  %2870 = vmatpush1.msra.mxu0 0.0
  %2871 = vmatprep.subr.mxu0 0.0
  %2872 = vmatpush1.msra.mxu0 0.0
  %2873 = vmatprep.subr.mxu0 0.0
  %2874 = vmatpush1.msra.mxu0 0.0
  %2875 = vmatprep.subr.mxu0 0.0
  %2876 = vmatpush1.msra.mxu0 0.0
  %2877 = vmatprep.subr.mxu0 0.0
  %2878 = vmatpush1.msra.mxu0 0.0
  %2879 = vmatprep.subr.mxu0 0.0
  %2880 = vmatpush1.msra.mxu0 0.0
  %2881 = vmatprep.subr.mxu0 0.0
  %2882 = vmatpush1.msra.mxu0 0.0
  %2883 = vmatprep.mubr.f32.mxu0 0.0
  %2884 = vmatmul.mubr.f32.gmra.mrb[0].mxu0 %v2815
  %v2885 = vpop.f32.mrb[0].mxu0
  %v2886 = vadd.f32 %v2543, %v2885
  %v2887 = vpop.f32.mrb[0].mxu0
  %2888 = vmatprep.mubr.f32.mxu0 0.0
  %2889 = vmatmul.mubr.f32.gmra.mrb[0].mxu0 %v2817
  %v2890 = vpop.f32.mrb[0].mxu0
  %v2891 = vadd.f32 %v2543, %v2890
  %v2892 = vpop.f32.mrb[0].mxu0
  %2893 = vdwg.mxu0
  %v2894 = vadd.f32 %v2501, %v2886
  %v2895 = vadd.f32 %v2506, %v2891
  %v2896 = vxor.u32 %v2894, 2147483648
  %v2897 = vxor.u32 %v2895, 2147483648
  %v2898 = vmul.f32 %v2896, 1.442695
  %v2899 = vpow.pop %v2898
  %v2900 = vmul.f32 %v2897, 1.442695
  %v2901 = vpow.pop %v2900
  %v2902 = vadd.f32 %v2899, 1.0
  %v2903 = vadd.f32 %v2901, 1.0
  %v2904 = vrcp.pop %v2902
  %v2905 = vmul.f32 1.0, %v2904
  %v2906 = vrcp.pop %v2903
  %v2907 = vmul.f32 1.0, %v2906
  %2910 = vrot.lane.b32.xlu0 %v2886, 64
  %v2911 = vpop.permute.xlu0 %2910
  %2912 = vrot.lane.b32.xlu0 %v2891, 64
  %v2913 = vpop.permute.xlu0 %2912
  %v2916 = vmul.f32 %v2905, %v2911
  %v2917 = vmul.f32 %v2907, %v2913
  %2920 = vrot.lane.b32.xlu0 %v2916, 64
  %v2921 = vpop.permute.xlu0 %2920
  %2922 = vrot.lane.b32.xlu0 %v2917, 64
  %v2923 = vpop.permute.xlu0 %2922
  %v2926 = vadd.f32 %v2501, %v2921
  %v2927 = vadd.f32 %v2506, %v2923
  %v2928 = vtanh.pop %v2926
  %v2929 = vtanh.pop %v2927
  %v2930 = vsub.f32 1.0, %v2905
  %v2931 = vsub.f32 1.0, %v2907
  %2934 = vrot.lane.b32.xlu0 %v2928, 96
  %v2935 = vpop.permute.xlu0 %2934
  %2936 = vrot.lane.b32.xlu0 %v2929, 96
  %v2937 = vpop.permute.xlu0 %2936
  %v2940 = vmul.f32 %v2930, %v2935
  %v2941 = vmul.f32 %v2931, %v2937
  %v2942 = vmul.f32 %v2905, %v2807
  %v2943 = vmul.f32 %v2907, %v2808
  %v2944 = vadd.f32 %v2940, %v2942
  %v2945 = vadd.f32 %v2941, %v2943
  %2948 = vrot.lane.b32.xlu0 %v2944, 96
  %v2949 = vpop.permute.xlu0 %2948
  %2950 = vrot.lane.b32.xlu0 %v2945, 96
  %v2951 = vpop.permute.xlu0 %2950
  %v2952 = vsel %vm1405, %v2949, 0
  %v2954 = vsel %vm1405, %v2951, 0
  %2956 = vmatprep.subr.mxu0 0.0
  %2957 = vmatpush1.msra.mxu0 %v2392
  %2958 = vmatprep.subr.mxu0 0.0
  %2959 = vmatpush1.msra.mxu0 %v2393
  %2960 = vmatprep.subr.mxu0 0.0
  %2961 = vmatpush1.msra.mxu0 %v2394
  %2962 = vmatprep.subr.mxu0 0.0
  %2963 = vmatpush1.msra.mxu0 %v2395
  %2964 = vmatprep.subr.mxu0 0.0
  %2965 = vmatpush1.msra.mxu0 0.0
  %2966 = vmatprep.subr.mxu0 0.0
  %2967 = vmatpush1.msra.mxu0 0.0
  %2968 = vmatprep.subr.mxu0 0.0
  %2969 = vmatpush1.msra.mxu0 0.0
  %2970 = vmatprep.subr.mxu0 0.0
  %2971 = vmatpush1.msra.mxu0 0.0
  %2972 = vmatprep.subr.mxu0 0.0
  %2973 = vmatpush1.msra.mxu0 0.0
  %2974 = vmatprep.subr.mxu0 0.0
  %2975 = vmatpush1.msra.mxu0 0.0
  %2976 = vmatprep.subr.mxu0 0.0
  %2977 = vmatpush1.msra.mxu0 0.0
  %2978 = vmatprep.subr.mxu0 0.0
  %2979 = vmatpush1.msra.mxu0 0.0
  %2980 = vmatprep.subr.mxu0 0.0
  %2981 = vmatpush1.msra.mxu0 0.0
  %2982 = vmatprep.subr.mxu0 0.0
  %2983 = vmatpush1.msra.mxu0 0.0
  %2984 = vmatprep.subr.mxu0 0.0
  %2985 = vmatpush1.msra.mxu0 0.0
  %2986 = vmatprep.subr.mxu0 0.0
  %2987 = vmatpush1.msra.mxu0 0.0
  %2988 = vmatprep.subr.mxu0 0.0
  %2989 = vmatpush1.msra.mxu0 0.0
  %2990 = vmatprep.subr.mxu0 0.0
  %2991 = vmatpush1.msra.mxu0 0.0
  %2992 = vmatprep.subr.mxu0 0.0
  %2993 = vmatpush1.msra.mxu0 0.0
  %2994 = vmatprep.subr.mxu0 0.0
  %2995 = vmatpush1.msra.mxu0 0.0
  %2996 = vmatprep.subr.mxu0 0.0
  %2997 = vmatpush1.msra.mxu0 0.0
  %2998 = vmatprep.subr.mxu0 0.0
  %2999 = vmatpush1.msra.mxu0 0.0
  %3000 = vmatprep.subr.mxu0 0.0
  %3001 = vmatpush1.msra.mxu0 0.0
  %3002 = vmatprep.subr.mxu0 0.0
  %3003 = vmatpush1.msra.mxu0 0.0
  %3004 = vmatprep.subr.mxu0 0.0
  %3005 = vmatpush1.msra.mxu0 0.0
  %3006 = vmatprep.subr.mxu0 0.0
  %3007 = vmatpush1.msra.mxu0 0.0
  %3008 = vmatprep.subr.mxu0 0.0
  %3009 = vmatpush1.msra.mxu0 0.0
  %3010 = vmatprep.subr.mxu0 0.0
  %3011 = vmatpush1.msra.mxu0 0.0
  %3012 = vmatprep.subr.mxu0 0.0
  %3013 = vmatpush1.msra.mxu0 0.0
  %3014 = vmatprep.subr.mxu0 0.0
  %3015 = vmatpush1.msra.mxu0 0.0
  %3016 = vmatprep.subr.mxu0 0.0
  %3017 = vmatpush1.msra.mxu0 0.0
  %3018 = vmatprep.subr.mxu0 0.0
  %3019 = vmatpush1.msra.mxu0 0.0
  %3020 = vmatprep.mubr.f32.mxu0 0.0
  %3021 = vmatmul.mubr.f32.gmra.mrb[0].mxu0 %v2952
  %v3022 = vpop.f32.mrb[0].mxu0
  %v3023 = vadd.f32 %v2543, %v3022
  %v3024 = vpop.f32.mrb[0].mxu0
  %3025 = vmatprep.mubr.f32.mxu0 0.0
  %3026 = vmatmul.mubr.f32.gmra.mrb[0].mxu0 %v2954
  %v3027 = vpop.f32.mrb[0].mxu0
  %v3028 = vadd.f32 %v2543, %v3027
  %v3029 = vpop.f32.mrb[0].mxu0
  %3030 = vdwg.mxu0
  %v3031 = vadd.f32 %v2511, %v3023
  %v3032 = vadd.f32 %v2516, %v3028
  %v3033 = vxor.u32 %v3031, 2147483648
  %v3034 = vxor.u32 %v3032, 2147483648
  %v3035 = vmul.f32 %v3033, 1.442695
  %v3036 = vpow.pop %v3035
  %v3037 = vmul.f32 %v3034, 1.442695
  %v3038 = vpow.pop %v3037
  %v3039 = vadd.f32 %v3036, 1.0
  %v3040 = vadd.f32 %v3038, 1.0
  %v3041 = vrcp.pop %v3039
  %v3042 = vmul.f32 1.0, %v3041
  %v3043 = vrcp.pop %v3040
  %v3044 = vmul.f32 1.0, %v3043
  %3047 = vrot.lane.b32.xlu0 %v3023, 64
  %v3048 = vpop.permute.xlu0 %3047
  %3049 = vrot.lane.b32.xlu0 %v3028, 64
  %v3050 = vpop.permute.xlu0 %3049
  %v3053 = vmul.f32 %v3042, %v3048
  %v3054 = vmul.f32 %v3044, %v3050
  %3057 = vrot.lane.b32.xlu0 %v3053, 64
  %v3058 = vpop.permute.xlu0 %3057
  %3059 = vrot.lane.b32.xlu0 %v3054, 64
  %v3060 = vpop.permute.xlu0 %3059
  %v3063 = vadd.f32 %v2511, %v3058
  %v3064 = vadd.f32 %v2516, %v3060
  %v3065 = vtanh.pop %v3063
  %v3066 = vtanh.pop %v3064
  %v3067 = vsub.f32 1.0, %v3042
  %v3068 = vsub.f32 1.0, %v3044
  %3071 = vrot.lane.b32.xlu0 %v3065, 96
  %v3072 = vpop.permute.xlu0 %3071
  %3073 = vrot.lane.b32.xlu0 %v3066, 96
  %v3074 = vpop.permute.xlu0 %3073
  %v3077 = vmul.f32 %v3067, %v3072
  %v3078 = vmul.f32 %v3068, %v3074
  %v3079 = vmul.f32 %v3042, %v2944
  %v3080 = vmul.f32 %v3044, %v2945
  %v3081 = vadd.f32 %v3077, %v3079
  %v3082 = vadd.f32 %v3078, %v3080
  %3085 = vrot.lane.b32.xlu0 %v3081, 96
  %v3086 = vpop.permute.xlu0 %3085
  %3087 = vrot.lane.b32.xlu0 %v3082, 96
  %v3088 = vpop.permute.xlu0 %3087
  %v3089 = vsel %vm1405, %v3086, 0
  %v3091 = vsel %vm1405, %v3088, 0
  %3093 = vmatprep.subr.mxu0 0.0
  %3094 = vmatpush1.msra.mxu0 %v2392
  %3095 = vmatprep.subr.mxu0 0.0
  %3096 = vmatpush1.msra.mxu0 %v2393
  %3097 = vmatprep.subr.mxu0 0.0
  %3098 = vmatpush1.msra.mxu0 %v2394
  %3099 = vmatprep.subr.mxu0 0.0
  %3100 = vmatpush1.msra.mxu0 %v2395
  %3101 = vmatprep.subr.mxu0 0.0
  %3102 = vmatpush1.msra.mxu0 0.0
  %3103 = vmatprep.subr.mxu0 0.0
  %3104 = vmatpush1.msra.mxu0 0.0
  %3105 = vmatprep.subr.mxu0 0.0
  %3106 = vmatpush1.msra.mxu0 0.0
  %3107 = vmatprep.subr.mxu0 0.0
  %3108 = vmatpush1.msra.mxu0 0.0
  %3109 = vmatprep.subr.mxu0 0.0
  %3110 = vmatpush1.msra.mxu0 0.0
  %3111 = vmatprep.subr.mxu0 0.0
  %3112 = vmatpush1.msra.mxu0 0.0
  %3113 = vmatprep.subr.mxu0 0.0
  %3114 = vmatpush1.msra.mxu0 0.0
  %3115 = vmatprep.subr.mxu0 0.0
  %3116 = vmatpush1.msra.mxu0 0.0
  %3117 = vmatprep.subr.mxu0 0.0
  %3118 = vmatpush1.msra.mxu0 0.0
  %3119 = vmatprep.subr.mxu0 0.0
  %3120 = vmatpush1.msra.mxu0 0.0
  %3121 = vmatprep.subr.mxu0 0.0
  %3122 = vmatpush1.msra.mxu0 0.0
  %3123 = vmatprep.subr.mxu0 0.0
  %3124 = vmatpush1.msra.mxu0 0.0
  %3125 = vmatprep.subr.mxu0 0.0
  %3126 = vmatpush1.msra.mxu0 0.0
  %3127 = vmatprep.subr.mxu0 0.0
  %3128 = vmatpush1.msra.mxu0 0.0
  %3129 = vmatprep.subr.mxu0 0.0
  %3130 = vmatpush1.msra.mxu0 0.0
  %3131 = vmatprep.subr.mxu0 0.0
  %3132 = vmatpush1.msra.mxu0 0.0
  %3133 = vmatprep.subr.mxu0 0.0
  %3134 = vmatpush1.msra.mxu0 0.0
  %3135 = vmatprep.subr.mxu0 0.0
  %3136 = vmatpush1.msra.mxu0 0.0
  %3137 = vmatprep.subr.mxu0 0.0
  %3138 = vmatpush1.msra.mxu0 0.0
  %3139 = vmatprep.subr.mxu0 0.0
  %3140 = vmatpush1.msra.mxu0 0.0
  %3141 = vmatprep.subr.mxu0 0.0
  %3142 = vmatpush1.msra.mxu0 0.0
  %3143 = vmatprep.subr.mxu0 0.0
  %3144 = vmatpush1.msra.mxu0 0.0
  %3145 = vmatprep.subr.mxu0 0.0
  %3146 = vmatpush1.msra.mxu0 0.0
  %3147 = vmatprep.subr.mxu0 0.0
  %3148 = vmatpush1.msra.mxu0 0.0
  %3149 = vmatprep.subr.mxu0 0.0
  %3150 = vmatpush1.msra.mxu0 0.0
  %3151 = vmatprep.subr.mxu0 0.0
  %3152 = vmatpush1.msra.mxu0 0.0
  %3153 = vmatprep.subr.mxu0 0.0
  %3154 = vmatpush1.msra.mxu0 0.0
  %3155 = vmatprep.subr.mxu0 0.0
  %3156 = vmatpush1.msra.mxu0 0.0
  %3157 = vmatprep.mubr.f32.mxu0 0.0
  %3158 = vmatmul.mubr.f32.gmra.mrb[0].mxu0 %v3089
  %v3159 = vpop.f32.mrb[0].mxu0
  %v3160 = vadd.f32 %v2543, %v3159
  %v3161 = vpop.f32.mrb[0].mxu0
  %3162 = vmatprep.mubr.f32.mxu0 0.0
  %3163 = vmatmul.mubr.f32.gmra.mrb[0].mxu0 %v3091
  %v3164 = vpop.f32.mrb[0].mxu0
  %v3165 = vadd.f32 %v2543, %v3164
  %v3166 = vpop.f32.mrb[0].mxu0
  %3167 = vdwg.mxu0
  %v3168 = vadd.f32 %v2521, %v3160
  %v3169 = vadd.f32 %v2526, %v3165
  %v3170 = vxor.u32 %v3168, 2147483648
  %v3171 = vxor.u32 %v3169, 2147483648
  %v3172 = vmul.f32 %v3170, 1.442695
  %v3173 = vpow.pop %v3172
  %v3174 = vmul.f32 %v3171, 1.442695
  %v3175 = vpow.pop %v3174
  %v3176 = vadd.f32 %v3173, 1.0
  %v3177 = vadd.f32 %v3175, 1.0
  %v3178 = vrcp.pop %v3176
  %v3179 = vmul.f32 1.0, %v3178
  %v3180 = vrcp.pop %v3177
  %v3181 = vmul.f32 1.0, %v3180
  %3184 = vrot.lane.b32.xlu0 %v3160, 64
  %v3185 = vpop.permute.xlu0 %3184
  %3186 = vrot.lane.b32.xlu0 %v3165, 64
  %v3187 = vpop.permute.xlu0 %3186
  %v3190 = vmul.f32 %v3179, %v3185
  %v3191 = vmul.f32 %v3181, %v3187
  %3194 = vrot.lane.b32.xlu0 %v3190, 64
  %v3195 = vpop.permute.xlu0 %3194
  %3196 = vrot.lane.b32.xlu0 %v3191, 64
  %v3197 = vpop.permute.xlu0 %3196
  %v3200 = vadd.f32 %v2521, %v3195
  %v3201 = vadd.f32 %v2526, %v3197
  %v3202 = vtanh.pop %v3200
  %v3203 = vtanh.pop %v3201
  %v3204 = vsub.f32 1.0, %v3179
  %v3205 = vsub.f32 1.0, %v3181
  %3208 = vrot.lane.b32.xlu0 %v3202, 96
  %v3209 = vpop.permute.xlu0 %3208
  %3210 = vrot.lane.b32.xlu0 %v3203, 96
  %v3211 = vpop.permute.xlu0 %3210
  %v3214 = vmul.f32 %v3204, %v3209
  %v3215 = vmul.f32 %v3205, %v3211
  %v3216 = vmul.f32 %v3179, %v3081
  %v3217 = vmul.f32 %v3181, %v3082
  %v3218 = vadd.f32 %v3214, %v3216
  %v3219 = vadd.f32 %v3215, %v3217
  %3222 = vrot.lane.b32.xlu0 %v3218, 96
  %v3223 = vpop.permute.xlu0 %3222
  %3224 = vrot.lane.b32.xlu0 %v3219, 96
  %v3225 = vpop.permute.xlu0 %3224
  %v3226 = vsel %vm1405, %v3223, 0
  %v3228 = vsel %vm1405, %v3225, 0
  %3230 = vmatprep.subr.mxu0 0.0
  %3231 = vmatpush1.msra.mxu0 %v2392
  %3232 = vmatprep.subr.mxu0 0.0
  %3233 = vmatpush1.msra.mxu0 %v2393
  %3234 = vmatprep.subr.mxu0 0.0
  %3235 = vmatpush1.msra.mxu0 %v2394
  %3236 = vmatprep.subr.mxu0 0.0
  %3237 = vmatpush1.msra.mxu0 %v2395
  %3238 = vmatprep.subr.mxu0 0.0
  %3239 = vmatpush1.msra.mxu0 0.0
  %3240 = vmatprep.subr.mxu0 0.0
  %3241 = vmatpush1.msra.mxu0 0.0
  %3242 = vmatprep.subr.mxu0 0.0
  %3243 = vmatpush1.msra.mxu0 0.0
  %3244 = vmatprep.subr.mxu0 0.0
  %3245 = vmatpush1.msra.mxu0 0.0
  %3246 = vmatprep.subr.mxu0 0.0
  %3247 = vmatpush1.msra.mxu0 0.0
  %3248 = vmatprep.subr.mxu0 0.0
  %3249 = vmatpush1.msra.mxu0 0.0
  %3250 = vmatprep.subr.mxu0 0.0
  %3251 = vmatpush1.msra.mxu0 0.0
  %3252 = vmatprep.subr.mxu0 0.0
  %3253 = vmatpush1.msra.mxu0 0.0
  %3254 = vmatprep.subr.mxu0 0.0
  %3255 = vmatpush1.msra.mxu0 0.0
  %3256 = vmatprep.subr.mxu0 0.0
  %3257 = vmatpush1.msra.mxu0 0.0
  %3258 = vmatprep.subr.mxu0 0.0
  %3259 = vmatpush1.msra.mxu0 0.0
  %3260 = vmatprep.subr.mxu0 0.0
  %3261 = vmatpush1.msra.mxu0 0.0
  %3262 = vmatprep.subr.mxu0 0.0
  %3263 = vmatpush1.msra.mxu0 0.0
  %3264 = vmatprep.subr.mxu0 0.0
  %3265 = vmatpush1.msra.mxu0 0.0
  %3266 = vmatprep.subr.mxu0 0.0
  %3267 = vmatpush1.msra.mxu0 0.0
  %3268 = vmatprep.subr.mxu0 0.0
  %3269 = vmatpush1.msra.mxu0 0.0
  %3270 = vmatprep.subr.mxu0 0.0
  %3271 = vmatpush1.msra.mxu0 0.0
  %3272 = vmatprep.subr.mxu0 0.0
  %3273 = vmatpush1.msra.mxu0 0.0
  %3274 = vmatprep.subr.mxu0 0.0
  %3275 = vmatpush1.msra.mxu0 0.0
  %3276 = vmatprep.subr.mxu0 0.0
  %3277 = vmatpush1.msra.mxu0 0.0
  %3278 = vmatprep.subr.mxu0 0.0
  %3279 = vmatpush1.msra.mxu0 0.0
  %3280 = vmatprep.subr.mxu0 0.0
  %3281 = vmatpush1.msra.mxu0 0.0
  %3282 = vmatprep.subr.mxu0 0.0
  %3283 = vmatpush1.msra.mxu0 0.0
  %3284 = vmatprep.subr.mxu0 0.0
  %3285 = vmatpush1.msra.mxu0 0.0
  %3286 = vmatprep.subr.mxu0 0.0
  %3287 = vmatpush1.msra.mxu0 0.0
  %3288 = vmatprep.subr.mxu0 0.0
  %3289 = vmatpush1.msra.mxu0 0.0
  %3290 = vmatprep.subr.mxu0 0.0
  %3291 = vmatpush1.msra.mxu0 0.0
  %3292 = vmatprep.subr.mxu0 0.0
  %3293 = vmatpush1.msra.mxu0 0.0
  %3294 = vmatprep.mubr.f32.mxu0 0.0
  %3295 = vmatmul.mubr.f32.gmra.mrb[0].mxu0 %v3226
  %v3296 = vpop.f32.mrb[0].mxu0
  %v3297 = vadd.f32 %v2543, %v3296
  %v3298 = vpop.f32.mrb[0].mxu0
  %3299 = vmatprep.mubr.f32.mxu0 0.0
  %3300 = vmatmul.mubr.f32.gmra.mrb[0].mxu0 %v3228
  %v3301 = vpop.f32.mrb[0].mxu0
  %v3302 = vadd.f32 %v2543, %v3301
  %v3303 = vpop.f32.mrb[0].mxu0
  %3304 = vdwg.mxu0
  %v3305 = vadd.f32 %v2531, %v3297
  %v3306 = vadd.f32 %v2536, %v3302
  %v3307 = vxor.u32 %v3305, 2147483648
  %v3308 = vxor.u32 %v3306, 2147483648
  %v3309 = vmul.f32 %v3307, 1.442695
  %v3310 = vpow.pop %v3309
  %v3311 = vmul.f32 %v3308, 1.442695
  %v3312 = vpow.pop %v3311
  %v3313 = vadd.f32 %v3310, 1.0
  %v3314 = vadd.f32 %v3312, 1.0
  %v3315 = vrcp.pop %v3313
  %v3316 = vmul.f32 1.0, %v3315
  %v3317 = vrcp.pop %v3314
  %v3318 = vmul.f32 1.0, %v3317
  %3321 = vrot.lane.b32.xlu0 %v3297, 64
  %v3322 = vpop.permute.xlu0 %3321
  %3323 = vrot.lane.b32.xlu0 %v3302, 64
  %v3324 = vpop.permute.xlu0 %3323
  %v3327 = vmul.f32 %v3316, %v3322
  %v3328 = vmul.f32 %v3318, %v3324
  %3331 = vrot.lane.b32.xlu0 %v3327, 64
  %v3332 = vpop.permute.xlu0 %3331
  %3333 = vrot.lane.b32.xlu0 %v3328, 64
  %v3334 = vpop.permute.xlu0 %3333
  %v3337 = vadd.f32 %v2531, %v3332
  %v3338 = vadd.f32 %v2536, %v3334
  %v3339 = vtanh.pop %v3337
  %v3340 = vtanh.pop %v3338
  %v3341 = vsub.f32 1.0, %v3316
  %v3342 = vsub.f32 1.0, %v3318
  %3345 = vrot.lane.b32.xlu0 %v3339, 96
  %v3346 = vpop.permute.xlu0 %3345
  %3347 = vrot.lane.b32.xlu0 %v3340, 96
  %v3348 = vpop.permute.xlu0 %3347
  %v3351 = vmul.f32 %v3341, %v3346
  %v3352 = vmul.f32 %v3342, %v3348
  %v3353 = vmul.f32 %v3316, %v3218
  %v3354 = vmul.f32 %v3318, %v3219
  %v3355 = vadd.f32 %v3351, %v3353
  %v3356 = vadd.f32 %v3352, %v3354
  %3359 = vrot.lane.b32.xlu0 %v2944, 32
  %v3360 = vpop.permute.xlu0 %3359
  %3361 = vrot.lane.b32.xlu0 %v2945, 32
  %v3362 = vpop.permute.xlu0 %3361
  %3365 = vrot.lane.b32.xlu0 %v3081, 64
  %v3366 = vpop.permute.xlu0 %3365
  %3367 = vrot.lane.b32.xlu0 %v3082, 64
  %v3368 = vpop.permute.xlu0 %3367
  %v3373 = vsel %vm1405, %v2675, %v2807
  %v3374 = vsel %vm1405, %v2677, %v2808
  %vm3375 = vcmask 523264
  %v3376 = vsel %vm3375, %v3373, %v3360
  %v3377 = vsel %vm3375, %v3374, %v3362
  %vm3378 = vcmask 785408
  %v3379 = vsel %vm3378, %v3376, %v3366
  %v3380 = vsel %vm3378, %v3377, %v3368
  %v3381 = vsel %vm1405, %v3223, %v3355
  %v3382 = vsel %vm1405, %v3225, %v3356
  %3383 = vst [vmem:[%s15] sm:$0xff] %v3379
  %3384 = vst.msk [vmem:[%s15 + $0x8] sm:$0xff] %vm3375, %v3381
  %3385 = vst [vmem:[%s15 + $0x10] sm:$0xff] %v3380
  %3386 = vst.msk [vmem:[%s15 + $0x18] sm:$0xff] %vm3375, %v3382
  // Predicated region
  $region62: #{lstmgcn_forward.1} parent=0 // pred_check
    _
  $region63: #{lstmgcn_forward.1} parent=0 // pred_check_branch
    %3388 = sbr.rel (0) target = $region65
  $region64: #{lstmgcn_forward.1} parent=0 // pred_region
    _
  $region65: #{lstmgcn_forward.1} parent=0 // pred_fallthru
    _
  // Predicated region
  $region66: #{lstmgcn_forward.1} parent=0 // pred_check
    _
  $region67: #{lstmgcn_forward.1} parent=0 // pred_check_branch
    %3390 = sbr.rel (0) target = $region69
  $region68: #{lstmgcn_forward.1} parent=0 // pred_region
    _
  $region69: #{lstmgcn_forward.1} parent=0 // pred_fallthru
    _

</llo_original>
